<compile_context>
chip_gen: v5e
topology: v5e:2x2
jax: 0.10.0
libtpu: 0.0.40
codegen_flags: <defaults>
</compile_context>

<pallas_src>
import functools

import jax
import jax.numpy as jnp
from jax.experimental import pallas as pl
from jax.experimental.pallas import tpu as pltpu


def _round_up(n, m):
    return ((n + m - 1) // m) * m


def _vmem_capacity_bytes():
    cap = 64 * 1024 * 1024           # conservative default (v7x per-core VMEM)
    try:
        cap = int(getattr(pltpu.get_tpu_info(), "vmem_capacity_bytes", cap))
    except Exception:
        pass
    return cap


def _lstm_chunk(T, B, H, budget_bytes):
    """Largest time-chunk (multiple of 8, <= 32) whose double-buffered bf16
    gate + output blocks (both directions) fit in the VMEM budget."""
    per_t = 2 * 2 * (B * 4 * H * 2) + 2 * 2 * (B * H * 2)        # 40*B*H bytes / step
    resident = 2 * 2 * (H * 4 * H * 2) + 4 * B * H * 4 + (1 << 16)
    avail = max(budget_bytes - resident, per_t)
    chunk = max(8, min(32, (int(avail // per_t) // 8) * 8))
    return min(chunk, _round_up(T, 8))


# --------------------- fused bidirectional LSTM recurrence ---------------------
def _bilstm_chunk_kernel(gf_ref, gb_ref, whhf_ref, whhb_ref, len_ref,
                         hf_out_ref, hb_out_ref,
                         hf_st, cf_st, hb_st, cb_st):
    """Processes a chunk of C timesteps for BOTH directions.

    Grid axis 0 runs over time-chunks g = 0..G-1 (sequential, "arbitrary"):
      * forward direction handles original times [g*C, (g+1)*C)
      * backward direction handles original times [Tp-(g+1)*C, Tp-g*C)
        (its input/output blocks are selected by reversed index_maps, so step
         counter s = g*C + j processes original time Tp-1-s).
    Packed-sequence semantics: state frozen and output zeroed where the
    original time index >= length; padded timesteps (t >= true T) are masked
    the same way since every length <= true T.
    """
    g = pl.program_id(0)

    @pl.when(g == 0)
    def _():
        hf_st[...] = jnp.zeros_like(hf_st)
        cf_st[...] = jnp.zeros_like(cf_st)
        hb_st[...] = jnp.zeros_like(hb_st)
        cb_st[...] = jnp.zeros_like(cb_st)

    C = gf_ref.shape[0]
    H = whhf_ref.shape[0]
    Tp = pl.num_programs(0) * C
    lens = len_ref[...]                                   # (B, 1) int32
    t0 = g * C

    # Hoist the resident recurrent weights out of the unrolled loop.
    w_f = whhf_ref[...]                                   # (H, 4H) bf16
    w_b = whhb_ref[...]

    def cell(gates, h, c, valid):
        # PyTorch gate order: i, f, g, o (all gate math kept in f32 for v5e).
        i = jax.nn.sigmoid(gates[:, 0 * H:1 * H])
        f = jax.nn.sigmoid(gates[:, 1 * H:2 * H])
        gg = jnp.tanh(gates[:, 2 * H:3 * H])
        o = jax.nn.sigmoid(gates[:, 3 * H:4 * H])
        c_new = f * c + i * gg
        h_new = o * jnp.tanh(c_new)
        return (jnp.where(valid, h_new, h),               # frozen past length
                jnp.where(valid, c_new, c),
                jnp.where(valid, h_new, 0.0))             # emitted output

    hf, cf = hf_st[...], cf_st[...]
    hb, cb = hb_st[...], cb_st[...]
    # Fully unrolled inner loop over the chunk (C is small and static).
    for j in range(C):
        # forward direction, original time t0 + j
        gates_f = (gf_ref[j].astype(jnp.float32)
                   + jnp.dot(hf.astype(jnp.bfloat16), w_f,
                             preferred_element_type=jnp.float32))
        hf, cf, emit_f = cell(gates_f, hf, cf, lens > (t0 + j))
        hf_out_ref[j] = emit_f.astype(hf_out_ref.dtype)

        # backward direction, original time Tp-1-(t0+j) == local index C-1-j
        jl = C - 1 - j
        gates_b = (gb_ref[jl].astype(jnp.float32)
                   + jnp.dot(hb.astype(jnp.bfloat16), w_b,
                             preferred_element_type=jnp.float32))
        hb, cb, emit_b = cell(gates_b, hb, cb, lens > (Tp - 1 - (t0 + j)))
        hb_out_ref[jl] = emit_b.astype(hb_out_ref.dtype)

    hf_st[...], cf_st[...] = hf, cf
    hb_st[...], cb_st[...] = hb, cb


def bilstm_layer(gates_f, gates_b, w_hh_f_t, w_hh_b_t, lengths_col, hidden_dim,
                 chunk, vmem_limit):
    """gates_*: (Tp, B, 4H) bf16 precomputed input projections (biases folded).
    Returns (h_f, h_b), each (Tp, B, H) bf16, zeroed past each length."""
    T, B, _ = gates_f.shape
    H = hidden_dim
    G = T // chunk
    # TODO(synk): resident operands (W_hh, lengths) could use pipeline_mode=
    # pl.Buffered(1) to save one VMEM copy each; kept default-buffered here.
    # TODO(synk): on v7x the two directions could be split across the two
    # TensorCores via a leading "parallel" grid axis; kept fused for 1-TC chips.
    return pl.pallas_call(
        _bilstm_chunk_kernel,
        out_shape=(jax.ShapeDtypeStruct((T, B, H), jnp.bfloat16),
                   jax.ShapeDtypeStruct((T, B, H), jnp.bfloat16)),
        grid=(G,),
        in_specs=[
            pl.BlockSpec((chunk, B, 4 * H), lambda g: (g, 0, 0)),           # fwd gates (bf16)
            pl.BlockSpec((chunk, B, 4 * H), lambda g: (G - 1 - g, 0, 0)),   # bwd gates (bf16)
            pl.BlockSpec((H, 4 * H), lambda g: (0, 0)),                     # W_hh fwd (resident)
            pl.BlockSpec((H, 4 * H), lambda g: (0, 0)),                     # W_hh bwd (resident)
            pl.BlockSpec((B, 1), lambda g: (0, 0)),                         # lengths (resident)
        ],
        out_specs=[
            pl.BlockSpec((chunk, B, H), lambda g: (g, 0, 0)),
            pl.BlockSpec((chunk, B, H), lambda g: (G - 1 - g, 0, 0)),
        ],
        scratch_shapes=[pltpu.VMEM((B, H), jnp.float32)] * 4,               # h/c per direction
        compiler_params=pltpu.CompilerParams(
            dimension_semantics=("arbitrary",),
            vmem_limit_bytes=vmem_limit),
    )(gates_f, gates_b, w_hh_f_t, w_hh_b_t, lengths_col)


# ------------------------------- MLP head kernel -------------------------------
def _mlp_kernel(isquestion, *refs):
    if isquestion:
        hf_ref, hb_ref, wf_ref, wb_ref, b_ref, w1_ref, b1_ref, len_ref, o_ref = refs
    else:
        hf_ref, hb_ref, wf_ref, wb_ref, b_ref, o_ref = refs
    ct, b_sz, h = hf_ref.shape
    xf = hf_ref[...].reshape(ct * b_sz, h)                 # already bf16
    xb = hb_ref[...].reshape(ct * b_sz, h)
    # [h_f, h_b] @ W_mlp^T + b  ==  h_f @ Wf + h_b @ Wb + b   (no concat needed)
    y = (jnp.dot(xf, wf_ref[...], preferred_element_type=jnp.float32)
         + jnp.dot(xb, wb_ref[...], preferred_element_type=jnp.float32)
         + b_ref[...])
    if isquestion:
        y = jnp.tanh(jnp.dot(y.astype(jnp.bfloat16), w1_ref[...],
                             preferred_element_type=jnp.float32) + b1_ref[...])
        y = y.reshape(ct, b_sz, -1)
        t_idx = (jax.lax.broadcasted_iota(jnp.int32, (ct, b_sz, 1), 0)
                 + pl.program_id(0) * ct)
        mask = (t_idx < len_ref[...][None, :, :]).astype(jnp.float32)       # (ct, B, 1)
        o_ref[...] = (y * mask).astype(o_ref.dtype)
    else:
        o_ref[...] = y.reshape(ct, b_sz, -1).astype(o_ref.dtype)


def mlp_head(h_f, h_b, w_f, w_b, b, w1, b1, lengths_col, isquestion, chunk,
             vmem_limit):
    T, B, H = h_f.shape
    D = 2 * H
    G = T // chunk
    in_specs = [
        pl.BlockSpec((chunk, B, H), lambda t: (t, 0, 0)),
        pl.BlockSpec((chunk, B, H), lambda t: (t, 0, 0)),
        pl.BlockSpec((H, D), lambda t: (0, 0)),
        pl.BlockSpec((H, D), lambda t: (0, 0)),
        pl.BlockSpec((1, D), lambda t: (0, 0)),
    ]
    args = [h_f, h_b, w_f, w_b, b]
    if isquestion:   # mlp1 weights / lengths are only DMA'd when actually used
        in_specs += [pl.BlockSpec((D, D), lambda t: (0, 0)),
                     pl.BlockSpec((1, D), lambda t: (0, 0)),
                     pl.BlockSpec((B, 1), lambda t: (0, 0))]
        args += [w1, b1, lengths_col]
    # TODO(synk): folding the final (T,B,.)->(B,T,.) transpose into this kernel
    # (out block (B,chunk,D)) needs a major<->sublane relayout in-kernel; left
    # to XLA for lowering portability.
    return pl.pallas_call(
        functools.partial(_mlp_kernel, isquestion),
        out_shape=jax.ShapeDtypeStruct((T, B, D), jnp.float32),
        grid=(G,),
        in_specs=in_specs,
        out_specs=pl.BlockSpec((chunk, B, D), lambda t: (t, 0, 0)),
        compiler_params=pltpu.CompilerParams(
            dimension_semantics=("parallel",),
            vmem_limit_bytes=vmem_limit),
    )(*args)


# ------------------------------------ glue ------------------------------------
def _input_gates(x_parts, w_parts, bias):
    """gates_x = sum_i x_i @ W_i + bias, batched over ALL timesteps (one big MXU
    matmul per part, bf16 operands, f32 accumulation), stored bf16 so the
    recurrent kernel streams half the HBM bytes."""
    acc = bias                                             # (1, 4H) f32, broadcasts
    for x, w in zip(x_parts, w_parts):
        acc = acc + jnp.einsum('tbe,ef->tbf', x.astype(jnp.bfloat16), w,
                               preferred_element_type=jnp.float32)
    return acc.astype(jnp.bfloat16)


def encoder_forward(params, batch_sentences, batch_lengths, *, hidden_dim, num_layers,
                    istraining=False, apply_batch_norm=False, isquestion=True):
    del apply_batch_norm  # only reachable when istraining=True in the reference
    del istraining        # inference path: dropout / batch-norm branches are identity
    B, T = batch_sentences.shape
    H = hidden_dim
    # NOTE: for lane-dense gate slices / stores, production H should be a
    # multiple of 128 (the toy H=32 is correct but not lane-dense).

    # Pad batch to a multiple of 8 sublanes; padded rows get length 0 (stay zero).
    B_pad = max(8, _round_up(B, 8))
    tokens = batch_sentences
    lengths = batch_lengths.astype(jnp.int32)
    if B_pad != B:
        tokens = jnp.pad(tokens, ((0, B_pad - B), (0, 0)))
        lengths = jnp.pad(lengths, (0, B_pad - B))
    lengths_col = lengths[:, None]                         # (B_pad, 1)

    # VMEM-aware chunking + explicit scoped-VMEM limit (bf16 gates/outputs are
    # what let a >=8-step chunk fit v7x's 64 MiB VMEM).
    cap = _vmem_capacity_bytes()
    chunk = _lstm_chunk(T, B_pad, H, int(cap * 0.7))
    vmem_limit = int(cap * 0.9)
    # Pad T up to a multiple of the chunk instead of shrinking the chunk to a
    # divisor of T; padded steps are masked by `lens > t` (state frozen,
    # outputs zero), so the math is unchanged.
    T_pad = _round_up(T, chunk)

    # Time-major embedding gather: (T_pad, B_pad, E).
    emb = jnp.take(params["embedding"], tokens.T, axis=0)
    if T_pad != T:
        emb = jnp.pad(emb, ((0, T_pad - T), (0, 0), (0, 0)))

    x_parts = [emb]
    h_f = h_b = None
    for l in range(num_layers):
        w_ih_f = params[f"w_ih_l{l}"].T.astype(jnp.bfloat16)       # (in, 4H)
        w_ih_b = params[f"w_ih_l{l}_rev"].T.astype(jnp.bfloat16)
        if l == 0:
            wf_parts, wb_parts = [w_ih_f], [w_ih_b]
        else:  # split so [h_f, h_b] never needs to be concatenated
            wf_parts = [w_ih_f[:H], w_ih_f[H:]]
            wb_parts = [w_ih_b[:H], w_ih_b[H:]]
        gates_f = _input_gates(x_parts, wf_parts, params[f"b_l{l}"])
        gates_b = _input_gates(x_parts, wb_parts, params[f"b_l{l}_rev"])

        h_f, h_b = bilstm_layer(
            gates_f, gates_b,
            params[f"w_hh_l{l}"].T.astype(jnp.bfloat16),
            params[f"w_hh_l{l}_rev"].T.astype(jnp.bfloat16),
            lengths_col, H, chunk, vmem_limit)
        x_parts = [h_f, h_b]

    # TODO(synk): get_ones_and_zeros_mat is undefined in the reference source; we assume
    # it is the (t < length) validity mask, applied only when isquestion (as written).
    w_mlp_t = params["w_mlp"].T.astype(jnp.bfloat16)               # (2H, 2H)
    y = mlp_head(h_f, h_b, w_mlp_t[:H], w_mlp_t[H:], params["b_mlp"],
                 params["w_mlp1"].T.astype(jnp.bfloat16), params["b_mlp1"],
                 lengths_col, isquestion, chunk, vmem_limit)

    # One transpose back to batch_first; drop batch / time padding.
    return jnp.transpose(y, (1, 0, 2))[:B, :T]


def init_params(key, vocab, emb_dim, hidden_dim, num_layers):
    H = hidden_dim
    params = {}
    keys = list(jax.random.split(key, 64))
    it = iter(keys)

    params["embedding"] = jax.random.normal(next(it), (vocab, emb_dim), jnp.float32) * 0.1

    k = 1.0 / float(H) ** 0.5
    for l in range(num_layers):
        in_dim = emb_dim if l == 0 else 2 * H
        for suffix in ("", "_rev"):
            params[f"w_ih_l{l}{suffix}"] = jax.random.uniform(
                next(it), (4 * H, in_dim), jnp.float32, -k, k)
            params[f"w_hh_l{l}{suffix}"] = jax.random.uniform(
                next(it), (4 * H, H), jnp.float32, -k, k)
            b_ih = jax.random.uniform(next(it), (1, 4 * H), jnp.float32, -k, k)
            b_hh = jax.random.uniform(next(it), (1, 4 * H), jnp.float32, -k, k)
            params[f"b_l{l}{suffix}"] = b_ih + b_hh

    km = 1.0 / float(2 * H) ** 0.5
    params["w_mlp"] = jax.random.uniform(next(it), (2 * H, 2 * H), jnp.float32, -km, km)
    params["b_mlp"] = jax.random.uniform(next(it), (1, 2 * H), jnp.float32, -km, km)
    params["w_mlp1"] = jax.random.uniform(next(it), (2 * H, 2 * H), jnp.float32, -km, km)
    params["b_mlp1"] = jax.random.uniform(next(it), (1, 2 * H), jnp.float32, -km, km)
    return params


if __name__ == "__main__":
    key = jax.random.PRNGKey(0)
    B, T = 4, 8
    vocab, emb_dim, hidden_dim, num_layers = 50, 16, 32, 2

    pkey, skey = jax.random.split(key)
    params = init_params(pkey, vocab, emb_dim, hidden_dim, num_layers)

    batch_sentences = jax.random.randint(skey, (B, T), 0, vocab, dtype=jnp.int32)
    batch_lengths = jnp.array([8, 5, 3, 6], dtype=jnp.int32)          # max length == T

    fwd = jax.jit(functools.partial(
        encoder_forward, hidden_dim=hidden_dim, num_layers=num_layers,
        istraining=False, apply_batch_norm=False, isquestion=True))

    out = fwd(params, batch_sentences, batch_lengths)
    jax.block_until_ready(out)
    assert out.shape == (B, T, 2 * hidden_dim)
    assert bool(jnp.all(jnp.isfinite(out)))
    print("KERNEL_OK")
</pallas_src>

<mosaic_0001>
module attributes {stable_mosaic.version = 11 : i64} {
  func.func @_bilstm_chunk_kernel(%arg0: i32, %arg1: memref<8x8x128xbf16, #tpu.memory_space<vmem>>, %arg2: memref<8x8x128xbf16, #tpu.memory_space<vmem>>, %arg3: memref<32x128xbf16, #tpu.memory_space<vmem>>, %arg4: memref<32x128xbf16, #tpu.memory_space<vmem>>, %arg5: memref<8x1xi32, #tpu.memory_space<vmem>>, %arg6: memref<8x8x32xbf16, #tpu.memory_space<vmem>>, %arg7: memref<8x8x32xbf16, #tpu.memory_space<vmem>>, %arg8: memref<8x32xf32, #tpu.memory_space<vmem>>, %arg9: memref<8x32xf32, #tpu.memory_space<vmem>>, %arg10: memref<8x32xf32, #tpu.memory_space<vmem>>, %arg11: memref<8x32xf32, #tpu.memory_space<vmem>>) attributes {dimension_semantics = [#tpu.dimension_semantics<arbitrary>], iteration_bounds = array<i64: 1>, scalar_prefetch = 0 : i64, scratch_operands = 4 : i64, tpu.core_type = #tpu.core_type<tc>, window_params = [{transform_indices = @transform_0, window_bounds = array<i64: 8, 8, 128>}, {transform_indices = @transform_1, window_bounds = array<i64: 8, 8, 128>}, {pipeline_mode = #tpu.pipeline_mode<synchronous>, transform_indices = @transform_2, window_bounds = array<i64: 32, 128>}, {pipeline_mode = #tpu.pipeline_mode<synchronous>, transform_indices = @transform_3, window_bounds = array<i64: 32, 128>}, {pipeline_mode = #tpu.pipeline_mode<synchronous>, transform_indices = @transform_4, window_bounds = array<i64: 8, 1>}, {transform_indices = @transform_5, window_bounds = array<i64: 8, 8, 32>}, {transform_indices = @transform_6, window_bounds = array<i64: 8, 8, 32>}]} {
    %c0_i32 = arith.constant 0 : i32
    %0 = arith.cmpi eq, %arg0, %c0_i32 : i32
    %1 = arith.extui %0 : i1 to i32
    %c0_i32_0 = arith.constant 0 : i32
    %2 = arith.cmpi ne, %1, %c0_i32_0 : i32
    scf.if %2 {
      %cst_207 = arith.constant 0.000000e+00 : f32
      %791 = vector.broadcast %cst_207 : f32 to vector<8x32xf32>
      %c0_208 = arith.constant 0 : index
      %c0_209 = arith.constant 0 : index
      %792 = vector.load %arg8[%c0_208, %c0_209] : memref<8x32xf32, #tpu.memory_space<vmem>>, vector<8x32xf32>
      tpu.vector_store %arg8[%c0_208, %c0_209], %791 {strides = array<i32>} : memref<8x32xf32, #tpu.memory_space<vmem>>, vector<8x32xf32>,
      %cst_210 = arith.constant 0.000000e+00 : f32
      %793 = vector.broadcast %cst_210 : f32 to vector<8x32xf32>
      %c0_211 = arith.constant 0 : index
      %c0_212 = arith.constant 0 : index
      %794 = vector.load %arg9[%c0_211, %c0_212] : memref<8x32xf32, #tpu.memory_space<vmem>>, vector<8x32xf32>
      tpu.vector_store %arg9[%c0_211, %c0_212], %793 {strides = array<i32>} : memref<8x32xf32, #tpu.memory_space<vmem>>, vector<8x32xf32>,
      %cst_213 = arith.constant 0.000000e+00 : f32
      %795 = vector.broadcast %cst_213 : f32 to vector<8x32xf32>
      %c0_214 = arith.constant 0 : index
      %c0_215 = arith.constant 0 : index
      %796 = vector.load %arg10[%c0_214, %c0_215] : memref<8x32xf32, #tpu.memory_space<vmem>>, vector<8x32xf32>
      tpu.vector_store %arg10[%c0_214, %c0_215], %795 {strides = array<i32>} : memref<8x32xf32, #tpu.memory_space<vmem>>, vector<8x32xf32>,
      %cst_216 = arith.constant 0.000000e+00 : f32
      %797 = vector.broadcast %cst_216 : f32 to vector<8x32xf32>
      %c0_217 = arith.constant 0 : index
      %c0_218 = arith.constant 0 : index
      %798 = vector.load %arg11[%c0_217, %c0_218] : memref<8x32xf32, #tpu.memory_space<vmem>>, vector<8x32xf32>
      tpu.vector_store %arg11[%c0_217, %c0_218], %797 {strides = array<i32>} : memref<8x32xf32, #tpu.memory_space<vmem>>, vector<8x32xf32>,
    } else {
    }
    %c0 = arith.constant 0 : index
    %c0_1 = arith.constant 0 : index
    %3 = vector.load %arg5[%c0, %c0_1] : memref<8x1xi32, #tpu.memory_space<vmem>>, vector<8x1xi32>
    %c8_i32 = arith.constant 8 : i32
    %4 = arith.muli %arg0, %c8_i32 : i32
    %c0_2 = arith.constant 0 : index
    %c0_3 = arith.constant 0 : index
    %5 = vector.load %arg3[%c0_2, %c0_3] : memref<32x128xbf16, #tpu.memory_space<vmem>>, vector<32x128xbf16>
    %c0_4 = arith.constant 0 : index
    %c0_5 = arith.constant 0 : index
    %6 = vector.load %arg4[%c0_4, %c0_5] : memref<32x128xbf16, #tpu.memory_space<vmem>>, vector<32x128xbf16>
    %c0_6 = arith.constant 0 : index
    %c0_7 = arith.constant 0 : index
    %7 = vector.load %arg8[%c0_6, %c0_7] : memref<8x32xf32, #tpu.memory_space<vmem>>, vector<8x32xf32>
    %c0_8 = arith.constant 0 : index
    %c0_9 = arith.constant 0 : index
    %8 = vector.load %arg9[%c0_8, %c0_9] : memref<8x32xf32, #tpu.memory_space<vmem>>, vector<8x32xf32>
    %c0_10 = arith.constant 0 : index
    %c0_11 = arith.constant 0 : index
    %9 = vector.load %arg10[%c0_10, %c0_11] : memref<8x32xf32, #tpu.memory_space<vmem>>, vector<8x32xf32>
    %c0_12 = arith.constant 0 : index
    %c0_13 = arith.constant 0 : index
    %10 = vector.load %arg11[%c0_12, %c0_13] : memref<8x32xf32, #tpu.memory_space<vmem>>, vector<8x32xf32>
    %c0_14 = arith.constant 0 : index
    %c0_15 = arith.constant 0 : index
    %c0_16 = arith.constant 0 : index
    %11 = vector.load %arg1[%c0_14, %c0_15, %c0_16] : memref<8x8x128xbf16, #tpu.memory_space<vmem>>, vector<1x8x128xbf16>
    %12 = vector.shape_cast %11 : vector<1x8x128xbf16> to vector<8x128xbf16>
    %13 = arith.extf %12 : vector<8x128xbf16> to vector<8x128xf32>
    %14 = arith.truncf %7 : vector<8x32xf32> to vector<8x32xbf16>
    %cst = arith.constant dense<0.000000e+00> : vector<8x128xf32>
    %15 = tpu.matmul %14, %5, %cst {dimension_numbers = #tpu.dot_dimension_numbers<[1], [0], [0], [1], [0, 0, 1, 1], [], []>} : vector<8x32xbf16>, vector<32x128xbf16>, vector<8x128xf32> -> vector<8x128xf32>
    %16 = arith.addf %13, %15 : vector<8x128xf32>
    %c0_i32_17 = arith.constant 0 : i32
    %17 = arith.addi %4, %c0_i32_17 : i32
    %18 = vector.broadcast %17 : i32 to vector<8x1xi32>
    %19 = arith.cmpi sgt, %3, %18 : vector<8x1xi32>
    %20 = vector.extract_strided_slice %16 {offsets = [0, 0], sizes = [8, 32], strides = [1, 1]} : vector<8x128xf32> to vector<8x32xf32>
    %21 = arith.negf %20 : vector<8x32xf32>
    %22 = math.exp %21 : vector<8x32xf32>
    %cst_18 = arith.constant 1.000000e+00 : f32
    %23 = vector.broadcast %cst_18 : f32 to vector<8x32xf32>
    %24 = arith.addf %23, %22 : vector<8x32xf32>
    %25 = arith.divf %23, %24 : vector<8x32xf32>
    %26 = vector.extract_strided_slice %16 {offsets = [0, 32], sizes = [8, 32], strides = [1, 1]} : vector<8x128xf32> to vector<8x32xf32>
    %27 = arith.negf %26 : vector<8x32xf32>
    %28 = math.exp %27 : vector<8x32xf32>
    %cst_19 = arith.constant 1.000000e+00 : f32
    %29 = vector.broadcast %cst_19 : f32 to vector<8x32xf32>
    %30 = arith.addf %29, %28 : vector<8x32xf32>
    %31 = arith.divf %29, %30 : vector<8x32xf32>
    %32 = vector.extract_strided_slice %16 {offsets = [0, 64], sizes = [8, 32], strides = [1, 1]} : vector<8x128xf32> to vector<8x32xf32>
    %33 = math.tanh %32 : vector<8x32xf32>
    %34 = vector.extract_strided_slice %16 {offsets = [0, 96], sizes = [8, 32], strides = [1, 1]} : vector<8x128xf32> to vector<8x32xf32>
    %35 = arith.negf %34 : vector<8x32xf32>
    %36 = math.exp %35 : vector<8x32xf32>
    %cst_20 = arith.constant 1.000000e+00 : f32
    %37 = vector.broadcast %cst_20 : f32 to vector<8x32xf32>
    %38 = arith.addf %37, %36 : vector<8x32xf32>
    %39 = arith.divf %37, %38 : vector<8x32xf32>
    %40 = arith.mulf %31, %8 : vector<8x32xf32>
    %41 = arith.mulf %25, %33 : vector<8x32xf32>
    %42 = arith.addf %40, %41 : vector<8x32xf32>
    %43 = math.tanh %42 : vector<8x32xf32>
    %44 = arith.mulf %39, %43 : vector<8x32xf32>
    %45 = vector.shape_cast %19 : vector<8x1xi1> to vector<8x1xi1>
    %46 = vector.broadcast %45 : vector<8x1xi1> to vector<8x32xi1>
    %47 = arith.select %46, %44, %7 : vector<8x32xi1>, vector<8x32xf32>
    %48 = vector.shape_cast %19 : vector<8x1xi1> to vector<8x1xi1>
    %49 = vector.broadcast %48 : vector<8x1xi1> to vector<8x32xi1>
    %50 = arith.select %49, %42, %8 : vector<8x32xi1>, vector<8x32xf32>
    %cst_21 = arith.constant 0.000000e+00 : f32
    %51 = vector.shape_cast %19 : vector<8x1xi1> to vector<8x1xi1>
    %52 = vector.broadcast %51 : vector<8x1xi1> to vector<8x32xi1>
    %53 = vector.broadcast %cst_21 : f32 to vector<8x32xf32>
    %54 = arith.select %52, %44, %53 : vector<8x32xi1>, vector<8x32xf32>
    %55 = arith.truncf %54 : vector<8x32xf32> to vector<8x32xbf16>
    %c0_22 = arith.constant 0 : index
    %c0_23 = arith.constant 0 : index
    %c0_24 = arith.constant 0 : index
    %56 = vector.load %arg6[%c0_22, %c0_23, %c0_24] : memref<8x8x32xbf16, #tpu.memory_space<vmem>>, vector<1x8x32xbf16>
    %57 = vector.shape_cast %56 : vector<1x8x32xbf16> to vector<8x32xbf16>
    %58 = vector.shape_cast %55 : vector<8x32xbf16> to vector<1x8x32xbf16>
    tpu.vector_store %arg6[%c0_22, %c0_23, %c0_24], %58 {strides = array<i32>} : memref<8x8x32xbf16, #tpu.memory_space<vmem>>, vector<1x8x32xbf16>,
    %c7 = arith.constant 7 : index
    %c0_25 = arith.constant 0 : index
    %c0_26 = arith.constant 0 : index
    %59 = vector.load %arg2[%c7, %c0_25, %c0_26] : memref<8x8x128xbf16, #tpu.memory_space<vmem>>, vector<1x8x128xbf16>
    %60 = vector.shape_cast %59 : vector<1x8x128xbf16> to vector<8x128xbf16>
    %61 = arith.extf %60 : vector<8x128xbf16> to vector<8x128xf32>
    %62 = arith.truncf %9 : vector<8x32xf32> to vector<8x32xbf16>
    %cst_27 = arith.constant dense<0.000000e+00> : vector<8x128xf32>
    %63 = tpu.matmul %62, %6, %cst_27 {dimension_numbers = #tpu.dot_dimension_numbers<[1], [0], [0], [1], [0, 0, 1, 1], [], []>} : vector<8x32xbf16>, vector<32x128xbf16>, vector<8x128xf32> -> vector<8x128xf32>
    %64 = arith.addf %61, %63 : vector<8x128xf32>
    %c0_i32_28 = arith.constant 0 : i32
    %65 = arith.addi %4, %c0_i32_28 : i32
    %c7_i32 = arith.constant 7 : i32
    %66 = arith.subi %c7_i32, %65 : i32
    %67 = vector.broadcast %66 : i32 to vector<8x1xi32>
    %68 = arith.cmpi sgt, %3, %67 : vector<8x1xi32>
    %69 = vector.extract_strided_slice %64 {offsets = [0, 0], sizes = [8, 32], strides = [1, 1]} : vector<8x128xf32> to vector<8x32xf32>
    %70 = arith.negf %69 : vector<8x32xf32>
    %71 = math.exp %70 : vector<8x32xf32>
    %cst_29 = arith.constant 1.000000e+00 : f32
    %72 = vector.broadcast %cst_29 : f32 to vector<8x32xf32>
    %73 = arith.addf %72, %71 : vector<8x32xf32>
    %74 = arith.divf %72, %73 : vector<8x32xf32>
    %75 = vector.extract_strided_slice %64 {offsets = [0, 32], sizes = [8, 32], strides = [1, 1]} : vector<8x128xf32> to vector<8x32xf32>
    %76 = arith.negf %75 : vector<8x32xf32>
    %77 = math.exp %76 : vector<8x32xf32>
    %cst_30 = arith.constant 1.000000e+00 : f32
    %78 = vector.broadcast %cst_30 : f32 to vector<8x32xf32>
    %79 = arith.addf %78, %77 : vector<8x32xf32>
    %80 = arith.divf %78, %79 : vector<8x32xf32>
    %81 = vector.extract_strided_slice %64 {offsets = [0, 64], sizes = [8, 32], strides = [1, 1]} : vector<8x128xf32> to vector<8x32xf32>
    %82 = math.tanh %81 : vector<8x32xf32>
    %83 = vector.extract_strided_slice %64 {offsets = [0, 96], sizes = [8, 32], strides = [1, 1]} : vector<8x128xf32> to vector<8x32xf32>
    %84 = arith.negf %83 : vector<8x32xf32>
    %85 = math.exp %84 : vector<8x32xf32>
    %cst_31 = arith.constant 1.000000e+00 : f32
    %86 = vector.broadcast %cst_31 : f32 to vector<8x32xf32>
    %87 = arith.addf %86, %85 : vector<8x32xf32>
    %88 = arith.divf %86, %87 : vector<8x32xf32>
    %89 = arith.mulf %80, %10 : vector<8x32xf32>
    %90 = arith.mulf %74, %82 : vector<8x32xf32>
    %91 = arith.addf %89, %90 : vector<8x32xf32>
    %92 = math.tanh %91 : vector<8x32xf32>
    %93 = arith.mulf %88, %92 : vector<8x32xf32>
    %94 = vector.shape_cast %68 : vector<8x1xi1> to vector<8x1xi1>
    %95 = vector.broadcast %94 : vector<8x1xi1> to vector<8x32xi1>
    %96 = arith.select %95, %93, %9 : vector<8x32xi1>, vector<8x32xf32>
    %97 = vector.shape_cast %68 : vector<8x1xi1> to vector<8x1xi1>
    %98 = vector.broadcast %97 : vector<8x1xi1> to vector<8x32xi1>
    %99 = arith.select %98, %91, %10 : vector<8x32xi1>, vector<8x32xf32>
    %cst_32 = arith.constant 0.000000e+00 : f32
    %100 = vector.shape_cast %68 : vector<8x1xi1> to vector<8x1xi1>
    %101 = vector.broadcast %100 : vector<8x1xi1> to vector<8x32xi1>
    %102 = vector.broadcast %cst_32 : f32 to vector<8x32xf32>
    %103 = arith.select %101, %93, %102 : vector<8x32xi1>, vector<8x32xf32>
    %104 = arith.truncf %103 : vector<8x32xf32> to vector<8x32xbf16>
    %c7_33 = arith.constant 7 : index
    %c0_34 = arith.constant 0 : index
    %c0_35 = arith.constant 0 : index
    %105 = vector.load %arg7[%c7_33, %c0_34, %c0_35] : memref<8x8x32xbf16, #tpu.memory_space<vmem>>, vector<1x8x32xbf16>
    %106 = vector.shape_cast %105 : vector<1x8x32xbf16> to vector<8x32xbf16>
    %107 = vector.shape_cast %104 : vector<8x32xbf16> to vector<1x8x32xbf16>
    tpu.vector_store %arg7[%c7_33, %c0_34, %c0_35], %107 {strides = array<i32>} : memref<8x8x32xbf16, #tpu.memory_space<vmem>>, vector<1x8x32xbf16>,
    %c1 = arith.constant 1 : index
    %c0_36 = arith.constant 0 : index
    %c0_37 = arith.constant 0 : index
    %108 = vector.load %arg1[%c1, %c0_36, %c0_37] : memref<8x8x128xbf16, #tpu.memory_space<vmem>>, vector<1x8x128xbf16>
    %109 = vector.shape_cast %108 : vector<1x8x128xbf16> to vector<8x128xbf16>
    %110 = arith.extf %109 : vector<8x128xbf16> to vector<8x128xf32>
    %111 = arith.truncf %47 : vector<8x32xf32> to vector<8x32xbf16>
    %cst_38 = arith.constant dense<0.000000e+00> : vector<8x128xf32>
    %112 = tpu.matmul %111, %5, %cst_38 {dimension_numbers = #tpu.dot_dimension_numbers<[1], [0], [0], [1], [0, 0, 1, 1], [], []>} : vector<8x32xbf16>, vector<32x128xbf16>, vector<8x128xf32> -> vector<8x128xf32>
    %113 = arith.addf %110, %112 : vector<8x128xf32>
    %c1_i32 = arith.constant 1 : i32
    %114 = arith.addi %4, %c1_i32 : i32
    %115 = vector.broadcast %114 : i32 to vector<8x1xi32>
    %116 = arith.cmpi sgt, %3, %115 : vector<8x1xi32>
    %117 = vector.extract_strided_slice %113 {offsets = [0, 0], sizes = [8, 32], strides = [1, 1]} : vector<8x128xf32> to vector<8x32xf32>
    %118 = arith.negf %117 : vector<8x32xf32>
    %119 = math.exp %118 : vector<8x32xf32>
    %cst_39 = arith.constant 1.000000e+00 : f32
    %120 = vector.broadcast %cst_39 : f32 to vector<8x32xf32>
    %121 = arith.addf %120, %119 : vector<8x32xf32>
    %122 = arith.divf %120, %121 : vector<8x32xf32>
    %123 = vector.extract_strided_slice %113 {offsets = [0, 32], sizes = [8, 32], strides = [1, 1]} : vector<8x128xf32> to vector<8x32xf32>
    %124 = arith.negf %123 : vector<8x32xf32>
    %125 = math.exp %124 : vector<8x32xf32>
    %cst_40 = arith.constant 1.000000e+00 : f32
    %126 = vector.broadcast %cst_40 : f32 to vector<8x32xf32>
    %127 = arith.addf %126, %125 : vector<8x32xf32>
    %128 = arith.divf %126, %127 : vector<8x32xf32>
    %129 = vector.extract_strided_slice %113 {offsets = [0, 64], sizes = [8, 32], strides = [1, 1]} : vector<8x128xf32> to vector<8x32xf32>
    %130 = math.tanh %129 : vector<8x32xf32>
    %131 = vector.extract_strided_slice %113 {offsets = [0, 96], sizes = [8, 32], strides = [1, 1]} : vector<8x128xf32> to vector<8x32xf32>
    %132 = arith.negf %131 : vector<8x32xf32>
    %133 = math.exp %132 : vector<8x32xf32>
    %cst_41 = arith.constant 1.000000e+00 : f32
    %134 = vector.broadcast %cst_41 : f32 to vector<8x32xf32>
    %135 = arith.addf %134, %133 : vector<8x32xf32>
    %136 = arith.divf %134, %135 : vector<8x32xf32>
    %137 = arith.mulf %128, %50 : vector<8x32xf32>
    %138 = arith.mulf %122, %130 : vector<8x32xf32>
    %139 = arith.addf %137, %138 : vector<8x32xf32>
    %140 = math.tanh %139 : vector<8x32xf32>
    %141 = arith.mulf %136, %140 : vector<8x32xf32>
    %142 = vector.shape_cast %116 : vector<8x1xi1> to vector<8x1xi1>
    %143 = vector.broadcast %142 : vector<8x1xi1> to vector<8x32xi1>
    %144 = arith.select %143, %141, %47 : vector<8x32xi1>, vector<8x32xf32>
    %145 = vector.shape_cast %116 : vector<8x1xi1> to vector<8x1xi1>
    %146 = vector.broadcast %145 : vector<8x1xi1> to vector<8x32xi1>
    %147 = arith.select %146, %139, %50 : vector<8x32xi1>, vector<8x32xf32>
    %cst_42 = arith.constant 0.000000e+00 : f32
    %148 = vector.shape_cast %116 : vector<8x1xi1> to vector<8x1xi1>
    %149 = vector.broadcast %148 : vector<8x1xi1> to vector<8x32xi1>
    %150 = vector.broadcast %cst_42 : f32 to vector<8x32xf32>
    %151 = arith.select %149, %141, %150 : vector<8x32xi1>, vector<8x32xf32>
    %152 = arith.truncf %151 : vector<8x32xf32> to vector<8x32xbf16>
    %c1_43 = arith.constant 1 : index
    %c0_44 = arith.constant 0 : index
    %c0_45 = arith.constant 0 : index
    %153 = vector.load %arg6[%c1_43, %c0_44, %c0_45] : memref<8x8x32xbf16, #tpu.memory_space<vmem>>, vector<1x8x32xbf16>
    %154 = vector.shape_cast %153 : vector<1x8x32xbf16> to vector<8x32xbf16>
    %155 = vector.shape_cast %152 : vector<8x32xbf16> to vector<1x8x32xbf16>
    tpu.vector_store %arg6[%c1_43, %c0_44, %c0_45], %155 {strides = array<i32>} : memref<8x8x32xbf16, #tpu.memory_space<vmem>>, vector<1x8x32xbf16>,
    %c6 = arith.constant 6 : index
    %c0_46 = arith.constant 0 : index
    %c0_47 = arith.constant 0 : index
    %156 = vector.load %arg2[%c6, %c0_46, %c0_47] : memref<8x8x128xbf16, #tpu.memory_space<vmem>>, vector<1x8x128xbf16>
    %157 = vector.shape_cast %156 : vector<1x8x128xbf16> to vector<8x128xbf16>
    %158 = arith.extf %157 : vector<8x128xbf16> to vector<8x128xf32>
    %159 = arith.truncf %96 : vector<8x32xf32> to vector<8x32xbf16>
    %cst_48 = arith.constant dense<0.000000e+00> : vector<8x128xf32>
    %160 = tpu.matmul %159, %6, %cst_48 {dimension_numbers = #tpu.dot_dimension_numbers<[1], [0], [0], [1], [0, 0, 1, 1], [], []>} : vector<8x32xbf16>, vector<32x128xbf16>, vector<8x128xf32> -> vector<8x128xf32>
    %161 = arith.addf %158, %160 : vector<8x128xf32>
    %c1_i32_49 = arith.constant 1 : i32
    %162 = arith.addi %4, %c1_i32_49 : i32
    %c7_i32_50 = arith.constant 7 : i32
    %163 = arith.subi %c7_i32_50, %162 : i32
    %164 = vector.broadcast %163 : i32 to vector<8x1xi32>
    %165 = arith.cmpi sgt, %3, %164 : vector<8x1xi32>
    %166 = vector.extract_strided_slice %161 {offsets = [0, 0], sizes = [8, 32], strides = [1, 1]} : vector<8x128xf32> to vector<8x32xf32>
    %167 = arith.negf %166 : vector<8x32xf32>
    %168 = math.exp %167 : vector<8x32xf32>
    %cst_51 = arith.constant 1.000000e+00 : f32
    %169 = vector.broadcast %cst_51 : f32 to vector<8x32xf32>
    %170 = arith.addf %169, %168 : vector<8x32xf32>
    %171 = arith.divf %169, %170 : vector<8x32xf32>
    %172 = vector.extract_strided_slice %161 {offsets = [0, 32], sizes = [8, 32], strides = [1, 1]} : vector<8x128xf32> to vector<8x32xf32>
    %173 = arith.negf %172 : vector<8x32xf32>
    %174 = math.exp %173 : vector<8x32xf32>
    %cst_52 = arith.constant 1.000000e+00 : f32
    %175 = vector.broadcast %cst_52 : f32 to vector<8x32xf32>
    %176 = arith.addf %175, %174 : vector<8x32xf32>
    %177 = arith.divf %175, %176 : vector<8x32xf32>
    %178 = vector.extract_strided_slice %161 {offsets = [0, 64], sizes = [8, 32], strides = [1, 1]} : vector<8x128xf32> to vector<8x32xf32>
    %179 = math.tanh %178 : vector<8x32xf32>
    %180 = vector.extract_strided_slice %161 {offsets = [0, 96], sizes = [8, 32], strides = [1, 1]} : vector<8x128xf32> to vector<8x32xf32>
    %181 = arith.negf %180 : vector<8x32xf32>
    %182 = math.exp %181 : vector<8x32xf32>
    %cst_53 = arith.constant 1.000000e+00 : f32
    %183 = vector.broadcast %cst_53 : f32 to vector<8x32xf32>
    %184 = arith.addf %183, %182 : vector<8x32xf32>
    %185 = arith.divf %183, %184 : vector<8x32xf32>
    %186 = arith.mulf %177, %99 : vector<8x32xf32>
    %187 = arith.mulf %171, %179 : vector<8x32xf32>
    %188 = arith.addf %186, %187 : vector<8x32xf32>
    %189 = math.tanh %188 : vector<8x32xf32>
    %190 = arith.mulf %185, %189 : vector<8x32xf32>
    %191 = vector.shape_cast %165 : vector<8x1xi1> to vector<8x1xi1>
    %192 = vector.broadcast %191 : vector<8x1xi1> to vector<8x32xi1>
    %193 = arith.select %192, %190, %96 : vector<8x32xi1>, vector<8x32xf32>
    %194 = vector.shape_cast %165 : vector<8x1xi1> to vector<8x1xi1>
    %195 = vector.broadcast %194 : vector<8x1xi1> to vector<8x32xi1>
    %196 = arith.select %195, %188, %99 : vector<8x32xi1>, vector<8x32xf32>
    %cst_54 = arith.constant 0.000000e+00 : f32
    %197 = vector.shape_cast %165 : vector<8x1xi1> to vector<8x1xi1>
    %198 = vector.broadcast %197 : vector<8x1xi1> to vector<8x32xi1>
    %199 = vector.broadcast %cst_54 : f32 to vector<8x32xf32>
    %200 = arith.select %198, %190, %199 : vector<8x32xi1>, vector<8x32xf32>
    %201 = arith.truncf %200 : vector<8x32xf32> to vector<8x32xbf16>
    %c6_55 = arith.constant 6 : index
    %c0_56 = arith.constant 0 : index
    %c0_57 = arith.constant 0 : index
    %202 = vector.load %arg7[%c6_55, %c0_56, %c0_57] : memref<8x8x32xbf16, #tpu.memory_space<vmem>>, vector<1x8x32xbf16>
    %203 = vector.shape_cast %202 : vector<1x8x32xbf16> to vector<8x32xbf16>
    %204 = vector.shape_cast %201 : vector<8x32xbf16> to vector<1x8x32xbf16>
    tpu.vector_store %arg7[%c6_55, %c0_56, %c0_57], %204 {strides = array<i32>} : memref<8x8x32xbf16, #tpu.memory_space<vmem>>, vector<1x8x32xbf16>,
    %c2 = arith.constant 2 : index
    %c0_58 = arith.constant 0 : index
    %c0_59 = arith.constant 0 : index
    %205 = vector.load %arg1[%c2, %c0_58, %c0_59] : memref<8x8x128xbf16, #tpu.memory_space<vmem>>, vector<1x8x128xbf16>
    %206 = vector.shape_cast %205 : vector<1x8x128xbf16> to vector<8x128xbf16>
    %207 = arith.extf %206 : vector<8x128xbf16> to vector<8x128xf32>
    %208 = arith.truncf %144 : vector<8x32xf32> to vector<8x32xbf16>
    %cst_60 = arith.constant dense<0.000000e+00> : vector<8x128xf32>
    %209 = tpu.matmul %208, %5, %cst_60 {dimension_numbers = #tpu.dot_dimension_numbers<[1], [0], [0], [1], [0, 0, 1, 1], [], []>} : vector<8x32xbf16>, vector<32x128xbf16>, vector<8x128xf32> -> vector<8x128xf32>
    %210 = arith.addf %207, %209 : vector<8x128xf32>
    %c2_i32 = arith.constant 2 : i32
    %211 = arith.addi %4, %c2_i32 : i32
    %212 = vector.broadcast %211 : i32 to vector<8x1xi32>
    %213 = arith.cmpi sgt, %3, %212 : vector<8x1xi32>
    %214 = vector.extract_strided_slice %210 {offsets = [0, 0], sizes = [8, 32], strides = [1, 1]} : vector<8x128xf32> to vector<8x32xf32>
    %215 = arith.negf %214 : vector<8x32xf32>
    %216 = math.exp %215 : vector<8x32xf32>
    %cst_61 = arith.constant 1.000000e+00 : f32
    %217 = vector.broadcast %cst_61 : f32 to vector<8x32xf32>
    %218 = arith.addf %217, %216 : vector<8x32xf32>
    %219 = arith.divf %217, %218 : vector<8x32xf32>
    %220 = vector.extract_strided_slice %210 {offsets = [0, 32], sizes = [8, 32], strides = [1, 1]} : vector<8x128xf32> to vector<8x32xf32>
    %221 = arith.negf %220 : vector<8x32xf32>
    %222 = math.exp %221 : vector<8x32xf32>
    %cst_62 = arith.constant 1.000000e+00 : f32
    %223 = vector.broadcast %cst_62 : f32 to vector<8x32xf32>
    %224 = arith.addf %223, %222 : vector<8x32xf32>
    %225 = arith.divf %223, %224 : vector<8x32xf32>
    %226 = vector.extract_strided_slice %210 {offsets = [0, 64], sizes = [8, 32], strides = [1, 1]} : vector<8x128xf32> to vector<8x32xf32>
    %227 = math.tanh %226 : vector<8x32xf32>
    %228 = vector.extract_strided_slice %210 {offsets = [0, 96], sizes = [8, 32], strides = [1, 1]} : vector<8x128xf32> to vector<8x32xf32>
    %229 = arith.negf %228 : vector<8x32xf32>
    %230 = math.exp %229 : vector<8x32xf32>
    %cst_63 = arith.constant 1.000000e+00 : f32
    %231 = vector.broadcast %cst_63 : f32 to vector<8x32xf32>
    %232 = arith.addf %231, %230 : vector<8x32xf32>
    %233 = arith.divf %231, %232 : vector<8x32xf32>
    %234 = arith.mulf %225, %147 : vector<8x32xf32>
    %235 = arith.mulf %219, %227 : vector<8x32xf32>
    %236 = arith.addf %234, %235 : vector<8x32xf32>
    %237 = math.tanh %236 : vector<8x32xf32>
    %238 = arith.mulf %233, %237 : vector<8x32xf32>
    %239 = vector.shape_cast %213 : vector<8x1xi1> to vector<8x1xi1>
    %240 = vector.broadcast %239 : vector<8x1xi1> to vector<8x32xi1>
    %241 = arith.select %240, %238, %144 : vector<8x32xi1>, vector<8x32xf32>
    %242 = vector.shape_cast %213 : vector<8x1xi1> to vector<8x1xi1>
    %243 = vector.broadcast %242 : vector<8x1xi1> to vector<8x32xi1>
    %244 = arith.select %243, %236, %147 : vector<8x32xi1>, vector<8x32xf32>
    %cst_64 = arith.constant 0.000000e+00 : f32
    %245 = vector.shape_cast %213 : vector<8x1xi1> to vector<8x1xi1>
    %246 = vector.broadcast %245 : vector<8x1xi1> to vector<8x32xi1>
    %247 = vector.broadcast %cst_64 : f32 to vector<8x32xf32>
    %248 = arith.select %246, %238, %247 : vector<8x32xi1>, vector<8x32xf32>
    %249 = arith.truncf %248 : vector<8x32xf32> to vector<8x32xbf16>
    %c2_65 = arith.constant 2 : index
    %c0_66 = arith.constant 0 : index
    %c0_67 = arith.constant 0 : index
    %250 = vector.load %arg6[%c2_65, %c0_66, %c0_67] : memref<8x8x32xbf16, #tpu.memory_space<vmem>>, vector<1x8x32xbf16>
    %251 = vector.shape_cast %250 : vector<1x8x32xbf16> to vector<8x32xbf16>
    %252 = vector.shape_cast %249 : vector<8x32xbf16> to vector<1x8x32xbf16>
    tpu.vector_store %arg6[%c2_65, %c0_66, %c0_67], %252 {strides = array<i32>} : memref<8x8x32xbf16, #tpu.memory_space<vmem>>, vector<1x8x32xbf16>,
    %c5 = arith.constant 5 : index
    %c0_68 = arith.constant 0 : index
    %c0_69 = arith.constant 0 : index
    %253 = vector.load %arg2[%c5, %c0_68, %c0_69] : memref<8x8x128xbf16, #tpu.memory_space<vmem>>, vector<1x8x128xbf16>
    %254 = vector.shape_cast %253 : vector<1x8x128xbf16> to vector<8x128xbf16>
    %255 = arith.extf %254 : vector<8x128xbf16> to vector<8x128xf32>
    %256 = arith.truncf %193 : vector<8x32xf32> to vector<8x32xbf16>
    %cst_70 = arith.constant dense<0.000000e+00> : vector<8x128xf32>
    %257 = tpu.matmul %256, %6, %cst_70 {dimension_numbers = #tpu.dot_dimension_numbers<[1], [0], [0], [1], [0, 0, 1, 1], [], []>} : vector<8x32xbf16>, vector<32x128xbf16>, vector<8x128xf32> -> vector<8x128xf32>
    %258 = arith.addf %255, %257 : vector<8x128xf32>
    %c2_i32_71 = arith.constant 2 : i32
    %259 = arith.addi %4, %c2_i32_71 : i32
    %c7_i32_72 = arith.constant 7 : i32
    %260 = arith.subi %c7_i32_72, %259 : i32
    %261 = vector.broadcast %260 : i32 to vector<8x1xi32>
    %262 = arith.cmpi sgt, %3, %261 : vector<8x1xi32>
    %263 = vector.extract_strided_slice %258 {offsets = [0, 0], sizes = [8, 32], strides = [1, 1]} : vector<8x128xf32> to vector<8x32xf32>
    %264 = arith.negf %263 : vector<8x32xf32>
    %265 = math.exp %264 : vector<8x32xf32>
    %cst_73 = arith.constant 1.000000e+00 : f32
    %266 = vector.broadcast %cst_73 : f32 to vector<8x32xf32>
    %267 = arith.addf %266, %265 : vector<8x32xf32>
    %268 = arith.divf %266, %267 : vector<8x32xf32>
    %269 = vector.extract_strided_slice %258 {offsets = [0, 32], sizes = [8, 32], strides = [1, 1]} : vector<8x128xf32> to vector<8x32xf32>
    %270 = arith.negf %269 : vector<8x32xf32>
    %271 = math.exp %270 : vector<8x32xf32>
    %cst_74 = arith.constant 1.000000e+00 : f32
    %272 = vector.broadcast %cst_74 : f32 to vector<8x32xf32>
    %273 = arith.addf %272, %271 : vector<8x32xf32>
    %274 = arith.divf %272, %273 : vector<8x32xf32>
    %275 = vector.extract_strided_slice %258 {offsets = [0, 64], sizes = [8, 32], strides = [1, 1]} : vector<8x128xf32> to vector<8x32xf32>
    %276 = math.tanh %275 : vector<8x32xf32>
    %277 = vector.extract_strided_slice %258 {offsets = [0, 96], sizes = [8, 32], strides = [1, 1]} : vector<8x128xf32> to vector<8x32xf32>
    %278 = arith.negf %277 : vector<8x32xf32>
    %279 = math.exp %278 : vector<8x32xf32>
    %cst_75 = arith.constant 1.000000e+00 : f32
    %280 = vector.broadcast %cst_75 : f32 to vector<8x32xf32>
    %281 = arith.addf %280, %279 : vector<8x32xf32>
    %282 = arith.divf %280, %281 : vector<8x32xf32>
    %283 = arith.mulf %274, %196 : vector<8x32xf32>
    %284 = arith.mulf %268, %276 : vector<8x32xf32>
    %285 = arith.addf %283, %284 : vector<8x32xf32>
    %286 = math.tanh %285 : vector<8x32xf32>
    %287 = arith.mulf %282, %286 : vector<8x32xf32>
    %288 = vector.shape_cast %262 : vector<8x1xi1> to vector<8x1xi1>
    %289 = vector.broadcast %288 : vector<8x1xi1> to vector<8x32xi1>
    %290 = arith.select %289, %287, %193 : vector<8x32xi1>, vector<8x32xf32>
    %291 = vector.shape_cast %262 : vector<8x1xi1> to vector<8x1xi1>
    %292 = vector.broadcast %291 : vector<8x1xi1> to vector<8x32xi1>
    %293 = arith.select %292, %285, %196 : vector<8x32xi1>, vector<8x32xf32>
    %cst_76 = arith.constant 0.000000e+00 : f32
    %294 = vector.shape_cast %262 : vector<8x1xi1> to vector<8x1xi1>
    %295 = vector.broadcast %294 : vector<8x1xi1> to vector<8x32xi1>
    %296 = vector.broadcast %cst_76 : f32 to vector<8x32xf32>
    %297 = arith.select %295, %287, %296 : vector<8x32xi1>, vector<8x32xf32>
    %298 = arith.truncf %297 : vector<8x32xf32> to vector<8x32xbf16>
    %c5_77 = arith.constant 5 : index
    %c0_78 = arith.constant 0 : index
    %c0_79 = arith.constant 0 : index
    %299 = vector.load %arg7[%c5_77, %c0_78, %c0_79] : memref<8x8x32xbf16, #tpu.memory_space<vmem>>, vector<1x8x32xbf16>
    %300 = vector.shape_cast %299 : vector<1x8x32xbf16> to vector<8x32xbf16>
    %301 = vector.shape_cast %298 : vector<8x32xbf16> to vector<1x8x32xbf16>
    tpu.vector_store %arg7[%c5_77, %c0_78, %c0_79], %301 {strides = array<i32>} : memref<8x8x32xbf16, #tpu.memory_space<vmem>>, vector<1x8x32xbf16>,
    %c3 = arith.constant 3 : index
    %c0_80 = arith.constant 0 : index
    %c0_81 = arith.constant 0 : index
    %302 = vector.load %arg1[%c3, %c0_80, %c0_81] : memref<8x8x128xbf16, #tpu.memory_space<vmem>>, vector<1x8x128xbf16>
    %303 = vector.shape_cast %302 : vector<1x8x128xbf16> to vector<8x128xbf16>
    %304 = arith.extf %303 : vector<8x128xbf16> to vector<8x128xf32>
    %305 = arith.truncf %241 : vector<8x32xf32> to vector<8x32xbf16>
    %cst_82 = arith.constant dense<0.000000e+00> : vector<8x128xf32>
    %306 = tpu.matmul %305, %5, %cst_82 {dimension_numbers = #tpu.dot_dimension_numbers<[1], [0], [0], [1], [0, 0, 1, 1], [], []>} : vector<8x32xbf16>, vector<32x128xbf16>, vector<8x128xf32> -> vector<8x128xf32>
    %307 = arith.addf %304, %306 : vector<8x128xf32>
    %c3_i32 = arith.constant 3 : i32
    %308 = arith.addi %4, %c3_i32 : i32
    %309 = vector.broadcast %308 : i32 to vector<8x1xi32>
    %310 = arith.cmpi sgt, %3, %309 : vector<8x1xi32>
    %311 = vector.extract_strided_slice %307 {offsets = [0, 0], sizes = [8, 32], strides = [1, 1]} : vector<8x128xf32> to vector<8x32xf32>
    %312 = arith.negf %311 : vector<8x32xf32>
    %313 = math.exp %312 : vector<8x32xf32>
    %cst_83 = arith.constant 1.000000e+00 : f32
    %314 = vector.broadcast %cst_83 : f32 to vector<8x32xf32>
    %315 = arith.addf %314, %313 : vector<8x32xf32>
    %316 = arith.divf %314, %315 : vector<8x32xf32>
    %317 = vector.extract_strided_slice %307 {offsets = [0, 32], sizes = [8, 32], strides = [1, 1]} : vector<8x128xf32> to vector<8x32xf32>
    %318 = arith.negf %317 : vector<8x32xf32>
    %319 = math.exp %318 : vector<8x32xf32>
    %cst_84 = arith.constant 1.000000e+00 : f32
    %320 = vector.broadcast %cst_84 : f32 to vector<8x32xf32>
    %321 = arith.addf %320, %319 : vector<8x32xf32>
    %322 = arith.divf %320, %321 : vector<8x32xf32>
    %323 = vector.extract_strided_slice %307 {offsets = [0, 64], sizes = [8, 32], strides = [1, 1]} : vector<8x128xf32> to vector<8x32xf32>
    %324 = math.tanh %323 : vector<8x32xf32>
    %325 = vector.extract_strided_slice %307 {offsets = [0, 96], sizes = [8, 32], strides = [1, 1]} : vector<8x128xf32> to vector<8x32xf32>
    %326 = arith.negf %325 : vector<8x32xf32>
    %327 = math.exp %326 : vector<8x32xf32>
    %cst_85 = arith.constant 1.000000e+00 : f32
    %328 = vector.broadcast %cst_85 : f32 to vector<8x32xf32>
    %329 = arith.addf %328, %327 : vector<8x32xf32>
    %330 = arith.divf %328, %329 : vector<8x32xf32>
    %331 = arith.mulf %322, %244 : vector<8x32xf32>
    %332 = arith.mulf %316, %324 : vector<8x32xf32>
    %333 = arith.addf %331, %332 : vector<8x32xf32>
    %334 = math.tanh %333 : vector<8x32xf32>
    %335 = arith.mulf %330, %334 : vector<8x32xf32>
    %336 = vector.shape_cast %310 : vector<8x1xi1> to vector<8x1xi1>
    %337 = vector.broadcast %336 : vector<8x1xi1> to vector<8x32xi1>
    %338 = arith.select %337, %335, %241 : vector<8x32xi1>, vector<8x32xf32>
    %339 = vector.shape_cast %310 : vector<8x1xi1> to vector<8x1xi1>
    %340 = vector.broadcast %339 : vector<8x1xi1> to vector<8x32xi1>
    %341 = arith.select %340, %333, %244 : vector<8x32xi1>, vector<8x32xf32>
    %cst_86 = arith.constant 0.000000e+00 : f32
    %342 = vector.shape_cast %310 : vector<8x1xi1> to vector<8x1xi1>
    %343 = vector.broadcast %342 : vector<8x1xi1> to vector<8x32xi1>
    %344 = vector.broadcast %cst_86 : f32 to vector<8x32xf32>
    %345 = arith.select %343, %335, %344 : vector<8x32xi1>, vector<8x32xf32>
    %346 = arith.truncf %345 : vector<8x32xf32> to vector<8x32xbf16>
    %c3_87 = arith.constant 3 : index
    %c0_88 = arith.constant 0 : index
    %c0_89 = arith.constant 0 : index
    %347 = vector.load %arg6[%c3_87, %c0_88, %c0_89] : memref<8x8x32xbf16, #tpu.memory_space<vmem>>, vector<1x8x32xbf16>
    %348 = vector.shape_cast %347 : vector<1x8x32xbf16> to vector<8x32xbf16>
    %349 = vector.shape_cast %346 : vector<8x32xbf16> to vector<1x8x32xbf16>
    tpu.vector_store %arg6[%c3_87, %c0_88, %c0_89], %349 {strides = array<i32>} : memref<8x8x32xbf16, #tpu.memory_space<vmem>>, vector<1x8x32xbf16>,
    %c4 = arith.constant 4 : index
    %c0_90 = arith.constant 0 : index
    %c0_91 = arith.constant 0 : index
    %350 = vector.load %arg2[%c4, %c0_90, %c0_91] : memref<8x8x128xbf16, #tpu.memory_space<vmem>>, vector<1x8x128xbf16>
    %351 = vector.shape_cast %350 : vector<1x8x128xbf16> to vector<8x128xbf16>
    %352 = arith.extf %351 : vector<8x128xbf16> to vector<8x128xf32>
    %353 = arith.truncf %290 : vector<8x32xf32> to vector<8x32xbf16>
    %cst_92 = arith.constant dense<0.000000e+00> : vector<8x128xf32>
    %354 = tpu.matmul %353, %6, %cst_92 {dimension_numbers = #tpu.dot_dimension_numbers<[1], [0], [0], [1], [0, 0, 1, 1], [], []>} : vector<8x32xbf16>, vector<32x128xbf16>, vector<8x128xf32> -> vector<8x128xf32>
    %355 = arith.addf %352, %354 : vector<8x128xf32>
    %c3_i32_93 = arith.constant 3 : i32
    %356 = arith.addi %4, %c3_i32_93 : i32
    %c7_i32_94 = arith.constant 7 : i32
    %357 = arith.subi %c7_i32_94, %356 : i32
    %358 = vector.broadcast %357 : i32 to vector<8x1xi32>
    %359 = arith.cmpi sgt, %3, %358 : vector<8x1xi32>
    %360 = vector.extract_strided_slice %355 {offsets = [0, 0], sizes = [8, 32], strides = [1, 1]} : vector<8x128xf32> to vector<8x32xf32>
    %361 = arith.negf %360 : vector<8x32xf32>
    %362 = math.exp %361 : vector<8x32xf32>
    %cst_95 = arith.constant 1.000000e+00 : f32
    %363 = vector.broadcast %cst_95 : f32 to vector<8x32xf32>
    %364 = arith.addf %363, %362 : vector<8x32xf32>
    %365 = arith.divf %363, %364 : vector<8x32xf32>
    %366 = vector.extract_strided_slice %355 {offsets = [0, 32], sizes = [8, 32], strides = [1, 1]} : vector<8x128xf32> to vector<8x32xf32>
    %367 = arith.negf %366 : vector<8x32xf32>
    %368 = math.exp %367 : vector<8x32xf32>
    %cst_96 = arith.constant 1.000000e+00 : f32
    %369 = vector.broadcast %cst_96 : f32 to vector<8x32xf32>
    %370 = arith.addf %369, %368 : vector<8x32xf32>
    %371 = arith.divf %369, %370 : vector<8x32xf32>
    %372 = vector.extract_strided_slice %355 {offsets = [0, 64], sizes = [8, 32], strides = [1, 1]} : vector<8x128xf32> to vector<8x32xf32>
    %373 = math.tanh %372 : vector<8x32xf32>
    %374 = vector.extract_strided_slice %355 {offsets = [0, 96], sizes = [8, 32], strides = [1, 1]} : vector<8x128xf32> to vector<8x32xf32>
    %375 = arith.negf %374 : vector<8x32xf32>
    %376 = math.exp %375 : vector<8x32xf32>
    %cst_97 = arith.constant 1.000000e+00 : f32
    %377 = vector.broadcast %cst_97 : f32 to vector<8x32xf32>
    %378 = arith.addf %377, %376 : vector<8x32xf32>
    %379 = arith.divf %377, %378 : vector<8x32xf32>
    %380 = arith.mulf %371, %293 : vector<8x32xf32>
    %381 = arith.mulf %365, %373 : vector<8x32xf32>
    %382 = arith.addf %380, %381 : vector<8x32xf32>
    %383 = math.tanh %382 : vector<8x32xf32>
    %384 = arith.mulf %379, %383 : vector<8x32xf32>
    %385 = vector.shape_cast %359 : vector<8x1xi1> to vector<8x1xi1>
    %386 = vector.broadcast %385 : vector<8x1xi1> to vector<8x32xi1>
    %387 = arith.select %386, %384, %290 : vector<8x32xi1>, vector<8x32xf32>
    %388 = vector.shape_cast %359 : vector<8x1xi1> to vector<8x1xi1>
    %389 = vector.broadcast %388 : vector<8x1xi1> to vector<8x32xi1>
    %390 = arith.select %389, %382, %293 : vector<8x32xi1>, vector<8x32xf32>
    %cst_98 = arith.constant 0.000000e+00 : f32
    %391 = vector.shape_cast %359 : vector<8x1xi1> to vector<8x1xi1>
    %392 = vector.broadcast %391 : vector<8x1xi1> to vector<8x32xi1>
    %393 = vector.broadcast %cst_98 : f32 to vector<8x32xf32>
    %394 = arith.select %392, %384, %393 : vector<8x32xi1>, vector<8x32xf32>
    %395 = arith.truncf %394 : vector<8x32xf32> to vector<8x32xbf16>
    %c4_99 = arith.constant 4 : index
    %c0_100 = arith.constant 0 : index
    %c0_101 = arith.constant 0 : index
    %396 = vector.load %arg7[%c4_99, %c0_100, %c0_101] : memref<8x8x32xbf16, #tpu.memory_space<vmem>>, vector<1x8x32xbf16>
    %397 = vector.shape_cast %396 : vector<1x8x32xbf16> to vector<8x32xbf16>
    %398 = vector.shape_cast %395 : vector<8x32xbf16> to vector<1x8x32xbf16>
    tpu.vector_store %arg7[%c4_99, %c0_100, %c0_101], %398 {strides = array<i32>} : memref<8x8x32xbf16, #tpu.memory_space<vmem>>, vector<1x8x32xbf16>,
    %c4_102 = arith.constant 4 : index
    %c0_103 = arith.constant 0 : index
    %c0_104 = arith.constant 0 : index
    %399 = vector.load %arg1[%c4_102, %c0_103, %c0_104] : memref<8x8x128xbf16, #tpu.memory_space<vmem>>, vector<1x8x128xbf16>
    %400 = vector.shape_cast %399 : vector<1x8x128xbf16> to vector<8x128xbf16>
    %401 = arith.extf %400 : vector<8x128xbf16> to vector<8x128xf32>
    %402 = arith.truncf %338 : vector<8x32xf32> to vector<8x32xbf16>
    %cst_105 = arith.constant dense<0.000000e+00> : vector<8x128xf32>
    %403 = tpu.matmul %402, %5, %cst_105 {dimension_numbers = #tpu.dot_dimension_numbers<[1], [0], [0], [1], [0, 0, 1, 1], [], []>} : vector<8x32xbf16>, vector<32x128xbf16>, vector<8x128xf32> -> vector<8x128xf32>
    %404 = arith.addf %401, %403 : vector<8x128xf32>
    %c4_i32 = arith.constant 4 : i32
    %405 = arith.addi %4, %c4_i32 : i32
    %406 = vector.broadcast %405 : i32 to vector<8x1xi32>
    %407 = arith.cmpi sgt, %3, %406 : vector<8x1xi32>
    %408 = vector.extract_strided_slice %404 {offsets = [0, 0], sizes = [8, 32], strides = [1, 1]} : vector<8x128xf32> to vector<8x32xf32>
    %409 = arith.negf %408 : vector<8x32xf32>
    %410 = math.exp %409 : vector<8x32xf32>
    %cst_106 = arith.constant 1.000000e+00 : f32
    %411 = vector.broadcast %cst_106 : f32 to vector<8x32xf32>
    %412 = arith.addf %411, %410 : vector<8x32xf32>
    %413 = arith.divf %411, %412 : vector<8x32xf32>
    %414 = vector.extract_strided_slice %404 {offsets = [0, 32], sizes = [8, 32], strides = [1, 1]} : vector<8x128xf32> to vector<8x32xf32>
    %415 = arith.negf %414 : vector<8x32xf32>
    %416 = math.exp %415 : vector<8x32xf32>
    %cst_107 = arith.constant 1.000000e+00 : f32
    %417 = vector.broadcast %cst_107 : f32 to vector<8x32xf32>
    %418 = arith.addf %417, %416 : vector<8x32xf32>
    %419 = arith.divf %417, %418 : vector<8x32xf32>
    %420 = vector.extract_strided_slice %404 {offsets = [0, 64], sizes = [8, 32], strides = [1, 1]} : vector<8x128xf32> to vector<8x32xf32>
    %421 = math.tanh %420 : vector<8x32xf32>
    %422 = vector.extract_strided_slice %404 {offsets = [0, 96], sizes = [8, 32], strides = [1, 1]} : vector<8x128xf32> to vector<8x32xf32>
    %423 = arith.negf %422 : vector<8x32xf32>
    %424 = math.exp %423 : vector<8x32xf32>
    %cst_108 = arith.constant 1.000000e+00 : f32
    %425 = vector.broadcast %cst_108 : f32 to vector<8x32xf32>
    %426 = arith.addf %425, %424 : vector<8x32xf32>
    %427 = arith.divf %425, %426 : vector<8x32xf32>
    %428 = arith.mulf %419, %341 : vector<8x32xf32>
    %429 = arith.mulf %413, %421 : vector<8x32xf32>
    %430 = arith.addf %428, %429 : vector<8x32xf32>
    %431 = math.tanh %430 : vector<8x32xf32>
    %432 = arith.mulf %427, %431 : vector<8x32xf32>
    %433 = vector.shape_cast %407 : vector<8x1xi1> to vector<8x1xi1>
    %434 = vector.broadcast %433 : vector<8x1xi1> to vector<8x32xi1>
    %435 = arith.select %434, %432, %338 : vector<8x32xi1>, vector<8x32xf32>
    %436 = vector.shape_cast %407 : vector<8x1xi1> to vector<8x1xi1>
    %437 = vector.broadcast %436 : vector<8x1xi1> to vector<8x32xi1>
    %438 = arith.select %437, %430, %341 : vector<8x32xi1>, vector<8x32xf32>
    %cst_109 = arith.constant 0.000000e+00 : f32
    %439 = vector.shape_cast %407 : vector<8x1xi1> to vector<8x1xi1>
    %440 = vector.broadcast %439 : vector<8x1xi1> to vector<8x32xi1>
    %441 = vector.broadcast %cst_109 : f32 to vector<8x32xf32>
    %442 = arith.select %440, %432, %441 : vector<8x32xi1>, vector<8x32xf32>
    %443 = arith.truncf %442 : vector<8x32xf32> to vector<8x32xbf16>
    %c4_110 = arith.constant 4 : index
    %c0_111 = arith.constant 0 : index
    %c0_112 = arith.constant 0 : index
    %444 = vector.load %arg6[%c4_110, %c0_111, %c0_112] : memref<8x8x32xbf16, #tpu.memory_space<vmem>>, vector<1x8x32xbf16>
    %445 = vector.shape_cast %444 : vector<1x8x32xbf16> to vector<8x32xbf16>
    %446 = vector.shape_cast %443 : vector<8x32xbf16> to vector<1x8x32xbf16>
    tpu.vector_store %arg6[%c4_110, %c0_111, %c0_112], %446 {strides = array<i32>} : memref<8x8x32xbf16, #tpu.memory_space<vmem>>, vector<1x8x32xbf16>,
    %c3_113 = arith.constant 3 : index
    %c0_114 = arith.constant 0 : index
    %c0_115 = arith.constant 0 : index
    %447 = vector.load %arg2[%c3_113, %c0_114, %c0_115] : memref<8x8x128xbf16, #tpu.memory_space<vmem>>, vector<1x8x128xbf16>
    %448 = vector.shape_cast %447 : vector<1x8x128xbf16> to vector<8x128xbf16>
    %449 = arith.extf %448 : vector<8x128xbf16> to vector<8x128xf32>
    %450 = arith.truncf %387 : vector<8x32xf32> to vector<8x32xbf16>
    %cst_116 = arith.constant dense<0.000000e+00> : vector<8x128xf32>
    %451 = tpu.matmul %450, %6, %cst_116 {dimension_numbers = #tpu.dot_dimension_numbers<[1], [0], [0], [1], [0, 0, 1, 1], [], []>} : vector<8x32xbf16>, vector<32x128xbf16>, vector<8x128xf32> -> vector<8x128xf32>
    %452 = arith.addf %449, %451 : vector<8x128xf32>
    %c4_i32_117 = arith.constant 4 : i32
    %453 = arith.addi %4, %c4_i32_117 : i32
    %c7_i32_118 = arith.constant 7 : i32
    %454 = arith.subi %c7_i32_118, %453 : i32
    %455 = vector.broadcast %454 : i32 to vector<8x1xi32>
    %456 = arith.cmpi sgt, %3, %455 : vector<8x1xi32>
    %457 = vector.extract_strided_slice %452 {offsets = [0, 0], sizes = [8, 32], strides = [1, 1]} : vector<8x128xf32> to vector<8x32xf32>
    %458 = arith.negf %457 : vector<8x32xf32>
    %459 = math.exp %458 : vector<8x32xf32>
    %cst_119 = arith.constant 1.000000e+00 : f32
    %460 = vector.broadcast %cst_119 : f32 to vector<8x32xf32>
    %461 = arith.addf %460, %459 : vector<8x32xf32>
    %462 = arith.divf %460, %461 : vector<8x32xf32>
    %463 = vector.extract_strided_slice %452 {offsets = [0, 32], sizes = [8, 32], strides = [1, 1]} : vector<8x128xf32> to vector<8x32xf32>
    %464 = arith.negf %463 : vector<8x32xf32>
    %465 = math.exp %464 : vector<8x32xf32>
    %cst_120 = arith.constant 1.000000e+00 : f32
    %466 = vector.broadcast %cst_120 : f32 to vector<8x32xf32>
    %467 = arith.addf %466, %465 : vector<8x32xf32>
    %468 = arith.divf %466, %467 : vector<8x32xf32>
    %469 = vector.extract_strided_slice %452 {offsets = [0, 64], sizes = [8, 32], strides = [1, 1]} : vector<8x128xf32> to vector<8x32xf32>
    %470 = math.tanh %469 : vector<8x32xf32>
    %471 = vector.extract_strided_slice %452 {offsets = [0, 96], sizes = [8, 32], strides = [1, 1]} : vector<8x128xf32> to vector<8x32xf32>
    %472 = arith.negf %471 : vector<8x32xf32>
    %473 = math.exp %472 : vector<8x32xf32>
    %cst_121 = arith.constant 1.000000e+00 : f32
    %474 = vector.broadcast %cst_121 : f32 to vector<8x32xf32>
    %475 = arith.addf %474, %473 : vector<8x32xf32>
    %476 = arith.divf %474, %475 : vector<8x32xf32>
    %477 = arith.mulf %468, %390 : vector<8x32xf32>
    %478 = arith.mulf %462, %470 : vector<8x32xf32>
    %479 = arith.addf %477, %478 : vector<8x32xf32>
    %480 = math.tanh %479 : vector<8x32xf32>
    %481 = arith.mulf %476, %480 : vector<8x32xf32>
    %482 = vector.shape_cast %456 : vector<8x1xi1> to vector<8x1xi1>
    %483 = vector.broadcast %482 : vector<8x1xi1> to vector<8x32xi1>
    %484 = arith.select %483, %481, %387 : vector<8x32xi1>, vector<8x32xf32>
    %485 = vector.shape_cast %456 : vector<8x1xi1> to vector<8x1xi1>
    %486 = vector.broadcast %485 : vector<8x1xi1> to vector<8x32xi1>
    %487 = arith.select %486, %479, %390 : vector<8x32xi1>, vector<8x32xf32>
    %cst_122 = arith.constant 0.000000e+00 : f32
    %488 = vector.shape_cast %456 : vector<8x1xi1> to vector<8x1xi1>
    %489 = vector.broadcast %488 : vector<8x1xi1> to vector<8x32xi1>
    %490 = vector.broadcast %cst_122 : f32 to vector<8x32xf32>
    %491 = arith.select %489, %481, %490 : vector<8x32xi1>, vector<8x32xf32>
    %492 = arith.truncf %491 : vector<8x32xf32> to vector<8x32xbf16>
    %c3_123 = arith.constant 3 : index
    %c0_124 = arith.constant 0 : index
    %c0_125 = arith.constant 0 : index
    %493 = vector.load %arg7[%c3_123, %c0_124, %c0_125] : memref<8x8x32xbf16, #tpu.memory_space<vmem>>, vector<1x8x32xbf16>
    %494 = vector.shape_cast %493 : vector<1x8x32xbf16> to vector<8x32xbf16>
    %495 = vector.shape_cast %492 : vector<8x32xbf16> to vector<1x8x32xbf16>
    tpu.vector_store %arg7[%c3_123, %c0_124, %c0_125], %495 {strides = array<i32>} : memref<8x8x32xbf16, #tpu.memory_space<vmem>>, vector<1x8x32xbf16>,
    %c5_126 = arith.constant 5 : index
    %c0_127 = arith.constant 0 : index
    %c0_128 = arith.constant 0 : index
    %496 = vector.load %arg1[%c5_126, %c0_127, %c0_128] : memref<8x8x128xbf16, #tpu.memory_space<vmem>>, vector<1x8x128xbf16>
    %497 = vector.shape_cast %496 : vector<1x8x128xbf16> to vector<8x128xbf16>
    %498 = arith.extf %497 : vector<8x128xbf16> to vector<8x128xf32>
    %499 = arith.truncf %435 : vector<8x32xf32> to vector<8x32xbf16>
    %cst_129 = arith.constant dense<0.000000e+00> : vector<8x128xf32>
    %500 = tpu.matmul %499, %5, %cst_129 {dimension_numbers = #tpu.dot_dimension_numbers<[1], [0], [0], [1], [0, 0, 1, 1], [], []>} : vector<8x32xbf16>, vector<32x128xbf16>, vector<8x128xf32> -> vector<8x128xf32>
    %501 = arith.addf %498, %500 : vector<8x128xf32>
    %c5_i32 = arith.constant 5 : i32
    %502 = arith.addi %4, %c5_i32 : i32
    %503 = vector.broadcast %502 : i32 to vector<8x1xi32>
    %504 = arith.cmpi sgt, %3, %503 : vector<8x1xi32>
    %505 = vector.extract_strided_slice %501 {offsets = [0, 0], sizes = [8, 32], strides = [1, 1]} : vector<8x128xf32> to vector<8x32xf32>
    %506 = arith.negf %505 : vector<8x32xf32>
    %507 = math.exp %506 : vector<8x32xf32>
    %cst_130 = arith.constant 1.000000e+00 : f32
    %508 = vector.broadcast %cst_130 : f32 to vector<8x32xf32>
    %509 = arith.addf %508, %507 : vector<8x32xf32>
    %510 = arith.divf %508, %509 : vector<8x32xf32>
    %511 = vector.extract_strided_slice %501 {offsets = [0, 32], sizes = [8, 32], strides = [1, 1]} : vector<8x128xf32> to vector<8x32xf32>
    %512 = arith.negf %511 : vector<8x32xf32>
    %513 = math.exp %512 : vector<8x32xf32>
    %cst_131 = arith.constant 1.000000e+00 : f32
    %514 = vector.broadcast %cst_131 : f32 to vector<8x32xf32>
    %515 = arith.addf %514, %513 : vector<8x32xf32>
    %516 = arith.divf %514, %515 : vector<8x32xf32>
    %517 = vector.extract_strided_slice %501 {offsets = [0, 64], sizes = [8, 32], strides = [1, 1]} : vector<8x128xf32> to vector<8x32xf32>
    %518 = math.tanh %517 : vector<8x32xf32>
    %519 = vector.extract_strided_slice %501 {offsets = [0, 96], sizes = [8, 32], strides = [1, 1]} : vector<8x128xf32> to vector<8x32xf32>
    %520 = arith.negf %519 : vector<8x32xf32>
    %521 = math.exp %520 : vector<8x32xf32>
    %cst_132 = arith.constant 1.000000e+00 : f32
    %522 = vector.broadcast %cst_132 : f32 to vector<8x32xf32>
    %523 = arith.addf %522, %521 : vector<8x32xf32>
    %524 = arith.divf %522, %523 : vector<8x32xf32>
    %525 = arith.mulf %516, %438 : vector<8x32xf32>
    %526 = arith.mulf %510, %518 : vector<8x32xf32>
    %527 = arith.addf %525, %526 : vector<8x32xf32>
    %528 = math.tanh %527 : vector<8x32xf32>
    %529 = arith.mulf %524, %528 : vector<8x32xf32>
    %530 = vector.shape_cast %504 : vector<8x1xi1> to vector<8x1xi1>
    %531 = vector.broadcast %530 : vector<8x1xi1> to vector<8x32xi1>
    %532 = arith.select %531, %529, %435 : vector<8x32xi1>, vector<8x32xf32>
    %533 = vector.shape_cast %504 : vector<8x1xi1> to vector<8x1xi1>
    %534 = vector.broadcast %533 : vector<8x1xi1> to vector<8x32xi1>
    %535 = arith.select %534, %527, %438 : vector<8x32xi1>, vector<8x32xf32>
    %cst_133 = arith.constant 0.000000e+00 : f32
    %536 = vector.shape_cast %504 : vector<8x1xi1> to vector<8x1xi1>
    %537 = vector.broadcast %536 : vector<8x1xi1> to vector<8x32xi1>
    %538 = vector.broadcast %cst_133 : f32 to vector<8x32xf32>
    %539 = arith.select %537, %529, %538 : vector<8x32xi1>, vector<8x32xf32>
    %540 = arith.truncf %539 : vector<8x32xf32> to vector<8x32xbf16>
    %c5_134 = arith.constant 5 : index
    %c0_135 = arith.constant 0 : index
    %c0_136 = arith.constant 0 : index
    %541 = vector.load %arg6[%c5_134, %c0_135, %c0_136] : memref<8x8x32xbf16, #tpu.memory_space<vmem>>, vector<1x8x32xbf16>
    %542 = vector.shape_cast %541 : vector<1x8x32xbf16> to vector<8x32xbf16>
    %543 = vector.shape_cast %540 : vector<8x32xbf16> to vector<1x8x32xbf16>
    tpu.vector_store %arg6[%c5_134, %c0_135, %c0_136], %543 {strides = array<i32>} : memref<8x8x32xbf16, #tpu.memory_space<vmem>>, vector<1x8x32xbf16>,
    %c2_137 = arith.constant 2 : index
    %c0_138 = arith.constant 0 : index
    %c0_139 = arith.constant 0 : index
    %544 = vector.load %arg2[%c2_137, %c0_138, %c0_139] : memref<8x8x128xbf16, #tpu.memory_space<vmem>>, vector<1x8x128xbf16>
    %545 = vector.shape_cast %544 : vector<1x8x128xbf16> to vector<8x128xbf16>
    %546 = arith.extf %545 : vector<8x128xbf16> to vector<8x128xf32>
    %547 = arith.truncf %484 : vector<8x32xf32> to vector<8x32xbf16>
    %cst_140 = arith.constant dense<0.000000e+00> : vector<8x128xf32>
    %548 = tpu.matmul %547, %6, %cst_140 {dimension_numbers = #tpu.dot_dimension_numbers<[1], [0], [0], [1], [0, 0, 1, 1], [], []>} : vector<8x32xbf16>, vector<32x128xbf16>, vector<8x128xf32> -> vector<8x128xf32>
    %549 = arith.addf %546, %548 : vector<8x128xf32>
    %c5_i32_141 = arith.constant 5 : i32
    %550 = arith.addi %4, %c5_i32_141 : i32
    %c7_i32_142 = arith.constant 7 : i32
    %551 = arith.subi %c7_i32_142, %550 : i32
    %552 = vector.broadcast %551 : i32 to vector<8x1xi32>
    %553 = arith.cmpi sgt, %3, %552 : vector<8x1xi32>
    %554 = vector.extract_strided_slice %549 {offsets = [0, 0], sizes = [8, 32], strides = [1, 1]} : vector<8x128xf32> to vector<8x32xf32>
    %555 = arith.negf %554 : vector<8x32xf32>
    %556 = math.exp %555 : vector<8x32xf32>
    %cst_143 = arith.constant 1.000000e+00 : f32
    %557 = vector.broadcast %cst_143 : f32 to vector<8x32xf32>
    %558 = arith.addf %557, %556 : vector<8x32xf32>
    %559 = arith.divf %557, %558 : vector<8x32xf32>
    %560 = vector.extract_strided_slice %549 {offsets = [0, 32], sizes = [8, 32], strides = [1, 1]} : vector<8x128xf32> to vector<8x32xf32>
    %561 = arith.negf %560 : vector<8x32xf32>
    %562 = math.exp %561 : vector<8x32xf32>
    %cst_144 = arith.constant 1.000000e+00 : f32
    %563 = vector.broadcast %cst_144 : f32 to vector<8x32xf32>
    %564 = arith.addf %563, %562 : vector<8x32xf32>
    %565 = arith.divf %563, %564 : vector<8x32xf32>
    %566 = vector.extract_strided_slice %549 {offsets = [0, 64], sizes = [8, 32], strides = [1, 1]} : vector<8x128xf32> to vector<8x32xf32>
    %567 = math.tanh %566 : vector<8x32xf32>
    %568 = vector.extract_strided_slice %549 {offsets = [0, 96], sizes = [8, 32], strides = [1, 1]} : vector<8x128xf32> to vector<8x32xf32>
    %569 = arith.negf %568 : vector<8x32xf32>
    %570 = math.exp %569 : vector<8x32xf32>
    %cst_145 = arith.constant 1.000000e+00 : f32
    %571 = vector.broadcast %cst_145 : f32 to vector<8x32xf32>
    %572 = arith.addf %571, %570 : vector<8x32xf32>
    %573 = arith.divf %571, %572 : vector<8x32xf32>
    %574 = arith.mulf %565, %487 : vector<8x32xf32>
    %575 = arith.mulf %559, %567 : vector<8x32xf32>
    %576 = arith.addf %574, %575 : vector<8x32xf32>
    %577 = math.tanh %576 : vector<8x32xf32>
    %578 = arith.mulf %573, %577 : vector<8x32xf32>
    %579 = vector.shape_cast %553 : vector<8x1xi1> to vector<8x1xi1>
    %580 = vector.broadcast %579 : vector<8x1xi1> to vector<8x32xi1>
    %581 = arith.select %580, %578, %484 : vector<8x32xi1>, vector<8x32xf32>
    %582 = vector.shape_cast %553 : vector<8x1xi1> to vector<8x1xi1>
    %583 = vector.broadcast %582 : vector<8x1xi1> to vector<8x32xi1>
    %584 = arith.select %583, %576, %487 : vector<8x32xi1>, vector<8x32xf32>
    %cst_146 = arith.constant 0.000000e+00 : f32
    %585 = vector.shape_cast %553 : vector<8x1xi1> to vector<8x1xi1>
    %586 = vector.broadcast %585 : vector<8x1xi1> to vector<8x32xi1>
    %587 = vector.broadcast %cst_146 : f32 to vector<8x32xf32>
    %588 = arith.select %586, %578, %587 : vector<8x32xi1>, vector<8x32xf32>
    %589 = arith.truncf %588 : vector<8x32xf32> to vector<8x32xbf16>
    %c2_147 = arith.constant 2 : index
    %c0_148 = arith.constant 0 : index
    %c0_149 = arith.constant 0 : index
    %590 = vector.load %arg7[%c2_147, %c0_148, %c0_149] : memref<8x8x32xbf16, #tpu.memory_space<vmem>>, vector<1x8x32xbf16>
    %591 = vector.shape_cast %590 : vector<1x8x32xbf16> to vector<8x32xbf16>
    %592 = vector.shape_cast %589 : vector<8x32xbf16> to vector<1x8x32xbf16>
    tpu.vector_store %arg7[%c2_147, %c0_148, %c0_149], %592 {strides = array<i32>} : memref<8x8x32xbf16, #tpu.memory_space<vmem>>, vector<1x8x32xbf16>,
    %c6_150 = arith.constant 6 : index
    %c0_151 = arith.constant 0 : index
    %c0_152 = arith.constant 0 : index
    %593 = vector.load %arg1[%c6_150, %c0_151, %c0_152] : memref<8x8x128xbf16, #tpu.memory_space<vmem>>, vector<1x8x128xbf16>
    %594 = vector.shape_cast %593 : vector<1x8x128xbf16> to vector<8x128xbf16>
    %595 = arith.extf %594 : vector<8x128xbf16> to vector<8x128xf32>
    %596 = arith.truncf %532 : vector<8x32xf32> to vector<8x32xbf16>
    %cst_153 = arith.constant dense<0.000000e+00> : vector<8x128xf32>
    %597 = tpu.matmul %596, %5, %cst_153 {dimension_numbers = #tpu.dot_dimension_numbers<[1], [0], [0], [1], [0, 0, 1, 1], [], []>} : vector<8x32xbf16>, vector<32x128xbf16>, vector<8x128xf32> -> vector<8x128xf32>
    %598 = arith.addf %595, %597 : vector<8x128xf32>
    %c6_i32 = arith.constant 6 : i32
    %599 = arith.addi %4, %c6_i32 : i32
    %600 = vector.broadcast %599 : i32 to vector<8x1xi32>
    %601 = arith.cmpi sgt, %3, %600 : vector<8x1xi32>
    %602 = vector.extract_strided_slice %598 {offsets = [0, 0], sizes = [8, 32], strides = [1, 1]} : vector<8x128xf32> to vector<8x32xf32>
    %603 = arith.negf %602 : vector<8x32xf32>
    %604 = math.exp %603 : vector<8x32xf32>
    %cst_154 = arith.constant 1.000000e+00 : f32
    %605 = vector.broadcast %cst_154 : f32 to vector<8x32xf32>
    %606 = arith.addf %605, %604 : vector<8x32xf32>
    %607 = arith.divf %605, %606 : vector<8x32xf32>
    %608 = vector.extract_strided_slice %598 {offsets = [0, 32], sizes = [8, 32], strides = [1, 1]} : vector<8x128xf32> to vector<8x32xf32>
    %609 = arith.negf %608 : vector<8x32xf32>
    %610 = math.exp %609 : vector<8x32xf32>
    %cst_155 = arith.constant 1.000000e+00 : f32
    %611 = vector.broadcast %cst_155 : f32 to vector<8x32xf32>
    %612 = arith.addf %611, %610 : vector<8x32xf32>
    %613 = arith.divf %611, %612 : vector<8x32xf32>
    %614 = vector.extract_strided_slice %598 {offsets = [0, 64], sizes = [8, 32], strides = [1, 1]} : vector<8x128xf32> to vector<8x32xf32>
    %615 = math.tanh %614 : vector<8x32xf32>
    %616 = vector.extract_strided_slice %598 {offsets = [0, 96], sizes = [8, 32], strides = [1, 1]} : vector<8x128xf32> to vector<8x32xf32>
    %617 = arith.negf %616 : vector<8x32xf32>
    %618 = math.exp %617 : vector<8x32xf32>
    %cst_156 = arith.constant 1.000000e+00 : f32
    %619 = vector.broadcast %cst_156 : f32 to vector<8x32xf32>
    %620 = arith.addf %619, %618 : vector<8x32xf32>
    %621 = arith.divf %619, %620 : vector<8x32xf32>
    %622 = arith.mulf %613, %535 : vector<8x32xf32>
    %623 = arith.mulf %607, %615 : vector<8x32xf32>
    %624 = arith.addf %622, %623 : vector<8x32xf32>
    %625 = math.tanh %624 : vector<8x32xf32>
    %626 = arith.mulf %621, %625 : vector<8x32xf32>
    %627 = vector.shape_cast %601 : vector<8x1xi1> to vector<8x1xi1>
    %628 = vector.broadcast %627 : vector<8x1xi1> to vector<8x32xi1>
    %629 = arith.select %628, %626, %532 : vector<8x32xi1>, vector<8x32xf32>
    %630 = vector.shape_cast %601 : vector<8x1xi1> to vector<8x1xi1>
    %631 = vector.broadcast %630 : vector<8x1xi1> to vector<8x32xi1>
    %632 = arith.select %631, %624, %535 : vector<8x32xi1>, vector<8x32xf32>
    %cst_157 = arith.constant 0.000000e+00 : f32
    %633 = vector.shape_cast %601 : vector<8x1xi1> to vector<8x1xi1>
    %634 = vector.broadcast %633 : vector<8x1xi1> to vector<8x32xi1>
    %635 = vector.broadcast %cst_157 : f32 to vector<8x32xf32>
    %636 = arith.select %634, %626, %635 : vector<8x32xi1>, vector<8x32xf32>
    %637 = arith.truncf %636 : vector<8x32xf32> to vector<8x32xbf16>
    %c6_158 = arith.constant 6 : index
    %c0_159 = arith.constant 0 : index
    %c0_160 = arith.constant 0 : index
    %638 = vector.load %arg6[%c6_158, %c0_159, %c0_160] : memref<8x8x32xbf16, #tpu.memory_space<vmem>>, vector<1x8x32xbf16>
    %639 = vector.shape_cast %638 : vector<1x8x32xbf16> to vector<8x32xbf16>
    %640 = vector.shape_cast %637 : vector<8x32xbf16> to vector<1x8x32xbf16>
    tpu.vector_store %arg6[%c6_158, %c0_159, %c0_160], %640 {strides = array<i32>} : memref<8x8x32xbf16, #tpu.memory_space<vmem>>, vector<1x8x32xbf16>,
    %c1_161 = arith.constant 1 : index
    %c0_162 = arith.constant 0 : index
    %c0_163 = arith.constant 0 : index
    %641 = vector.load %arg2[%c1_161, %c0_162, %c0_163] : memref<8x8x128xbf16, #tpu.memory_space<vmem>>, vector<1x8x128xbf16>
    %642 = vector.shape_cast %641 : vector<1x8x128xbf16> to vector<8x128xbf16>
    %643 = arith.extf %642 : vector<8x128xbf16> to vector<8x128xf32>
    %644 = arith.truncf %581 : vector<8x32xf32> to vector<8x32xbf16>
    %cst_164 = arith.constant dense<0.000000e+00> : vector<8x128xf32>
    %645 = tpu.matmul %644, %6, %cst_164 {dimension_numbers = #tpu.dot_dimension_numbers<[1], [0], [0], [1], [0, 0, 1, 1], [], []>} : vector<8x32xbf16>, vector<32x128xbf16>, vector<8x128xf32> -> vector<8x128xf32>
    %646 = arith.addf %643, %645 : vector<8x128xf32>
    %c6_i32_165 = arith.constant 6 : i32
    %647 = arith.addi %4, %c6_i32_165 : i32
    %c7_i32_166 = arith.constant 7 : i32
    %648 = arith.subi %c7_i32_166, %647 : i32
    %649 = vector.broadcast %648 : i32 to vector<8x1xi32>
    %650 = arith.cmpi sgt, %3, %649 : vector<8x1xi32>
    %651 = vector.extract_strided_slice %646 {offsets = [0, 0], sizes = [8, 32], strides = [1, 1]} : vector<8x128xf32> to vector<8x32xf32>
    %652 = arith.negf %651 : vector<8x32xf32>
    %653 = math.exp %652 : vector<8x32xf32>
    %cst_167 = arith.constant 1.000000e+00 : f32
    %654 = vector.broadcast %cst_167 : f32 to vector<8x32xf32>
    %655 = arith.addf %654, %653 : vector<8x32xf32>
    %656 = arith.divf %654, %655 : vector<8x32xf32>
    %657 = vector.extract_strided_slice %646 {offsets = [0, 32], sizes = [8, 32], strides = [1, 1]} : vector<8x128xf32> to vector<8x32xf32>
    %658 = arith.negf %657 : vector<8x32xf32>
    %659 = math.exp %658 : vector<8x32xf32>
    %cst_168 = arith.constant 1.000000e+00 : f32
    %660 = vector.broadcast %cst_168 : f32 to vector<8x32xf32>
    %661 = arith.addf %660, %659 : vector<8x32xf32>
    %662 = arith.divf %660, %661 : vector<8x32xf32>
    %663 = vector.extract_strided_slice %646 {offsets = [0, 64], sizes = [8, 32], strides = [1, 1]} : vector<8x128xf32> to vector<8x32xf32>
    %664 = math.tanh %663 : vector<8x32xf32>
    %665 = vector.extract_strided_slice %646 {offsets = [0, 96], sizes = [8, 32], strides = [1, 1]} : vector<8x128xf32> to vector<8x32xf32>
    %666 = arith.negf %665 : vector<8x32xf32>
    %667 = math.exp %666 : vector<8x32xf32>
    %cst_169 = arith.constant 1.000000e+00 : f32
    %668 = vector.broadcast %cst_169 : f32 to vector<8x32xf32>
    %669 = arith.addf %668, %667 : vector<8x32xf32>
    %670 = arith.divf %668, %669 : vector<8x32xf32>
    %671 = arith.mulf %662, %584 : vector<8x32xf32>
    %672 = arith.mulf %656, %664 : vector<8x32xf32>
    %673 = arith.addf %671, %672 : vector<8x32xf32>
    %674 = math.tanh %673 : vector<8x32xf32>
    %675 = arith.mulf %670, %674 : vector<8x32xf32>
    %676 = vector.shape_cast %650 : vector<8x1xi1> to vector<8x1xi1>
    %677 = vector.broadcast %676 : vector<8x1xi1> to vector<8x32xi1>
    %678 = arith.select %677, %675, %581 : vector<8x32xi1>, vector<8x32xf32>
    %679 = vector.shape_cast %650 : vector<8x1xi1> to vector<8x1xi1>
    %680 = vector.broadcast %679 : vector<8x1xi1> to vector<8x32xi1>
    %681 = arith.select %680, %673, %584 : vector<8x32xi1>, vector<8x32xf32>
    %cst_170 = arith.constant 0.000000e+00 : f32
    %682 = vector.shape_cast %650 : vector<8x1xi1> to vector<8x1xi1>
    %683 = vector.broadcast %682 : vector<8x1xi1> to vector<8x32xi1>
    %684 = vector.broadcast %cst_170 : f32 to vector<8x32xf32>
    %685 = arith.select %683, %675, %684 : vector<8x32xi1>, vector<8x32xf32>
    %686 = arith.truncf %685 : vector<8x32xf32> to vector<8x32xbf16>
    %c1_171 = arith.constant 1 : index
    %c0_172 = arith.constant 0 : index
    %c0_173 = arith.constant 0 : index
    %687 = vector.load %arg7[%c1_171, %c0_172, %c0_173] : memref<8x8x32xbf16, #tpu.memory_space<vmem>>, vector<1x8x32xbf16>
    %688 = vector.shape_cast %687 : vector<1x8x32xbf16> to vector<8x32xbf16>
    %689 = vector.shape_cast %686 : vector<8x32xbf16> to vector<1x8x32xbf16>
    tpu.vector_store %arg7[%c1_171, %c0_172, %c0_173], %689 {strides = array<i32>} : memref<8x8x32xbf16, #tpu.memory_space<vmem>>, vector<1x8x32xbf16>,
    %c7_174 = arith.constant 7 : index
    %c0_175 = arith.constant 0 : index
    %c0_176 = arith.constant 0 : index
    %690 = vector.load %arg1[%c7_174, %c0_175, %c0_176] : memref<8x8x128xbf16, #tpu.memory_space<vmem>>, vector<1x8x128xbf16>
    %691 = vector.shape_cast %690 : vector<1x8x128xbf16> to vector<8x128xbf16>
    %692 = arith.extf %691 : vector<8x128xbf16> to vector<8x128xf32>
    %693 = arith.truncf %629 : vector<8x32xf32> to vector<8x32xbf16>
    %cst_177 = arith.constant dense<0.000000e+00> : vector<8x128xf32>
    %694 = tpu.matmul %693, %5, %cst_177 {dimension_numbers = #tpu.dot_dimension_numbers<[1], [0], [0], [1], [0, 0, 1, 1], [], []>} : vector<8x32xbf16>, vector<32x128xbf16>, vector<8x128xf32> -> vector<8x128xf32>
    %695 = arith.addf %692, %694 : vector<8x128xf32>
    %c7_i32_178 = arith.constant 7 : i32
    %696 = arith.addi %4, %c7_i32_178 : i32
    %697 = vector.broadcast %696 : i32 to vector<8x1xi32>
    %698 = arith.cmpi sgt, %3, %697 : vector<8x1xi32>
    %699 = vector.extract_strided_slice %695 {offsets = [0, 0], sizes = [8, 32], strides = [1, 1]} : vector<8x128xf32> to vector<8x32xf32>
    %700 = arith.negf %699 : vector<8x32xf32>
    %701 = math.exp %700 : vector<8x32xf32>
    %cst_179 = arith.constant 1.000000e+00 : f32
    %702 = vector.broadcast %cst_179 : f32 to vector<8x32xf32>
    %703 = arith.addf %702, %701 : vector<8x32xf32>
    %704 = arith.divf %702, %703 : vector<8x32xf32>
    %705 = vector.extract_strided_slice %695 {offsets = [0, 32], sizes = [8, 32], strides = [1, 1]} : vector<8x128xf32> to vector<8x32xf32>
    %706 = arith.negf %705 : vector<8x32xf32>
    %707 = math.exp %706 : vector<8x32xf32>
    %cst_180 = arith.constant 1.000000e+00 : f32
    %708 = vector.broadcast %cst_180 : f32 to vector<8x32xf32>
    %709 = arith.addf %708, %707 : vector<8x32xf32>
    %710 = arith.divf %708, %709 : vector<8x32xf32>
    %711 = vector.extract_strided_slice %695 {offsets = [0, 64], sizes = [8, 32], strides = [1, 1]} : vector<8x128xf32> to vector<8x32xf32>
    %712 = math.tanh %711 : vector<8x32xf32>
    %713 = vector.extract_strided_slice %695 {offsets = [0, 96], sizes = [8, 32], strides = [1, 1]} : vector<8x128xf32> to vector<8x32xf32>
    %714 = arith.negf %713 : vector<8x32xf32>
    %715 = math.exp %714 : vector<8x32xf32>
    %cst_181 = arith.constant 1.000000e+00 : f32
    %716 = vector.broadcast %cst_181 : f32 to vector<8x32xf32>
    %717 = arith.addf %716, %715 : vector<8x32xf32>
    %718 = arith.divf %716, %717 : vector<8x32xf32>
    %719 = arith.mulf %710, %632 : vector<8x32xf32>
    %720 = arith.mulf %704, %712 : vector<8x32xf32>
    %721 = arith.addf %719, %720 : vector<8x32xf32>
    %722 = math.tanh %721 : vector<8x32xf32>
    %723 = arith.mulf %718, %722 : vector<8x32xf32>
    %724 = vector.shape_cast %698 : vector<8x1xi1> to vector<8x1xi1>
    %725 = vector.broadcast %724 : vector<8x1xi1> to vector<8x32xi1>
    %726 = arith.select %725, %723, %629 : vector<8x32xi1>, vector<8x32xf32>
    %727 = vector.shape_cast %698 : vector<8x1xi1> to vector<8x1xi1>
    %728 = vector.broadcast %727 : vector<8x1xi1> to vector<8x32xi1>
    %729 = arith.select %728, %721, %632 : vector<8x32xi1>, vector<8x32xf32>
    %cst_182 = arith.constant 0.000000e+00 : f32
    %730 = vector.shape_cast %698 : vector<8x1xi1> to vector<8x1xi1>
    %731 = vector.broadcast %730 : vector<8x1xi1> to vector<8x32xi1>
    %732 = vector.broadcast %cst_182 : f32 to vector<8x32xf32>
    %733 = arith.select %731, %723, %732 : vector<8x32xi1>, vector<8x32xf32>
    %734 = arith.truncf %733 : vector<8x32xf32> to vector<8x32xbf16>
    %c7_183 = arith.constant 7 : index
    %c0_184 = arith.constant 0 : index
    %c0_185 = arith.constant 0 : index
    %735 = vector.load %arg6[%c7_183, %c0_184, %c0_185] : memref<8x8x32xbf16, #tpu.memory_space<vmem>>, vector<1x8x32xbf16>
    %736 = vector.shape_cast %735 : vector<1x8x32xbf16> to vector<8x32xbf16>
    %737 = vector.shape_cast %734 : vector<8x32xbf16> to vector<1x8x32xbf16>
    tpu.vector_store %arg6[%c7_183, %c0_184, %c0_185], %737 {strides = array<i32>} : memref<8x8x32xbf16, #tpu.memory_space<vmem>>, vector<1x8x32xbf16>,
    %c0_186 = arith.constant 0 : index
    %c0_187 = arith.constant 0 : index
    %c0_188 = arith.constant 0 : index
    %738 = vector.load %arg2[%c0_186, %c0_187, %c0_188] : memref<8x8x128xbf16, #tpu.memory_space<vmem>>, vector<1x8x128xbf16>
    %739 = vector.shape_cast %738 : vector<1x8x128xbf16> to vector<8x128xbf16>
    %740 = arith.extf %739 : vector<8x128xbf16> to vector<8x128xf32>
    %741 = arith.truncf %678 : vector<8x32xf32> to vector<8x32xbf16>
    %cst_189 = arith.constant dense<0.000000e+00> : vector<8x128xf32>
    %742 = tpu.matmul %741, %6, %cst_189 {dimension_numbers = #tpu.dot_dimension_numbers<[1], [0], [0], [1], [0, 0, 1, 1], [], []>} : vector<8x32xbf16>, vector<32x128xbf16>, vector<8x128xf32> -> vector<8x128xf32>
    %743 = arith.addf %740, %742 : vector<8x128xf32>
    %c7_i32_190 = arith.constant 7 : i32
    %744 = arith.addi %4, %c7_i32_190 : i32
    %c7_i32_191 = arith.constant 7 : i32
    %745 = arith.subi %c7_i32_191, %744 : i32
    %746 = vector.broadcast %745 : i32 to vector<8x1xi32>
    %747 = arith.cmpi sgt, %3, %746 : vector<8x1xi32>
    %748 = vector.extract_strided_slice %743 {offsets = [0, 0], sizes = [8, 32], strides = [1, 1]} : vector<8x128xf32> to vector<8x32xf32>
    %749 = arith.negf %748 : vector<8x32xf32>
    %750 = math.exp %749 : vector<8x32xf32>
    %cst_192 = arith.constant 1.000000e+00 : f32
    %751 = vector.broadcast %cst_192 : f32 to vector<8x32xf32>
    %752 = arith.addf %751, %750 : vector<8x32xf32>
    %753 = arith.divf %751, %752 : vector<8x32xf32>
    %754 = vector.extract_strided_slice %743 {offsets = [0, 32], sizes = [8, 32], strides = [1, 1]} : vector<8x128xf32> to vector<8x32xf32>
    %755 = arith.negf %754 : vector<8x32xf32>
    %756 = math.exp %755 : vector<8x32xf32>
    %cst_193 = arith.constant 1.000000e+00 : f32
    %757 = vector.broadcast %cst_193 : f32 to vector<8x32xf32>
    %758 = arith.addf %757, %756 : vector<8x32xf32>
    %759 = arith.divf %757, %758 : vector<8x32xf32>
    %760 = vector.extract_strided_slice %743 {offsets = [0, 64], sizes = [8, 32], strides = [1, 1]} : vector<8x128xf32> to vector<8x32xf32>
    %761 = math.tanh %760 : vector<8x32xf32>
    %762 = vector.extract_strided_slice %743 {offsets = [0, 96], sizes = [8, 32], strides = [1, 1]} : vector<8x128xf32> to vector<8x32xf32>
    %763 = arith.negf %762 : vector<8x32xf32>
    %764 = math.exp %763 : vector<8x32xf32>
    %cst_194 = arith.constant 1.000000e+00 : f32
    %765 = vector.broadcast %cst_194 : f32 to vector<8x32xf32>
    %766 = arith.addf %765, %764 : vector<8x32xf32>
    %767 = arith.divf %765, %766 : vector<8x32xf32>
    %768 = arith.mulf %759, %681 : vector<8x32xf32>
    %769 = arith.mulf %753, %761 : vector<8x32xf32>
    %770 = arith.addf %768, %769 : vector<8x32xf32>
    %771 = math.tanh %770 : vector<8x32xf32>
    %772 = arith.mulf %767, %771 : vector<8x32xf32>
    %773 = vector.shape_cast %747 : vector<8x1xi1> to vector<8x1xi1>
    %774 = vector.broadcast %773 : vector<8x1xi1> to vector<8x32xi1>
    %775 = arith.select %774, %772, %678 : vector<8x32xi1>, vector<8x32xf32>
    %776 = vector.shape_cast %747 : vector<8x1xi1> to vector<8x1xi1>
    %777 = vector.broadcast %776 : vector<8x1xi1> to vector<8x32xi1>
    %778 = arith.select %777, %770, %681 : vector<8x32xi1>, vector<8x32xf32>
    %cst_195 = arith.constant 0.000000e+00 : f32
    %779 = vector.shape_cast %747 : vector<8x1xi1> to vector<8x1xi1>
    %780 = vector.broadcast %779 : vector<8x1xi1> to vector<8x32xi1>
    %781 = vector.broadcast %cst_195 : f32 to vector<8x32xf32>
    %782 = arith.select %780, %772, %781 : vector<8x32xi1>, vector<8x32xf32>
    %783 = arith.truncf %782 : vector<8x32xf32> to vector<8x32xbf16>
    %c0_196 = arith.constant 0 : index
    %c0_197 = arith.constant 0 : index
    %c0_198 = arith.constant 0 : index
    %784 = vector.load %arg7[%c0_196, %c0_197, %c0_198] : memref<8x8x32xbf16, #tpu.memory_space<vmem>>, vector<1x8x32xbf16>
    %785 = vector.shape_cast %784 : vector<1x8x32xbf16> to vector<8x32xbf16>
    %786 = vector.shape_cast %783 : vector<8x32xbf16> to vector<1x8x32xbf16>
    tpu.vector_store %arg7[%c0_196, %c0_197, %c0_198], %786 {strides = array<i32>} : memref<8x8x32xbf16, #tpu.memory_space<vmem>>, vector<1x8x32xbf16>,
    %c0_199 = arith.constant 0 : index
    %c0_200 = arith.constant 0 : index
    %787 = vector.load %arg8[%c0_199, %c0_200] : memref<8x32xf32, #tpu.memory_space<vmem>>, vector<8x32xf32>
    tpu.vector_store %arg8[%c0_199, %c0_200], %726 {strides = array<i32>} : memref<8x32xf32, #tpu.memory_space<vmem>>, vector<8x32xf32>,
    %c0_201 = arith.constant 0 : index
    %c0_202 = arith.constant 0 : index
    %788 = vector.load %arg9[%c0_201, %c0_202] : memref<8x32xf32, #tpu.memory_space<vmem>>, vector<8x32xf32>
    tpu.vector_store %arg9[%c0_201, %c0_202], %729 {strides = array<i32>} : memref<8x32xf32, #tpu.memory_space<vmem>>, vector<8x32xf32>,
    %c0_203 = arith.constant 0 : index
    %c0_204 = arith.constant 0 : index
    %789 = vector.load %arg10[%c0_203, %c0_204] : memref<8x32xf32, #tpu.memory_space<vmem>>, vector<8x32xf32>
    tpu.vector_store %arg10[%c0_203, %c0_204], %775 {strides = array<i32>} : memref<8x32xf32, #tpu.memory_space<vmem>>, vector<8x32xf32>,
    %c0_205 = arith.constant 0 : index
    %c0_206 = arith.constant 0 : index
    %790 = vector.load %arg11[%c0_205, %c0_206] : memref<8x32xf32, #tpu.memory_space<vmem>>, vector<8x32xf32>
    tpu.vector_store %arg11[%c0_205, %c0_206], %778 {strides = array<i32>} : memref<8x32xf32, #tpu.memory_space<vmem>>, vector<8x32xf32>,
    return
  }
  func.func @transform_0(%arg0: i32) -> (i32, i32, i32) {
    %c0_i32 = arith.constant 0 : i32
    %c0_i32_0 = arith.constant 0 : i32
    %c0_i32_1 = arith.constant 0 : i32
    return %arg0, %c0_i32, %c0_i32_0 : i32, i32, i32
  }
  func.func @transform_1(%arg0: i32) -> (i32, i32, i32) {
    %c0_i32 = arith.constant 0 : i32
    %0 = arith.subi %c0_i32, %arg0 : i32
    %c0_i32_0 = arith.constant 0 : i32
    %c0_i32_1 = arith.constant 0 : i32
    %c0_i32_2 = arith.constant 0 : i32
    return %0, %c0_i32_0, %c0_i32_1 : i32, i32, i32
  }
  func.func @transform_2(%arg0: i32) -> (i32, i32) {
    %c0_i32 = arith.constant 0 : i32
    %c0_i32_0 = arith.constant 0 : i32
    %c0_i32_1 = arith.constant 0 : i32
    return %c0_i32, %c0_i32_0 : i32, i32
  }
  func.func @transform_3(%arg0: i32) -> (i32, i32) {
    %c0_i32 = arith.constant 0 : i32
    %c0_i32_0 = arith.constant 0 : i32
    %c0_i32_1 = arith.constant 0 : i32
    return %c0_i32, %c0_i32_0 : i32, i32
  }
  func.func @transform_4(%arg0: i32) -> (i32, i32) {
    %c0_i32 = arith.constant 0 : i32
    %c0_i32_0 = arith.constant 0 : i32
    %c0_i32_1 = arith.constant 0 : i32
    return %c0_i32, %c0_i32_0 : i32, i32
  }
  func.func @transform_5(%arg0: i32) -> (i32, i32, i32) {
    %c0_i32 = arith.constant 0 : i32
    %c0_i32_0 = arith.constant 0 : i32
    %c0_i32_1 = arith.constant 0 : i32
    return %arg0, %c0_i32, %c0_i32_0 : i32, i32, i32
  }
  func.func @transform_6(%arg0: i32) -> (i32, i32, i32) {
    %c0_i32 = arith.constant 0 : i32
    %0 = arith.subi %c0_i32, %arg0 : i32
    %c0_i32_0 = arith.constant 0 : i32
    %c0_i32_1 = arith.constant 0 : i32
    %c0_i32_2 = arith.constant 0 : i32
    return %0, %c0_i32_0, %c0_i32_1 : i32, i32, i32
  }
}

module attributes {stable_mosaic.version = 11 : i64} {
  func.func @_mlp_kernel(%arg0: i32, %arg1: memref<8x8x32xbf16, #tpu.memory_space<vmem>>, %arg2: memref<8x8x32xbf16, #tpu.memory_space<vmem>>, %arg3: memref<32x64xbf16, #tpu.memory_space<vmem>>, %arg4: memref<32x64xbf16, #tpu.memory_space<vmem>>, %arg5: memref<1x64xf32, #tpu.memory_space<vmem>>, %arg6: memref<64x64xbf16, #tpu.memory_space<vmem>>, %arg7: memref<1x64xf32, #tpu.memory_space<vmem>>, %arg8: memref<8x1xi32, #tpu.memory_space<vmem>>, %arg9: memref<8x8x64xf32, #tpu.memory_space<vmem>>) attributes {dimension_semantics = [#tpu.dimension_semantics<parallel>], iteration_bounds = array<i64: 1>, scalar_prefetch = 0 : i64, scratch_operands = 0 : i64, tpu.core_type = #tpu.core_type<tc>, window_params = [{transform_indices = @transform_0, window_bounds = array<i64: 8, 8, 32>}, {transform_indices = @transform_1, window_bounds = array<i64: 8, 8, 32>}, {pipeline_mode = #tpu.pipeline_mode<synchronous>, transform_indices = @transform_2, window_bounds = array<i64: 32, 64>}, {pipeline_mode = #tpu.pipeline_mode<synchronous>, transform_indices = @transform_3, window_bounds = array<i64: 32, 64>}, {pipeline_mode = #tpu.pipeline_mode<synchronous>, transform_indices = @transform_4, window_bounds = array<i64: 1, 64>}, {pipeline_mode = #tpu.pipeline_mode<synchronous>, transform_indices = @transform_5, window_bounds = array<i64: 64, 64>}, {pipeline_mode = #tpu.pipeline_mode<synchronous>, transform_indices = @transform_6, window_bounds = array<i64: 1, 64>}, {pipeline_mode = #tpu.pipeline_mode<synchronous>, transform_indices = @transform_7, window_bounds = array<i64: 8, 1>}, {transform_indices = @transform_8, window_bounds = array<i64: 8, 8, 64>}]} {
    %c0 = arith.constant 0 : index
    %c0_0 = arith.constant 0 : index
    %c0_1 = arith.constant 0 : index
    %0 = vector.load %arg1[%c0, %c0_0, %c0_1] : memref<8x8x32xbf16, #tpu.memory_space<vmem>>, vector<8x8x32xbf16>
    %1 = vector.shape_cast %0 : vector<8x8x32xbf16> to vector<64x32xbf16>
    %c0_2 = arith.constant 0 : index
    %c0_3 = arith.constant 0 : index
    %c0_4 = arith.constant 0 : index
    %2 = vector.load %arg2[%c0_2, %c0_3, %c0_4] : memref<8x8x32xbf16, #tpu.memory_space<vmem>>, vector<8x8x32xbf16>
    %3 = vector.shape_cast %2 : vector<8x8x32xbf16> to vector<64x32xbf16>
    %c0_5 = arith.constant 0 : index
    %c0_6 = arith.constant 0 : index
    %4 = vector.load %arg3[%c0_5, %c0_6] : memref<32x64xbf16, #tpu.memory_space<vmem>>, vector<32x64xbf16>
    %cst = arith.constant dense<0.000000e+00> : vector<64x64xf32>
    %5 = tpu.matmul %1, %4, %cst {dimension_numbers = #tpu.dot_dimension_numbers<[1], [0], [0], [1], [0, 0, 1, 1], [], []>} : vector<64x32xbf16>, vector<32x64xbf16>, vector<64x64xf32> -> vector<64x64xf32>
    %c0_7 = arith.constant 0 : index
    %c0_8 = arith.constant 0 : index
    %6 = vector.load %arg4[%c0_7, %c0_8] : memref<32x64xbf16, #tpu.memory_space<vmem>>, vector<32x64xbf16>
    %cst_9 = arith.constant dense<0.000000e+00> : vector<64x64xf32>
    %7 = tpu.matmul %3, %6, %cst_9 {dimension_numbers = #tpu.dot_dimension_numbers<[1], [0], [0], [1], [0, 0, 1, 1], [], []>} : vector<64x32xbf16>, vector<32x64xbf16>, vector<64x64xf32> -> vector<64x64xf32>
    %8 = arith.addf %5, %7 : vector<64x64xf32>
    %c0_10 = arith.constant 0 : index
    %c0_11 = arith.constant 0 : index
    %9 = vector.load %arg5[%c0_10, %c0_11] : memref<1x64xf32, #tpu.memory_space<vmem>>, vector<1x64xf32>
    %10 = vector.broadcast %9 : vector<1x64xf32> to vector<64x64xf32>
    %11 = arith.addf %8, %10 : vector<64x64xf32>
    %12 = arith.truncf %11 : vector<64x64xf32> to vector<64x64xbf16>
    %c0_12 = arith.constant 0 : index
    %c0_13 = arith.constant 0 : index
    %13 = vector.load %arg6[%c0_12, %c0_13] : memref<64x64xbf16, #tpu.memory_space<vmem>>, vector<64x64xbf16>
    %cst_14 = arith.constant dense<0.000000e+00> : vector<64x64xf32>
    %14 = tpu.matmul %12, %13, %cst_14 {dimension_numbers = #tpu.dot_dimension_numbers<[1], [0], [0], [1], [0, 0, 1, 1], [], []>} : vector<64x64xbf16>, vector<64x64xbf16>, vector<64x64xf32> -> vector<64x64xf32>
    %c0_15 = arith.constant 0 : index
    %c0_16 = arith.constant 0 : index
    %15 = vector.load %arg7[%c0_15, %c0_16] : memref<1x64xf32, #tpu.memory_space<vmem>>, vector<1x64xf32>
    %16 = vector.broadcast %15 : vector<1x64xf32> to vector<64x64xf32>
    %17 = arith.addf %14, %16 : vector<64x64xf32>
    %18 = math.tanh %17 : vector<64x64xf32>
    %19 = vector.shape_cast %18 : vector<64x64xf32> to vector<8x8x64xf32>
    %20 = tpu.iota {dimensions = array<i32: 0>} : vector<8x8x1xi32>
    %c8_i32 = arith.constant 8 : i32
    %21 = arith.muli %arg0, %c8_i32 : i32
    %22 = vector.broadcast %21 : i32 to vector<8x8x1xi32>
    %23 = arith.addi %20, %22 : vector<8x8x1xi32>
    %c0_17 = arith.constant 0 : index
    %c0_18 = arith.constant 0 : index
    %24 = vector.load %arg8[%c0_17, %c0_18] : memref<8x1xi32, #tpu.memory_space<vmem>>, vector<8x1xi32>
    %25 = vector.shape_cast %24 : vector<8x1xi32> to vector<1x8x1xi32>
    %26 = vector.broadcast %25 : vector<1x8x1xi32> to vector<8x8x1xi32>
    %27 = arith.cmpi slt, %23, %26 : vector<8x8x1xi32>
    %28 = arith.extui %27 : vector<8x8x1xi1> to vector<8x8x1xi32>
    %29 = arith.sitofp %28 : vector<8x8x1xi32> to vector<8x8x1xf32>
    %30 = vector.broadcast %29 : vector<8x8x1xf32> to vector<8x8x64xf32>
    %31 = arith.mulf %19, %30 : vector<8x8x64xf32>
    %c0_19 = arith.constant 0 : index
    %c0_20 = arith.constant 0 : index
    %c0_21 = arith.constant 0 : index
    %32 = vector.load %arg9[%c0_19, %c0_20, %c0_21] : memref<8x8x64xf32, #tpu.memory_space<vmem>>, vector<8x8x64xf32>
    tpu.vector_store %arg9[%c0_19, %c0_20, %c0_21], %31 {strides = array<i32>} : memref<8x8x64xf32, #tpu.memory_space<vmem>>, vector<8x8x64xf32>,
    return
  }
  func.func @transform_0(%arg0: i32) -> (i32, i32, i32) {
    %c0_i32 = arith.constant 0 : i32
    %c0_i32_0 = arith.constant 0 : i32
    %c0_i32_1 = arith.constant 0 : i32
    return %arg0, %c0_i32, %c0_i32_0 : i32, i32, i32
  }
  func.func @transform_1(%arg0: i32) -> (i32, i32, i32) {
    %c0_i32 = arith.constant 0 : i32
    %c0_i32_0 = arith.constant 0 : i32
    %c0_i32_1 = arith.constant 0 : i32
    return %arg0, %c0_i32, %c0_i32_0 : i32, i32, i32
  }
  func.func @transform_2(%arg0: i32) -> (i32, i32) {
    %c0_i32 = arith.constant 0 : i32
    %c0_i32_0 = arith.constant 0 : i32
    %c0_i32_1 = arith.constant 0 : i32
    return %c0_i32, %c0_i32_0 : i32, i32
  }
  func.func @transform_3(%arg0: i32) -> (i32, i32) {
    %c0_i32 = arith.constant 0 : i32
    %c0_i32_0 = arith.constant 0 : i32
    %c0_i32_1 = arith.constant 0 : i32
    return %c0_i32, %c0_i32_0 : i32, i32
  }
  func.func @transform_4(%arg0: i32) -> (i32, i32) {
    %c0_i32 = arith.constant 0 : i32
    %c0_i32_0 = arith.constant 0 : i32
    %c0_i32_1 = arith.constant 0 : i32
    return %c0_i32, %c0_i32_0 : i32, i32
  }
  func.func @transform_5(%arg0: i32) -> (i32, i32) {
    %c0_i32 = arith.constant 0 : i32
    %c0_i32_0 = arith.constant 0 : i32
    %c0_i32_1 = arith.constant 0 : i32
    return %c0_i32, %c0_i32_0 : i32, i32
  }
  func.func @transform_6(%arg0: i32) -> (i32, i32) {
    %c0_i32 = arith.constant 0 : i32
    %c0_i32_0 = arith.constant 0 : i32
    %c0_i32_1 = arith.constant 0 : i32
    return %c0_i32, %c0_i32_0 : i32, i32
  }
  func.func @transform_7(%arg0: i32) -> (i32, i32) {
    %c0_i32 = arith.constant 0 : i32
    %c0_i32_0 = arith.constant 0 : i32
    %c0_i32_1 = arith.constant 0 : i32
    return %c0_i32, %c0_i32_0 : i32, i32
  }
  func.func @transform_8(%arg0: i32) -> (i32, i32, i32) {
    %c0_i32 = arith.constant 0 : i32
    %c0_i32_0 = arith.constant 0 : i32
    %c0_i32_1 = arith.constant 0 : i32
    return %arg0, %c0_i32, %c0_i32_0 : i32, i32, i32
  }
}

</mosaic_0001>

<llo_original>
// kernel: encoder_forward.5
$region0: #{encoder_forward.5}
  #allocation0 [shape = 'u32[]', space=smem, size = 0x4, offset = 0x4, fixed_abs, tag = 'smem constant byte address 0x4 - core index']
  #allocation1 [shape = 'u32[72,128]{1,0:T(1,128)}', space=vmem, size = 0x9000, scoped, tag = 'internal scratch']
  %s0 = inlined_call_operand.vmem [shape: bf16[8,8,32], index: 0, kind: input, shape index: {}]
  %s1 = inlined_call_operand.vmem [shape: bf16[8,8,32], index: 1, kind: input, shape index: {}]
  %s2 = inlined_call_operand.vmem [shape: bf16[32,64], index: 2, kind: input, shape index: {}]
  %s3 = inlined_call_operand.vmem [shape: bf16[32,64], index: 3, kind: input, shape index: {}]
  %s4 = inlined_call_operand.vmem [shape: f32[1,64], index: 4, kind: input, shape index: {}]
  %s5 = inlined_call_operand.vmem [shape: bf16[64,64], index: 5, kind: input, shape index: {}]
  %s6 = inlined_call_operand.vmem [shape: f32[1,64], index: 6, kind: input, shape index: {}]
  %s7 = inlined_call_operand.vmem [shape: s32[8,1], index: 7, kind: input, shape index: {}]
  %s8 = inlined_call_operand.vmem [shape: f32[8,8,64], index: 8, kind: output, shape index: {}]
  %s9 = sld [smem:[#allocation0]]
  $region42: #{encoder_forward.5} parent=0
    _
  %s11 = ssub.s32 1, %s9
  %s12 = scalar_select 0, %s11, %s9
  // Predicated region
  $region2: #{encoder_forward.5} parent=0 // pred_check
    _
  $region3: #{encoder_forward.5} parent=0 // pred_check_branch
    %14 = sbr.rel (0) target = $region5
  $region4: #{encoder_forward.5} parent=0 // pred_region
    _
  $region5: #{encoder_forward.5} parent=0 // pred_fallthru
    _
  // Predicated region
  $region6: #{encoder_forward.5} parent=0 // pred_check
    _
  $region7: #{encoder_forward.5} parent=0 // pred_check_branch
    %16 = sbr.rel (0) target = $region9
  $region8: #{encoder_forward.5} parent=0 // pred_region
    _
  $region9: #{encoder_forward.5} parent=0 // pred_fallthru
    _
  // Predicated region
  $region10: #{encoder_forward.5} parent=0 // pred_check
    _
  $region11: #{encoder_forward.5} parent=0 // pred_check_branch
    %18 = sbr.rel (0) target = $region13
  $region12: #{encoder_forward.5} parent=0 // pred_region
    _
  $region13: #{encoder_forward.5} parent=0 // pred_fallthru
    _
  // Predicated region
  $region14: #{encoder_forward.5} parent=0 // pred_check
    _
  $region15: #{encoder_forward.5} parent=0 // pred_check_branch
    %20 = sbr.rel (0) target = $region17
  $region16: #{encoder_forward.5} parent=0 // pred_region
    _
  $region17: #{encoder_forward.5} parent=0 // pred_fallthru
    _
  // Predicated region
  $region18: #{encoder_forward.5} parent=0 // pred_check
    _
  $region19: #{encoder_forward.5} parent=0 // pred_check_branch
    %22 = sbr.rel (0) target = $region21
  $region20: #{encoder_forward.5} parent=0 // pred_region
    _
  $region21: #{encoder_forward.5} parent=0 // pred_fallthru
    _
  // Predicated region
  $region22: #{encoder_forward.5} parent=0 // pred_check
    _
  $region23: #{encoder_forward.5} parent=0 // pred_check_branch
    %24 = sbr.rel (0) target = $region25
  $region24: #{encoder_forward.5} parent=0 // pred_region
    _
  $region25: #{encoder_forward.5} parent=0 // pred_fallthru
    _
  // Predicated region
  $region26: #{encoder_forward.5} parent=0 // pred_check
    _
  $region27: #{encoder_forward.5} parent=0 // pred_check_branch
    %26 = sbr.rel (0) target = $region29
  $region28: #{encoder_forward.5} parent=0 // pred_region
    _
  $region29: #{encoder_forward.5} parent=0 // pred_fallthru
    _
  // Predicated region
  $region30: #{encoder_forward.5} parent=0 // pred_check
    _
  $region31: #{encoder_forward.5} parent=0 // pred_check_branch
    %28 = sbr.rel (0) target = $region33
  $region32: #{encoder_forward.5} parent=0 // pred_region
    _
  $region33: #{encoder_forward.5} parent=0 // pred_fallthru
    _
  %v30 = vld [vmem:[%s0] sm:$0xf]
  %v31 = vld [vmem:[%s0 + $0x4] sm:$0xf]
  %v32 = vld [vmem:[%s0 + $0x8] sm:$0xf]
  %v33 = vld [vmem:[%s0 + $0xc] sm:$0xf]
  %v34 = vld [vmem:[%s0 + $0x10] sm:$0xf]
  %v35 = vld [vmem:[%s0 + $0x14] sm:$0xf]
  %v36 = vld [vmem:[%s0 + $0x18] sm:$0xf]
  %v37 = vld [vmem:[%s0 + $0x1c] sm:$0xf]
  %v38 = vld [vmem:[%s1] sm:$0xf]
  %v39 = vld [vmem:[%s1 + $0x4] sm:$0xf]
  %v40 = vld [vmem:[%s1 + $0x8] sm:$0xf]
  %v41 = vld [vmem:[%s1 + $0xc] sm:$0xf]
  %v42 = vld [vmem:[%s1 + $0x10] sm:$0xf]
  %v43 = vld [vmem:[%s1 + $0x14] sm:$0xf]
  %v44 = vld [vmem:[%s1 + $0x18] sm:$0xf]
  %v45 = vld [vmem:[%s1 + $0x1c] sm:$0xf]
  %v46 = vld [vmem:[%s2] sm:$0xf]
  %v47 = vld [vmem:[%s2 + $0x4] sm:$0xf]
  %v48 = vld [vmem:[%s2 + $0x8] sm:$0xf]
  %v49 = vld [vmem:[%s2 + $0xc] sm:$0xf]
  %v50 = vld [vmem:[%s3] sm:$0xf]
  %v51 = vld [vmem:[%s3 + $0x4] sm:$0xf]
  %v52 = vld [vmem:[%s3 + $0x8] sm:$0xf]
  %v53 = vld [vmem:[%s3 + $0xc] sm:$0xf]
  %v62 = vunpack.c.l.b16 %v38
  %v63 = vunpack.c.l.b16 %v39
  %v64 = vunpack.c.l.b16 %v40
  %v65 = vunpack.c.l.b16 %v41
  %v66 = vunpack.c.l.b16 %v42
  %v67 = vunpack.c.l.b16 %v43
  %v68 = vunpack.c.l.b16 %v44
  %v69 = vunpack.c.l.b16 %v45
  %v70 = vpack.c.b16 %v63, %v62
  %v71 = vpack.c.b16 %v65, %v64
  %v72 = vpack.c.b16 %v67, %v66
  %v73 = vpack.c.b16 %v69, %v68
  %v78 = vunpack.c.l.b16 %v50
  %v79 = vunpack.c.l.b16 %v51
  %v80 = vunpack.c.l.b16 %v52
  %v81 = vunpack.c.l.b16 %v53
  %v82 = vpack.c.b16 %v79, %v78
  %v83 = vpack.c.b16 %v81, %v80
  %vm86 = vcmask 261120
  %v88 = vsel %vm86, %v70, 0
  %v91 = vsel %vm86, %v71, 0
  %v94 = vsel %vm86, %v72, 0
  %v97 = vsel %vm86, %v73, 0
  %99 = vmatpush.bf16.msra.mxu0 0
  %100 = vmatpush.bf16.msra.mxu0 0
  %101 = vmatpush.bf16.msra.mxu0 0
  %102 = vmatpush.bf16.msra.mxu0 0
  %103 = vmatpush.bf16.msra.mxu0 0
  %104 = vmatpush.bf16.msra.mxu0 0
  %105 = vmatpush.bf16.msra.mxu0 %v83
  %106 = vmatpush.bf16.msra.mxu0 %v82
  %107 = vmatmul.bf16.gmra.mxu0 %v88
  %v108 = vpop.f32.mrf.mxu0
  %v109 = vadd.f32 0.0, %v108
  %v110 = vpop.f32.mrf.mxu0
  %v111 = vadd.f32 0.0, %v110
  %112 = vmatmul.bf16.gmra.mxu0 %v91
  %v113 = vpop.f32.mrf.mxu0
  %v114 = vadd.f32 0.0, %v113
  %v115 = vpop.f32.mrf.mxu0
  %v116 = vadd.f32 0.0, %v115
  %117 = vmatmul.bf16.gmra.mxu0 %v94
  %v118 = vpop.f32.mrf.mxu0
  %v119 = vadd.f32 0.0, %v118
  %v120 = vpop.f32.mrf.mxu0
  %v121 = vadd.f32 0.0, %v120
  %122 = vmatmul.bf16.gmra.mxu0 %v97
  %v123 = vpop.f32.mrf.mxu0
  %v124 = vadd.f32 0.0, %v123
  %v125 = vpop.f32.mrf.mxu0
  %v126 = vadd.f32 0.0, %v125
  %127 = vdwg.mxu0
  %v136 = vunpack.c.l.b16 %v30
  %v137 = vunpack.c.l.b16 %v31
  %v138 = vunpack.c.l.b16 %v32
  %v139 = vunpack.c.l.b16 %v33
  %v140 = vunpack.c.l.b16 %v34
  %v141 = vunpack.c.l.b16 %v35
  %v142 = vunpack.c.l.b16 %v36
  %v143 = vunpack.c.l.b16 %v37
  %v144 = vpack.c.b16 %v137, %v136
  %v145 = vpack.c.b16 %v139, %v138
  %v146 = vpack.c.b16 %v141, %v140
  %v147 = vpack.c.b16 %v143, %v142
  %v152 = vunpack.c.l.b16 %v46
  %v153 = vunpack.c.l.b16 %v47
  %v154 = vunpack.c.l.b16 %v48
  %v155 = vunpack.c.l.b16 %v49
  %v156 = vpack.c.b16 %v153, %v152
  %v157 = vpack.c.b16 %v155, %v154
  %v161 = vsel %vm86, %v144, 0
  %v164 = vsel %vm86, %v145, 0
  %v167 = vsel %vm86, %v146, 0
  %v170 = vsel %vm86, %v147, 0
  %172 = vmatpush.bf16.msra.mxu0 0
  %173 = vmatpush.bf16.msra.mxu0 0
  %174 = vmatpush.bf16.msra.mxu0 0
  %175 = vmatpush.bf16.msra.mxu0 0
  %176 = vmatpush.bf16.msra.mxu0 0
  %177 = vmatpush.bf16.msra.mxu0 0
  %178 = vmatpush.bf16.msra.mxu0 %v157
  %179 = vmatpush.bf16.msra.mxu0 %v156
  %180 = vmatmul.bf16.gmra.mxu0 %v161
  %v181 = vpop.f32.mrf.mxu0
  %v182 = vadd.f32 %v109, %v181
  %v183 = vpop.f32.mrf.mxu0
  %v184 = vadd.f32 %v111, %v183
  %185 = vmatmul.bf16.gmra.mxu0 %v164
  %v186 = vpop.f32.mrf.mxu0
  %v187 = vadd.f32 %v114, %v186
  %v188 = vpop.f32.mrf.mxu0
  %v189 = vadd.f32 %v116, %v188
  %190 = vmatmul.bf16.gmra.mxu0 %v167
  %v191 = vpop.f32.mrf.mxu0
  %v192 = vadd.f32 %v119, %v191
  %v193 = vpop.f32.mrf.mxu0
  %v194 = vadd.f32 %v121, %v193
  %195 = vmatmul.bf16.gmra.mxu0 %v170
  %v196 = vpop.f32.mrf.mxu0
  %v197 = vadd.f32 %v124, %v196
  %v198 = vpop.f32.mrf.mxu0
  %v199 = vadd.f32 %v126, %v198
  %200 = vdwg.mxu0
  %v201 = vld [vmem:[%s4] sm:$0x1]
  %v203 = vperm.slane %v201, 0
  %v205 = vadd.f32 %v182, %v203
  %v206 = vadd.f32 %v184, %v203
  %v207 = vadd.f32 %v187, %v203
  %v208 = vadd.f32 %v189, %v203
  %v209 = vadd.f32 %v192, %v203
  %v210 = vadd.f32 %v194, %v203
  %v211 = vadd.f32 %v197, %v203
  %v212 = vadd.f32 %v199, %v203
  %v213 = vpack.c.bf16 %v206, %v205
  %v214 = vpack.c.bf16 %v208, %v207
  %v215 = vpack.c.bf16 %v210, %v209
  %v216 = vpack.c.bf16 %v212, %v211
  %v217 = vld [vmem:[%s5] sm:$0xf]
  %v218 = vld [vmem:[%s5 + $0x4] sm:$0xf]
  %v219 = vld [vmem:[%s5 + $0x8] sm:$0xf]
  %v220 = vld [vmem:[%s5 + $0xc] sm:$0xf]
  %v221 = vld [vmem:[%s5 + $0x10] sm:$0xf]
  %v222 = vld [vmem:[%s5 + $0x14] sm:$0xf]
  %v223 = vld [vmem:[%s5 + $0x18] sm:$0xf]
  %v224 = vld [vmem:[%s5 + $0x1c] sm:$0xf]
  %v225 = vld [vmem:[%s6] sm:$0x1]
  %v227 = vperm.slane %v225, 0
  %v237 = vunpack.c.l.b16 %v217
  %v238 = vunpack.c.l.b16 %v218
  %v239 = vunpack.c.l.b16 %v219
  %v240 = vunpack.c.l.b16 %v220
  %v241 = vunpack.c.l.b16 %v221
  %v242 = vunpack.c.l.b16 %v222
  %v243 = vunpack.c.l.b16 %v223
  %v244 = vunpack.c.l.b16 %v224
  %v245 = vpack.c.b16 %v238, %v237
  %v246 = vpack.c.b16 %v240, %v239
  %v247 = vpack.c.b16 %v242, %v241
  %v248 = vpack.c.b16 %v244, %v243
  %vm253 = vcmask 523264
  %v255 = vsel %vm253, %v213, 0
  %v258 = vsel %vm253, %v214, 0
  %v261 = vsel %vm253, %v215, 0
  %v264 = vsel %vm253, %v216, 0
  %266 = vmatpush.bf16.msra.mxu0 0
  %267 = vmatpush.bf16.msra.mxu0 0
  %268 = vmatpush.bf16.msra.mxu0 0
  %269 = vmatpush.bf16.msra.mxu0 0
  %270 = vmatpush.bf16.msra.mxu0 %v248
  %271 = vmatpush.bf16.msra.mxu0 %v247
  %272 = vmatpush.bf16.msra.mxu0 %v246
  %273 = vmatpush.bf16.msra.mxu0 %v245
  %274 = vmatmul.bf16.gmra.mxu0 %v255
  %v275 = vpop.f32.mrf.mxu0
  %v276 = vadd.f32 %v227, %v275
  %v277 = vpop.f32.mrf.mxu0
  %v278 = vadd.f32 %v227, %v277
  %279 = vmatmul.bf16.gmra.mxu0 %v258
  %v280 = vpop.f32.mrf.mxu0
  %v281 = vadd.f32 %v227, %v280
  %v282 = vpop.f32.mrf.mxu0
  %v283 = vadd.f32 %v227, %v282
  %284 = vmatmul.bf16.gmra.mxu0 %v261
  %v285 = vpop.f32.mrf.mxu0
  %v286 = vadd.f32 %v227, %v285
  %v287 = vpop.f32.mrf.mxu0
  %v288 = vadd.f32 %v227, %v287
  %289 = vmatmul.bf16.gmra.mxu0 %v264
  %v290 = vpop.f32.mrf.mxu0
  %v291 = vadd.f32 %v227, %v290
  %v292 = vpop.f32.mrf.mxu0
  %v293 = vadd.f32 %v227, %v292
  %294 = vdwg.mxu0
  %v295 = vtanh.pop %v276
  %v296 = vtanh.pop %v278
  %v297 = vtanh.pop %v281
  %v298 = vtanh.pop %v283
  %v299 = vtanh.pop %v286
  %v300 = vtanh.pop %v288
  %v301 = vtanh.pop %v291
  %v302 = vtanh.pop %v293
  %s303 = smul.u32 0, 8
  %v304 = vstv %s303
  %v305 = vadd.s32 %v304, 1
  %v306 = vadd.s32 %v304, 2
  %v307 = vadd.s32 %v304, 3
  %v308 = vadd.s32 %v304, 4
  %v309 = vadd.s32 %v304, 5
  %v310 = vadd.s32 %v304, 6
  %v311 = vadd.s32 %v304, 7
  %v312 = vld [vmem:[%s7] sm:$0xff]
  %vm313 = vcmp.lt.s32.totalorder %v304, %v312
  %vm314 = vcmp.lt.s32.totalorder %v305, %v312
  %vm315 = vcmp.lt.s32.totalorder %v306, %v312
  %vm316 = vcmp.lt.s32.totalorder %v307, %v312
  %vm317 = vcmp.lt.s32.totalorder %v308, %v312
  %vm318 = vcmp.lt.s32.totalorder %v309, %v312
  %vm319 = vcmp.lt.s32.totalorder %v310, %v312
  %vm320 = vcmp.lt.s32.totalorder %v311, %v312
  %v321 = vsel %vm313, 1, 0
  %v322 = vsel %vm314, 1, 0
  %v323 = vsel %vm315, 1, 0
  %v324 = vsel %vm316, 1, 0
  %v325 = vsel %vm317, 1, 0
  %v326 = vsel %vm318, 1, 0
  %v327 = vsel %vm319, 1, 0
  %v328 = vsel %vm320, 1, 0
  %v329 = vcvt.s32.f32 %v321
  %v330 = vcvt.s32.f32 %v322
  %v331 = vcvt.s32.f32 %v323
  %v332 = vcvt.s32.f32 %v324
  %v333 = vcvt.s32.f32 %v325
  %v334 = vcvt.s32.f32 %v326
  %v335 = vcvt.s32.f32 %v327
  %v336 = vcvt.s32.f32 %v328
  %338 = vset.pattern.permute.xlu0 0
  %339 = vperm.xlu0 %338, %v329
  %v340 = vpop.permute.xlu0 %339
  %343 = vset.pattern.permute.xlu0 0
  %344 = vperm.xlu0 %343, %v330
  %v345 = vpop.permute.xlu0 %344
  %348 = vset.pattern.permute.xlu0 0
  %349 = vperm.xlu0 %348, %v331
  %v350 = vpop.permute.xlu0 %349
  %353 = vset.pattern.permute.xlu0 0
  %354 = vperm.xlu0 %353, %v332
  %v355 = vpop.permute.xlu0 %354
  %358 = vset.pattern.permute.xlu0 0
  %359 = vperm.xlu0 %358, %v333
  %v360 = vpop.permute.xlu0 %359
  %363 = vset.pattern.permute.xlu0 0
  %364 = vperm.xlu0 %363, %v334
  %v365 = vpop.permute.xlu0 %364
  %368 = vset.pattern.permute.xlu0 0
  %369 = vperm.xlu0 %368, %v335
  %v370 = vpop.permute.xlu0 %369
  %373 = vset.pattern.permute.xlu0 0
  %374 = vperm.xlu0 %373, %v336
  %v375 = vpop.permute.xlu0 %374
  %v377 = vmul.f32 %v295, %v340
  %v378 = vmul.f32 %v296, %v345
  %v379 = vmul.f32 %v297, %v350
  %v380 = vmul.f32 %v298, %v355
  %v381 = vmul.f32 %v299, %v360
  %v382 = vmul.f32 %v300, %v365
  %v383 = vmul.f32 %v301, %v370
  %v384 = vmul.f32 %v302, %v375
  %385 = vst.msk [vmem:[%s8] sm:$0xff] %vm253, %v377
  %386 = vst.msk [vmem:[%s8 + $0x8] sm:$0xff] %vm253, %v378
  %387 = vst.msk [vmem:[%s8 + $0x10] sm:$0xff] %vm253, %v379
  %388 = vst.msk [vmem:[%s8 + $0x18] sm:$0xff] %vm253, %v380
  %389 = vst.msk [vmem:[%s8 + $0x20] sm:$0xff] %vm253, %v381
  %390 = vst.msk [vmem:[%s8 + $0x28] sm:$0xff] %vm253, %v382
  %391 = vst.msk [vmem:[%s8 + $0x30] sm:$0xff] %vm253, %v383
  %392 = vst.msk [vmem:[%s8 + $0x38] sm:$0xff] %vm253, %v384
  // Predicated region
  $region34: #{encoder_forward.5} parent=0 // pred_check
    _
  $region35: #{encoder_forward.5} parent=0 // pred_check_branch
    %394 = sbr.rel (0) target = $region37
  $region36: #{encoder_forward.5} parent=0 // pred_region
    _
  $region37: #{encoder_forward.5} parent=0 // pred_fallthru
    _
  // Predicated region
  $region38: #{encoder_forward.5} parent=0 // pred_check
    _
  $region39: #{encoder_forward.5} parent=0 // pred_check_branch
    %396 = sbr.rel (0) target = $region41
  $region40: #{encoder_forward.5} parent=0 // pred_region
    _
  $region41: #{encoder_forward.5} parent=0 // pred_fallthru
    _

// kernel: encoder_forward.3
$region0: #{encoder_forward.3}
  #allocation0 [shape = 'u32[]', space=smem, size = 0x4, offset = 0x4, fixed_abs, tag = 'smem constant byte address 0x4 - core index']
  #allocation1 [shape = 'u32[72,128]{1,0:T(1,128)}', space=vmem, size = 0x9000, scoped, tag = 'internal scratch']
  #allocation2 [shape = 'f32[8,32]{1,0:T(8,128)}', space=vmem, size = 0x1000, scoped, tag = 'scratch operand']
  #allocation3 [shape = 'f32[8,32]{1,0:T(8,128)}', space=vmem, size = 0x1000, scoped, tag = 'scratch operand']
  #allocation4 [shape = 'f32[8,32]{1,0:T(8,128)}', space=vmem, size = 0x1000, scoped, tag = 'scratch operand']
  #allocation5 [shape = 'f32[8,32]{1,0:T(8,128)}', space=vmem, size = 0x1000, scoped, tag = 'scratch operand']
  %s0 = inlined_call_operand.vmem [shape: bf16[8,8,128], index: 0, kind: input, shape index: {}]
  %s1 = inlined_call_operand.vmem [shape: bf16[8,8,128], index: 1, kind: input, shape index: {}]
  %s2 = inlined_call_operand.vmem [shape: bf16[32,128], index: 2, kind: input, shape index: {}]
  %s3 = inlined_call_operand.vmem [shape: bf16[32,128], index: 3, kind: input, shape index: {}]
  %s4 = inlined_call_operand.vmem [shape: s32[8,1], index: 4, kind: input, shape index: {}]
  %s5 = inlined_call_operand.vmem [shape: bf16[8,8,32], index: 5, kind: output, shape index: {0}]
  %s6 = inlined_call_operand.vmem [shape: bf16[8,8,32], index: 6, kind: output, shape index: {1}]
  %7 = xla_tuple %s5, %s6
  %s8 = sld [smem:[#allocation0]]
  $region42: #{encoder_forward.3} parent=0
    _
  %s10 = ssub.s32 1, %s8
  %s11 = scalar_select 0, %s10, %s8
  // Predicated region
  $region2: #{encoder_forward.3} parent=0 // pred_check
    _
  $region3: #{encoder_forward.3} parent=0 // pred_check_branch
    %13 = sbr.rel (0) target = $region5
  $region4: #{encoder_forward.3} parent=0 // pred_region
    _
  $region5: #{encoder_forward.3} parent=0 // pred_fallthru
    _
  // Predicated region
  $region6: #{encoder_forward.3} parent=0 // pred_check
    _
  $region7: #{encoder_forward.3} parent=0 // pred_check_branch
    %15 = sbr.rel (0) target = $region9
  $region8: #{encoder_forward.3} parent=0 // pred_region
    %s16 = ssub.s32 0, 0
    %s17 = smul.u32 8, %s16
    %p18 = scmp.lt.s32.totalorder %s17, 7
    %s19 = scalar_select %p18, %s17, 7
    %s20 = smul.addr %s19, 4
    %s21 = scalar_lea.vmem %s1, %s20
    %s22 = ssub.s32 0, 0
    %s23 = smul.u32 8, %s22
  $region9: #{encoder_forward.3} parent=0 // pred_fallthru
    _
  // Predicated region
  $region10: #{encoder_forward.3} parent=0 // pred_check
    _
  $region11: #{encoder_forward.3} parent=0 // pred_check_branch
    %25 = sbr.rel (0) target = $region13
  $region12: #{encoder_forward.3} parent=0 // pred_region
    _
  $region13: #{encoder_forward.3} parent=0 // pred_fallthru
    _
  // Predicated region
  $region14: #{encoder_forward.3} parent=0 // pred_check
    _
  $region15: #{encoder_forward.3} parent=0 // pred_check_branch
    %27 = sbr.rel (0) target = $region17
  $region16: #{encoder_forward.3} parent=0 // pred_region
    _
  $region17: #{encoder_forward.3} parent=0 // pred_fallthru
    _
  // Predicated region
  $region18: #{encoder_forward.3} parent=0 // pred_check
    _
  $region19: #{encoder_forward.3} parent=0 // pred_check_branch
    %29 = sbr.rel (0) target = $region21
  $region20: #{encoder_forward.3} parent=0 // pred_region
    _
  $region21: #{encoder_forward.3} parent=0 // pred_fallthru
    _
  %s30 = ssub.s32 0, 0
  %s31 = smul.u32 8, %s30
  %p32 = scmp.lt.s32.totalorder %s31, 7
  %s33 = scalar_select %p32, %s31, 7
  %s34 = smul.addr %s33, 4
  %s35 = scalar_lea.vmem %s1, %s34
  %s36 = ssub.s32 0, 0
  %s37 = smul.u32 8, %s36
  %p38 = scmp.lt.s32.totalorder %s37, 7
  %s39 = scalar_select %p38, %s37, 7
  %s40 = smul.addr %s39, 4
  %s41 = scalar_lea.vmem %s6, %s40
  %s42 = ssub.s32 0, 0
  %s43 = smul.u32 8, %s42
  %p44 = scmp.lt.s32.totalorder %s43, 7
  %s45 = scalar_select %p44, %s43, 7
  %s46 = smul.addr %s45, 4
  %s47 = scalar_lea.vmem %s1, %s46
  %s48 = ssub.s32 0, 0
  %s49 = smul.u32 8, %s48
  %s50 = ssub.s32 0, 0
  %s51 = smul.u32 8, %s50
  %p52 = scmp.lt.s32.totalorder %s51, 7
  %s53 = scalar_select %p52, %s51, 7
  %s54 = smul.addr %s53, 4
  %s55 = scalar_lea.vmem %s6, %s54
  %s56 = ssub.s32 0, 0
  %s57 = smul.u32 8, %s56
  %p59 = scmp.eq.s32.totalorder 0, 0
  // Predicated region
  $region22: #{encoder_forward.3} parent=0 // pred_check
    %p60 = pneg %p59
  $region23: #{encoder_forward.3} parent=0 // pred_check_branch
    %62 = sbr.rel (%p60) target = $region25
  $region24: #{encoder_forward.3} parent=0 // pred_region
    %vm63 = vcmask 261120
    %64 = vst.msk [vmem:[#allocation2] sm:$0xff] %vm63, 0.0
    %65 = vst.msk [vmem:[#allocation3] sm:$0xff] %vm63, 0.0
    %66 = vst.msk [vmem:[#allocation4] sm:$0xff] %vm63, 0.0
    %67 = vst.msk [vmem:[#allocation5] sm:$0xff] %vm63, 0.0
  $region25: #{encoder_forward.3} parent=0 // pred_fallthru
    _
  %v68 = vld [vmem:[%s4] sm:$0xff]
  %s69 = smul.u32 0, 8
  %v70 = vld [vmem:[%s2] sm:$0xf]
  %v71 = vld [vmem:[%s2 + $0x4] sm:$0xf]
  %v72 = vld [vmem:[%s2 + $0x8] sm:$0xf]
  %v73 = vld [vmem:[%s2 + $0xc] sm:$0xf]
  %v74 = vld [vmem:[%s3] sm:$0xf]
  %v75 = vld [vmem:[%s3 + $0x4] sm:$0xf]
  %v76 = vld [vmem:[%s3 + $0x8] sm:$0xf]
  %v77 = vld [vmem:[%s3 + $0xc] sm:$0xf]
  %v78 = vld [vmem:[#allocation2] sm:$0xff]
  %v79 = vld [vmem:[#allocation3] sm:$0xff]
  %v80 = vld [vmem:[#allocation4] sm:$0xff]
  %v81 = vld [vmem:[#allocation5] sm:$0xff]
  %v82 = vld [vmem:[%s0] sm:$0xf]
  %v83 = vunpack.c.l.bf16 %v82
  %v84 = vpack.c.bf16 %v78, %v78
  %v89 = vunpack.c.l.b16 %v70
  %v90 = vunpack.c.l.b16 %v71
  %v91 = vunpack.c.l.b16 %v72
  %v92 = vunpack.c.l.b16 %v73
  %v93 = vpack.c.b16 %v90, %v89
  %v94 = vpack.c.b16 %v92, %v91
  %vm97 = vcmask 261120
  %v99 = vsel %vm97, %v84, 0
  %101 = vmatpush.bf16.msra.mxu0 0
  %102 = vmatpush.bf16.msra.mxu0 0
  %103 = vmatpush.bf16.msra.mxu0 0
  %104 = vmatpush.bf16.msra.mxu0 0
  %105 = vmatpush.bf16.msra.mxu0 0
  %106 = vmatpush.bf16.msra.mxu0 0
  %107 = vmatpush.bf16.msra.mxu0 %v94
  %108 = vmatpush.bf16.msra.mxu0 %v93
  %109 = vmatmul.bf16.gmra.mxu0 %v99
  %v110 = vpop.f32.mrf.mxu0
  %v111 = vadd.f32 0.0, %v110
  %v112 = vpop.f32.mrf.mxu0
  %113 = vdwg.mxu0
  %v114 = vadd.f32 %v83, %v111
  %v115 = vstv %s69
  %vm116 = vcmp.gt.s32.totalorder %v68, %v115
  %v117 = vxor.u32 %v114, 2147483648
  %v118 = vmul.f32 %v117, 1.442695
  %v119 = vpow.pop %v118
  %v120 = vadd.f32 %v119, 1.0
  %v121 = vrcp.pop %v120
  %v122 = vmul.f32 %v120, %v121
  %v123 = vsub.f32 1.0, %v122
  %v124 = vmul.f32 %v121, %v123
  %v125 = vadd.f32 %v121, %v124
  %vm126 = vweird.f32 %v120
  %vm127 = vweird.f32 %v121
  %vm128 = vmor %vm126, %vm127
  %v129 = vsel %vm128, %v121, %v125
  %v130 = vand.u32 2147483647, %v120
  %vm131 = vcmp.eq.f32.partialorder %v130, 8.507059e+37
  %v132 = vand.u32 %v120, 2147483648
  %v133 = vor.u32 1.1754944e-38, %v132
  %v134 = vsel %vm131, %v133, %v129
  %v135 = vmul.f32 1.0, %v134
  %v136 = vtanh.pop %v114
  %138 = vrot.lane.b32.xlu0 %v79, 32
  %v139 = vpop.permute.xlu0 %138
  %v141 = vmul.f32 %v135, %v139
  %143 = vrot.lane.b32.xlu0 %v136, 64
  %v144 = vpop.permute.xlu0 %143
  %v146 = vmul.f32 %v135, %v144
  %148 = vrot.lane.b32.xlu0 %v146, 32
  %v149 = vpop.permute.xlu0 %148
  %v151 = vadd.f32 %v141, %v149
  %v152 = vtanh.pop %v151
  %154 = vrot.lane.b32.xlu0 %v152, 64
  %v155 = vpop.permute.xlu0 %154
  %v157 = vmul.f32 %v135, %v155
  %v158 = vsel %vm116, 1, 0
  %159 = vset.pattern.permute.xlu0 0
  %160 = vperm.xlu0 %159, %v158
  %v161 = vpop.permute.xlu0 %160
  %vm162 = vcmp.eq.s32.totalorder %v161, 1
  %164 = vrot.lane.b32.xlu0 %v78, 96
  %v165 = vpop.permute.xlu0 %164
  %v167 = vsel %vm162, %v157, %v165
  %v168 = vsel %vm162, %v151, %v139
  %v169 = vsel %vm162, %v157, 0.0
  %v170 = vpack.c.bf16 %v169, %v169
  %172 = vrot.lane.b32.xlu0 %v170, 32
  %v173 = vpop.permute.xlu0 %172
  %vm175 = vcmask 257024
  %176 = vst.msk [vmem:[%s5] sm:$0xf] %vm175, %v173
  %s177 = scalar_lea.vmem %s47, 28
  %v178 = vld [vmem:[%s177] sm:$0xf]
  %v179 = vunpack.c.l.bf16 %v178
  %v180 = vpack.c.bf16 %v80, %v80
  %v185 = vunpack.c.l.b16 %v74
  %v186 = vunpack.c.l.b16 %v75
  %v187 = vunpack.c.l.b16 %v76
  %v188 = vunpack.c.l.b16 %v77
  %v189 = vpack.c.b16 %v186, %v185
  %v190 = vpack.c.b16 %v188, %v187
  %v194 = vsel %vm97, %v180, 0
  %196 = vmatpush.bf16.msra.mxu0 0
  %197 = vmatpush.bf16.msra.mxu0 0
  %198 = vmatpush.bf16.msra.mxu0 0
  %199 = vmatpush.bf16.msra.mxu0 0
  %200 = vmatpush.bf16.msra.mxu0 0
  %201 = vmatpush.bf16.msra.mxu0 0
  %202 = vmatpush.bf16.msra.mxu0 %v190
  %203 = vmatpush.bf16.msra.mxu0 %v189
  %204 = vmatmul.bf16.gmra.mxu0 %v194
  %v205 = vpop.f32.mrf.mxu0
  %v206 = vadd.f32 0.0, %v205
  %v207 = vpop.f32.mrf.mxu0
  %208 = vdwg.mxu0
  %v209 = vadd.f32 %v179, %v206
  %s210 = ssub.s32 7, %s69
  %v211 = vstv %s210
  %vm212 = vcmp.gt.s32.totalorder %v68, %v211
  %v213 = vxor.u32 %v209, 2147483648
  %v214 = vmul.f32 %v213, 1.442695
  %v215 = vpow.pop %v214
  %v216 = vadd.f32 %v215, 1.0
  %v217 = vrcp.pop %v216
  %v218 = vmul.f32 %v216, %v217
  %v219 = vsub.f32 1.0, %v218
  %v220 = vmul.f32 %v217, %v219
  %v221 = vadd.f32 %v217, %v220
  %vm222 = vweird.f32 %v216
  %vm223 = vweird.f32 %v217
  %vm224 = vmor %vm222, %vm223
  %v225 = vsel %vm224, %v217, %v221
  %v226 = vand.u32 2147483647, %v216
  %vm227 = vcmp.eq.f32.partialorder %v226, 8.507059e+37
  %v228 = vand.u32 %v216, 2147483648
  %v229 = vor.u32 1.1754944e-38, %v228
  %v230 = vsel %vm227, %v229, %v225
  %v231 = vmul.f32 1.0, %v230
  %v232 = vtanh.pop %v209
  %234 = vrot.lane.b32.xlu0 %v81, 32
  %v235 = vpop.permute.xlu0 %234
  %v237 = vmul.f32 %v231, %v235
  %239 = vrot.lane.b32.xlu0 %v232, 64
  %v240 = vpop.permute.xlu0 %239
  %v242 = vmul.f32 %v231, %v240
  %244 = vrot.lane.b32.xlu0 %v242, 32
  %v245 = vpop.permute.xlu0 %244
  %v247 = vadd.f32 %v237, %v245
  %v248 = vtanh.pop %v247
  %250 = vrot.lane.b32.xlu0 %v248, 64
  %v251 = vpop.permute.xlu0 %250
  %v253 = vmul.f32 %v231, %v251
  %v254 = vsel %vm212, 1, 0
  %255 = vset.pattern.permute.xlu0 0
  %256 = vperm.xlu0 %255, %v254
  %v257 = vpop.permute.xlu0 %256
  %vm258 = vcmp.eq.s32.totalorder %v257, 1
  %260 = vrot.lane.b32.xlu0 %v80, 96
  %v261 = vpop.permute.xlu0 %260
  %v263 = vsel %vm258, %v253, %v261
  %v264 = vsel %vm258, %v247, %v235
  %v265 = vsel %vm258, %v253, 0.0
  %v266 = vpack.c.bf16 %v265, %v265
  %268 = vrot.lane.b32.xlu0 %v266, 32
  %v269 = vpop.permute.xlu0 %268
  %s271 = scalar_lea.vmem %s55, 28
  %272 = vst.msk [vmem:[%s271] sm:$0xf] %vm175, %v269
  %s273 = scalar_lea.vmem %s0, 4
  %v274 = vld [vmem:[%s273] sm:$0xf]
  %v275 = vunpack.c.l.bf16 %v274
  %v276 = vpack.c.bf16 %v167, %v167
  %278 = vrot.lane.b32.xlu0 %v276, 32
  %v279 = vpop.permute.xlu0 %278
  %v281 = vsel %vm97, %v279, 0
  %283 = vmatpush.bf16.msra.mxu0 0
  %284 = vmatpush.bf16.msra.mxu0 0
  %285 = vmatpush.bf16.msra.mxu0 0
  %286 = vmatpush.bf16.msra.mxu0 0
  %287 = vmatpush.bf16.msra.mxu0 0
  %288 = vmatpush.bf16.msra.mxu0 0
  %289 = vmatpush.bf16.msra.mxu0 %v94
  %290 = vmatpush.bf16.msra.mxu0 %v93
  %291 = vmatmul.bf16.gmra.mxu0 %v281
  %v292 = vpop.f32.mrf.mxu0
  %v293 = vadd.f32 0.0, %v292
  %v294 = vpop.f32.mrf.mxu0
  %295 = vdwg.mxu0
  %v296 = vadd.f32 %v275, %v293
  %s297 = sadd.s32 %s69, 1
  %v298 = vstv %s297
  %vm299 = vcmp.gt.s32.totalorder %v68, %v298
  %v300 = vxor.u32 %v296, 2147483648
  %v301 = vmul.f32 %v300, 1.442695
  %v302 = vpow.pop %v301
  %v303 = vadd.f32 %v302, 1.0
  %v304 = vrcp.pop %v303
  %v305 = vmul.f32 %v303, %v304
  %v306 = vsub.f32 1.0, %v305
  %v307 = vmul.f32 %v304, %v306
  %v308 = vadd.f32 %v304, %v307
  %vm309 = vweird.f32 %v303
  %vm310 = vweird.f32 %v304
  %vm311 = vmor %vm309, %vm310
  %v312 = vsel %vm311, %v304, %v308
  %v313 = vand.u32 2147483647, %v303
  %vm314 = vcmp.eq.f32.partialorder %v313, 8.507059e+37
  %v315 = vand.u32 %v303, 2147483648
  %v316 = vor.u32 1.1754944e-38, %v315
  %v317 = vsel %vm314, %v316, %v312
  %v318 = vmul.f32 1.0, %v317
  %v319 = vtanh.pop %v296
  %v320 = vmul.f32 %v318, %v168
  %322 = vrot.lane.b32.xlu0 %v319, 64
  %v323 = vpop.permute.xlu0 %322
  %v325 = vmul.f32 %v318, %v323
  %327 = vrot.lane.b32.xlu0 %v325, 32
  %v328 = vpop.permute.xlu0 %327
  %v330 = vadd.f32 %v320, %v328
  %v331 = vtanh.pop %v330
  %333 = vrot.lane.b32.xlu0 %v331, 64
  %v334 = vpop.permute.xlu0 %333
  %v336 = vmul.f32 %v318, %v334
  %v337 = vsel %vm299, 1, 0
  %338 = vset.pattern.permute.xlu0 0
  %339 = vperm.xlu0 %338, %v337
  %v340 = vpop.permute.xlu0 %339
  %vm341 = vcmp.eq.s32.totalorder %v340, 1
  %v342 = vsel %vm341, %v336, %v167
  %v343 = vsel %vm341, %v330, %v168
  %v344 = vsel %vm341, %v336, 0.0
  %v345 = vpack.c.bf16 %v344, %v344
  %347 = vrot.lane.b32.xlu0 %v345, 32
  %v348 = vpop.permute.xlu0 %347
  %s350 = scalar_lea.vmem %s5, 4
  %351 = vst.msk [vmem:[%s350] sm:$0xf] %vm175, %v348
  %s352 = scalar_lea.vmem %s47, 24
  %v353 = vld [vmem:[%s352] sm:$0xf]
  %v354 = vunpack.c.l.bf16 %v353
  %v355 = vpack.c.bf16 %v263, %v263
  %357 = vrot.lane.b32.xlu0 %v355, 32
  %v358 = vpop.permute.xlu0 %357
  %v360 = vsel %vm97, %v358, 0
  %362 = vmatpush.bf16.msra.mxu0 0
  %363 = vmatpush.bf16.msra.mxu0 0
  %364 = vmatpush.bf16.msra.mxu0 0
  %365 = vmatpush.bf16.msra.mxu0 0
  %366 = vmatpush.bf16.msra.mxu0 0
  %367 = vmatpush.bf16.msra.mxu0 0
  %368 = vmatpush.bf16.msra.mxu0 %v190
  %369 = vmatpush.bf16.msra.mxu0 %v189
  %370 = vmatmul.bf16.gmra.mxu0 %v360
  %v371 = vpop.f32.mrf.mxu0
  %v372 = vadd.f32 0.0, %v371
  %v373 = vpop.f32.mrf.mxu0
  %374 = vdwg.mxu0
  %v375 = vadd.f32 %v354, %v372
  %s376 = ssub.s32 6, %s69
  %v377 = vstv %s376
  %vm378 = vcmp.gt.s32.totalorder %v68, %v377
  %v379 = vxor.u32 %v375, 2147483648
  %v380 = vmul.f32 %v379, 1.442695
  %v381 = vpow.pop %v380
  %v382 = vadd.f32 %v381, 1.0
  %v383 = vrcp.pop %v382
  %v384 = vmul.f32 %v382, %v383
  %v385 = vsub.f32 1.0, %v384
  %v386 = vmul.f32 %v383, %v385
  %v387 = vadd.f32 %v383, %v386
  %vm388 = vweird.f32 %v382
  %vm389 = vweird.f32 %v383
  %vm390 = vmor %vm388, %vm389
  %v391 = vsel %vm390, %v383, %v387
  %v392 = vand.u32 2147483647, %v382
  %vm393 = vcmp.eq.f32.partialorder %v392, 8.507059e+37
  %v394 = vand.u32 %v382, 2147483648
  %v395 = vor.u32 1.1754944e-38, %v394
  %v396 = vsel %vm393, %v395, %v391
  %v397 = vmul.f32 1.0, %v396
  %v398 = vtanh.pop %v375
  %v399 = vmul.f32 %v397, %v264
  %401 = vrot.lane.b32.xlu0 %v398, 64
  %v402 = vpop.permute.xlu0 %401
  %v404 = vmul.f32 %v397, %v402
  %406 = vrot.lane.b32.xlu0 %v404, 32
  %v407 = vpop.permute.xlu0 %406
  %v409 = vadd.f32 %v399, %v407
  %v410 = vtanh.pop %v409
  %412 = vrot.lane.b32.xlu0 %v410, 64
  %v413 = vpop.permute.xlu0 %412
  %v415 = vmul.f32 %v397, %v413
  %v416 = vsel %vm378, 1, 0
  %417 = vset.pattern.permute.xlu0 0
  %418 = vperm.xlu0 %417, %v416
  %v419 = vpop.permute.xlu0 %418
  %vm420 = vcmp.eq.s32.totalorder %v419, 1
  %v421 = vsel %vm420, %v415, %v263
  %v422 = vsel %vm420, %v409, %v264
  %v423 = vsel %vm420, %v415, 0.0
  %v424 = vpack.c.bf16 %v423, %v423
  %426 = vrot.lane.b32.xlu0 %v424, 32
  %v427 = vpop.permute.xlu0 %426
  %s429 = scalar_lea.vmem %s55, 24
  %430 = vst.msk [vmem:[%s429] sm:$0xf] %vm175, %v427
  %s431 = scalar_lea.vmem %s0, 8
  %v432 = vld [vmem:[%s431] sm:$0xf]
  %v433 = vunpack.c.l.bf16 %v432
  %v434 = vpack.c.bf16 %v342, %v342
  %436 = vrot.lane.b32.xlu0 %v434, 32
  %v437 = vpop.permute.xlu0 %436
  %v439 = vsel %vm97, %v437, 0
  %441 = vmatpush.bf16.msra.mxu0 0
  %442 = vmatpush.bf16.msra.mxu0 0
  %443 = vmatpush.bf16.msra.mxu0 0
  %444 = vmatpush.bf16.msra.mxu0 0
  %445 = vmatpush.bf16.msra.mxu0 0
  %446 = vmatpush.bf16.msra.mxu0 0
  %447 = vmatpush.bf16.msra.mxu0 %v94
  %448 = vmatpush.bf16.msra.mxu0 %v93
  %449 = vmatmul.bf16.gmra.mxu0 %v439
  %v450 = vpop.f32.mrf.mxu0
  %v451 = vadd.f32 0.0, %v450
  %v452 = vpop.f32.mrf.mxu0
  %453 = vdwg.mxu0
  %v454 = vadd.f32 %v433, %v451
  %s455 = sadd.s32 %s69, 2
  %v456 = vstv %s455
  %vm457 = vcmp.gt.s32.totalorder %v68, %v456
  %v458 = vxor.u32 %v454, 2147483648
  %v459 = vmul.f32 %v458, 1.442695
  %v460 = vpow.pop %v459
  %v461 = vadd.f32 %v460, 1.0
  %v462 = vrcp.pop %v461
  %v463 = vmul.f32 %v461, %v462
  %v464 = vsub.f32 1.0, %v463
  %v465 = vmul.f32 %v462, %v464
  %v466 = vadd.f32 %v462, %v465
  %vm467 = vweird.f32 %v461
  %vm468 = vweird.f32 %v462
  %vm469 = vmor %vm467, %vm468
  %v470 = vsel %vm469, %v462, %v466
  %v471 = vand.u32 2147483647, %v461
  %vm472 = vcmp.eq.f32.partialorder %v471, 8.507059e+37
  %v473 = vand.u32 %v461, 2147483648
  %v474 = vor.u32 1.1754944e-38, %v473
  %v475 = vsel %vm472, %v474, %v470
  %v476 = vmul.f32 1.0, %v475
  %v477 = vtanh.pop %v454
  %v478 = vmul.f32 %v476, %v343
  %480 = vrot.lane.b32.xlu0 %v477, 64
  %v481 = vpop.permute.xlu0 %480
  %v483 = vmul.f32 %v476, %v481
  %485 = vrot.lane.b32.xlu0 %v483, 32
  %v486 = vpop.permute.xlu0 %485
  %v488 = vadd.f32 %v478, %v486
  %v489 = vtanh.pop %v488
  %491 = vrot.lane.b32.xlu0 %v489, 64
  %v492 = vpop.permute.xlu0 %491
  %v494 = vmul.f32 %v476, %v492
  %v495 = vsel %vm457, 1, 0
  %496 = vset.pattern.permute.xlu0 0
  %497 = vperm.xlu0 %496, %v495
  %v498 = vpop.permute.xlu0 %497
  %vm499 = vcmp.eq.s32.totalorder %v498, 1
  %v500 = vsel %vm499, %v494, %v342
  %v501 = vsel %vm499, %v488, %v343
  %v502 = vsel %vm499, %v494, 0.0
  %v503 = vpack.c.bf16 %v502, %v502
  %505 = vrot.lane.b32.xlu0 %v503, 32
  %v506 = vpop.permute.xlu0 %505
  %s508 = scalar_lea.vmem %s5, 8
  %509 = vst.msk [vmem:[%s508] sm:$0xf] %vm175, %v506
  %s510 = scalar_lea.vmem %s47, 20
  %v511 = vld [vmem:[%s510] sm:$0xf]
  %v512 = vunpack.c.l.bf16 %v511
  %v513 = vpack.c.bf16 %v421, %v421
  %515 = vrot.lane.b32.xlu0 %v513, 32
  %v516 = vpop.permute.xlu0 %515
  %v518 = vsel %vm97, %v516, 0
  %520 = vmatpush.bf16.msra.mxu0 0
  %521 = vmatpush.bf16.msra.mxu0 0
  %522 = vmatpush.bf16.msra.mxu0 0
  %523 = vmatpush.bf16.msra.mxu0 0
  %524 = vmatpush.bf16.msra.mxu0 0
  %525 = vmatpush.bf16.msra.mxu0 0
  %526 = vmatpush.bf16.msra.mxu0 %v190
  %527 = vmatpush.bf16.msra.mxu0 %v189
  %528 = vmatmul.bf16.gmra.mxu0 %v518
  %v529 = vpop.f32.mrf.mxu0
  %v530 = vadd.f32 0.0, %v529
  %v531 = vpop.f32.mrf.mxu0
  %532 = vdwg.mxu0
  %v533 = vadd.f32 %v512, %v530
  %s534 = ssub.s32 5, %s69
  %v535 = vstv %s534
  %vm536 = vcmp.gt.s32.totalorder %v68, %v535
  %v537 = vxor.u32 %v533, 2147483648
  %v538 = vmul.f32 %v537, 1.442695
  %v539 = vpow.pop %v538
  %v540 = vadd.f32 %v539, 1.0
  %v541 = vrcp.pop %v540
  %v542 = vmul.f32 %v540, %v541
  %v543 = vsub.f32 1.0, %v542
  %v544 = vmul.f32 %v541, %v543
  %v545 = vadd.f32 %v541, %v544
  %vm546 = vweird.f32 %v540
  %vm547 = vweird.f32 %v541
  %vm548 = vmor %vm546, %vm547
  %v549 = vsel %vm548, %v541, %v545
  %v550 = vand.u32 2147483647, %v540
  %vm551 = vcmp.eq.f32.partialorder %v550, 8.507059e+37
  %v552 = vand.u32 %v540, 2147483648
  %v553 = vor.u32 1.1754944e-38, %v552
  %v554 = vsel %vm551, %v553, %v549
  %v555 = vmul.f32 1.0, %v554
  %v556 = vtanh.pop %v533
  %v557 = vmul.f32 %v555, %v422
  %559 = vrot.lane.b32.xlu0 %v556, 64
  %v560 = vpop.permute.xlu0 %559
  %v562 = vmul.f32 %v555, %v560
  %564 = vrot.lane.b32.xlu0 %v562, 32
  %v565 = vpop.permute.xlu0 %564
  %v567 = vadd.f32 %v557, %v565
  %v568 = vtanh.pop %v567
  %570 = vrot.lane.b32.xlu0 %v568, 64
  %v571 = vpop.permute.xlu0 %570
  %v573 = vmul.f32 %v555, %v571
  %v574 = vsel %vm536, 1, 0
  %575 = vset.pattern.permute.xlu0 0
  %576 = vperm.xlu0 %575, %v574
  %v577 = vpop.permute.xlu0 %576
  %vm578 = vcmp.eq.s32.totalorder %v577, 1
  %v579 = vsel %vm578, %v573, %v421
  %v580 = vsel %vm578, %v567, %v422
  %v581 = vsel %vm578, %v573, 0.0
  %v582 = vpack.c.bf16 %v581, %v581
  %584 = vrot.lane.b32.xlu0 %v582, 32
  %v585 = vpop.permute.xlu0 %584
  %s587 = scalar_lea.vmem %s55, 20
  %588 = vst.msk [vmem:[%s587] sm:$0xf] %vm175, %v585
  %s589 = scalar_lea.vmem %s0, 12
  %v590 = vld [vmem:[%s589] sm:$0xf]
  %v591 = vunpack.c.l.bf16 %v590
  %v592 = vpack.c.bf16 %v500, %v500
  %594 = vrot.lane.b32.xlu0 %v592, 32
  %v595 = vpop.permute.xlu0 %594
  %v597 = vsel %vm97, %v595, 0
  %599 = vmatpush.bf16.msra.mxu0 0
  %600 = vmatpush.bf16.msra.mxu0 0
  %601 = vmatpush.bf16.msra.mxu0 0
  %602 = vmatpush.bf16.msra.mxu0 0
  %603 = vmatpush.bf16.msra.mxu0 0
  %604 = vmatpush.bf16.msra.mxu0 0
  %605 = vmatpush.bf16.msra.mxu0 %v94
  %606 = vmatpush.bf16.msra.mxu0 %v93
  %607 = vmatmul.bf16.gmra.mxu0 %v597
  %v608 = vpop.f32.mrf.mxu0
  %v609 = vadd.f32 0.0, %v608
  %v610 = vpop.f32.mrf.mxu0
  %611 = vdwg.mxu0
  %v612 = vadd.f32 %v591, %v609
  %s613 = sadd.s32 %s69, 3
  %v614 = vstv %s613
  %vm615 = vcmp.gt.s32.totalorder %v68, %v614
  %v616 = vxor.u32 %v612, 2147483648
  %v617 = vmul.f32 %v616, 1.442695
  %v618 = vpow.pop %v617
  %v619 = vadd.f32 %v618, 1.0
  %v620 = vrcp.pop %v619
  %v621 = vmul.f32 %v619, %v620
  %v622 = vsub.f32 1.0, %v621
  %v623 = vmul.f32 %v620, %v622
  %v624 = vadd.f32 %v620, %v623
  %vm625 = vweird.f32 %v619
  %vm626 = vweird.f32 %v620
  %vm627 = vmor %vm625, %vm626
  %v628 = vsel %vm627, %v620, %v624
  %v629 = vand.u32 2147483647, %v619
  %vm630 = vcmp.eq.f32.partialorder %v629, 8.507059e+37
  %v631 = vand.u32 %v619, 2147483648
  %v632 = vor.u32 1.1754944e-38, %v631
  %v633 = vsel %vm630, %v632, %v628
  %v634 = vmul.f32 1.0, %v633
  %v635 = vtanh.pop %v612
  %v636 = vmul.f32 %v634, %v501
  %638 = vrot.lane.b32.xlu0 %v635, 64
  %v639 = vpop.permute.xlu0 %638
  %v641 = vmul.f32 %v634, %v639
  %643 = vrot.lane.b32.xlu0 %v641, 32
  %v644 = vpop.permute.xlu0 %643
  %v646 = vadd.f32 %v636, %v644
  %v647 = vtanh.pop %v646
  %649 = vrot.lane.b32.xlu0 %v647, 64
  %v650 = vpop.permute.xlu0 %649
  %v652 = vmul.f32 %v634, %v650
  %v653 = vsel %vm615, 1, 0
  %654 = vset.pattern.permute.xlu0 0
  %655 = vperm.xlu0 %654, %v653
  %v656 = vpop.permute.xlu0 %655
  %vm657 = vcmp.eq.s32.totalorder %v656, 1
  %v658 = vsel %vm657, %v652, %v500
  %v659 = vsel %vm657, %v646, %v501
  %v660 = vsel %vm657, %v652, 0.0
  %v661 = vpack.c.bf16 %v660, %v660
  %663 = vrot.lane.b32.xlu0 %v661, 32
  %v664 = vpop.permute.xlu0 %663
  %s666 = scalar_lea.vmem %s5, 12
  %667 = vst.msk [vmem:[%s666] sm:$0xf] %vm175, %v664
  %s668 = scalar_lea.vmem %s47, 16
  %v669 = vld [vmem:[%s668] sm:$0xf]
  %v670 = vunpack.c.l.bf16 %v669
  %v671 = vpack.c.bf16 %v579, %v579
  %673 = vrot.lane.b32.xlu0 %v671, 32
  %v674 = vpop.permute.xlu0 %673
  %v676 = vsel %vm97, %v674, 0
  %678 = vmatpush.bf16.msra.mxu0 0
  %679 = vmatpush.bf16.msra.mxu0 0
  %680 = vmatpush.bf16.msra.mxu0 0
  %681 = vmatpush.bf16.msra.mxu0 0
  %682 = vmatpush.bf16.msra.mxu0 0
  %683 = vmatpush.bf16.msra.mxu0 0
  %684 = vmatpush.bf16.msra.mxu0 %v190
  %685 = vmatpush.bf16.msra.mxu0 %v189
  %686 = vmatmul.bf16.gmra.mxu0 %v676
  %v687 = vpop.f32.mrf.mxu0
  %v688 = vadd.f32 0.0, %v687
  %v689 = vpop.f32.mrf.mxu0
  %690 = vdwg.mxu0
  %v691 = vadd.f32 %v670, %v688
  %s692 = ssub.s32 4, %s69
  %v693 = vstv %s692
  %vm694 = vcmp.gt.s32.totalorder %v68, %v693
  %v695 = vxor.u32 %v691, 2147483648
  %v696 = vmul.f32 %v695, 1.442695
  %v697 = vpow.pop %v696
  %v698 = vadd.f32 %v697, 1.0
  %v699 = vrcp.pop %v698
  %v700 = vmul.f32 %v698, %v699
  %v701 = vsub.f32 1.0, %v700
  %v702 = vmul.f32 %v699, %v701
  %v703 = vadd.f32 %v699, %v702
  %vm704 = vweird.f32 %v698
  %vm705 = vweird.f32 %v699
  %vm706 = vmor %vm704, %vm705
  %v707 = vsel %vm706, %v699, %v703
  %v708 = vand.u32 2147483647, %v698
  %vm709 = vcmp.eq.f32.partialorder %v708, 8.507059e+37
  %v710 = vand.u32 %v698, 2147483648
  %v711 = vor.u32 1.1754944e-38, %v710
  %v712 = vsel %vm709, %v711, %v707
  %v713 = vmul.f32 1.0, %v712
  %v714 = vtanh.pop %v691
  %v715 = vmul.f32 %v713, %v580
  %717 = vrot.lane.b32.xlu0 %v714, 64
  %v718 = vpop.permute.xlu0 %717
  %v720 = vmul.f32 %v713, %v718
  %722 = vrot.lane.b32.xlu0 %v720, 32
  %v723 = vpop.permute.xlu0 %722
  %v725 = vadd.f32 %v715, %v723
  %v726 = vtanh.pop %v725
  %728 = vrot.lane.b32.xlu0 %v726, 64
  %v729 = vpop.permute.xlu0 %728
  %v731 = vmul.f32 %v713, %v729
  %v732 = vsel %vm694, 1, 0
  %733 = vset.pattern.permute.xlu0 0
  %734 = vperm.xlu0 %733, %v732
  %v735 = vpop.permute.xlu0 %734
  %vm736 = vcmp.eq.s32.totalorder %v735, 1
  %v737 = vsel %vm736, %v731, %v579
  %v738 = vsel %vm736, %v725, %v580
  %v739 = vsel %vm736, %v731, 0.0
  %v740 = vpack.c.bf16 %v739, %v739
  %742 = vrot.lane.b32.xlu0 %v740, 32
  %v743 = vpop.permute.xlu0 %742
  %s745 = scalar_lea.vmem %s55, 16
  %746 = vst.msk [vmem:[%s745] sm:$0xf] %vm175, %v743
  %s747 = scalar_lea.vmem %s0, 16
  %v748 = vld [vmem:[%s747] sm:$0xf]
  %v749 = vunpack.c.l.bf16 %v748
  %v750 = vpack.c.bf16 %v658, %v658
  %752 = vrot.lane.b32.xlu0 %v750, 32
  %v753 = vpop.permute.xlu0 %752
  %v755 = vsel %vm97, %v753, 0
  %757 = vmatpush.bf16.msra.mxu0 0
  %758 = vmatpush.bf16.msra.mxu0 0
  %759 = vmatpush.bf16.msra.mxu0 0
  %760 = vmatpush.bf16.msra.mxu0 0
  %761 = vmatpush.bf16.msra.mxu0 0
  %762 = vmatpush.bf16.msra.mxu0 0
  %763 = vmatpush.bf16.msra.mxu0 %v94
  %764 = vmatpush.bf16.msra.mxu0 %v93
  %765 = vmatmul.bf16.gmra.mxu0 %v755
  %v766 = vpop.f32.mrf.mxu0
  %v767 = vadd.f32 0.0, %v766
  %v768 = vpop.f32.mrf.mxu0
  %769 = vdwg.mxu0
  %v770 = vadd.f32 %v749, %v767
  %s771 = sadd.s32 %s69, 4
  %v772 = vstv %s771
  %vm773 = vcmp.gt.s32.totalorder %v68, %v772
  %v774 = vxor.u32 %v770, 2147483648
  %v775 = vmul.f32 %v774, 1.442695
  %v776 = vpow.pop %v775
  %v777 = vadd.f32 %v776, 1.0
  %v778 = vrcp.pop %v777
  %v779 = vmul.f32 %v777, %v778
  %v780 = vsub.f32 1.0, %v779
  %v781 = vmul.f32 %v778, %v780
  %v782 = vadd.f32 %v778, %v781
  %vm783 = vweird.f32 %v777
  %vm784 = vweird.f32 %v778
  %vm785 = vmor %vm783, %vm784
  %v786 = vsel %vm785, %v778, %v782
  %v787 = vand.u32 2147483647, %v777
  %vm788 = vcmp.eq.f32.partialorder %v787, 8.507059e+37
  %v789 = vand.u32 %v777, 2147483648
  %v790 = vor.u32 1.1754944e-38, %v789
  %v791 = vsel %vm788, %v790, %v786
  %v792 = vmul.f32 1.0, %v791
  %v793 = vtanh.pop %v770
  %v794 = vmul.f32 %v792, %v659
  %796 = vrot.lane.b32.xlu0 %v793, 64
  %v797 = vpop.permute.xlu0 %796
  %v799 = vmul.f32 %v792, %v797
  %801 = vrot.lane.b32.xlu0 %v799, 32
  %v802 = vpop.permute.xlu0 %801
  %v804 = vadd.f32 %v794, %v802
  %v805 = vtanh.pop %v804
  %807 = vrot.lane.b32.xlu0 %v805, 64
  %v808 = vpop.permute.xlu0 %807
  %v810 = vmul.f32 %v792, %v808
  %v811 = vsel %vm773, 1, 0
  %812 = vset.pattern.permute.xlu0 0
  %813 = vperm.xlu0 %812, %v811
  %v814 = vpop.permute.xlu0 %813
  %vm815 = vcmp.eq.s32.totalorder %v814, 1
  %v816 = vsel %vm815, %v810, %v658
  %v817 = vsel %vm815, %v804, %v659
  %v818 = vsel %vm815, %v810, 0.0
  %v819 = vpack.c.bf16 %v818, %v818
  %821 = vrot.lane.b32.xlu0 %v819, 32
  %v822 = vpop.permute.xlu0 %821
  %s824 = scalar_lea.vmem %s5, 16
  %825 = vst.msk [vmem:[%s824] sm:$0xf] %vm175, %v822
  %s826 = scalar_lea.vmem %s47, 12
  %v827 = vld [vmem:[%s826] sm:$0xf]
  %v828 = vunpack.c.l.bf16 %v827
  %v829 = vpack.c.bf16 %v737, %v737
  %831 = vrot.lane.b32.xlu0 %v829, 32
  %v832 = vpop.permute.xlu0 %831
  %v834 = vsel %vm97, %v832, 0
  %836 = vmatpush.bf16.msra.mxu0 0
  %837 = vmatpush.bf16.msra.mxu0 0
  %838 = vmatpush.bf16.msra.mxu0 0
  %839 = vmatpush.bf16.msra.mxu0 0
  %840 = vmatpush.bf16.msra.mxu0 0
  %841 = vmatpush.bf16.msra.mxu0 0
  %842 = vmatpush.bf16.msra.mxu0 %v190
  %843 = vmatpush.bf16.msra.mxu0 %v189
  %844 = vmatmul.bf16.gmra.mxu0 %v834
  %v845 = vpop.f32.mrf.mxu0
  %v846 = vadd.f32 0.0, %v845
  %v847 = vpop.f32.mrf.mxu0
  %848 = vdwg.mxu0
  %v849 = vadd.f32 %v828, %v846
  %s850 = ssub.s32 3, %s69
  %v851 = vstv %s850
  %vm852 = vcmp.gt.s32.totalorder %v68, %v851
  %v853 = vxor.u32 %v849, 2147483648
  %v854 = vmul.f32 %v853, 1.442695
  %v855 = vpow.pop %v854
  %v856 = vadd.f32 %v855, 1.0
  %v857 = vrcp.pop %v856
  %v858 = vmul.f32 %v856, %v857
  %v859 = vsub.f32 1.0, %v858
  %v860 = vmul.f32 %v857, %v859
  %v861 = vadd.f32 %v857, %v860
  %vm862 = vweird.f32 %v856
  %vm863 = vweird.f32 %v857
  %vm864 = vmor %vm862, %vm863
  %v865 = vsel %vm864, %v857, %v861
  %v866 = vand.u32 2147483647, %v856
  %vm867 = vcmp.eq.f32.partialorder %v866, 8.507059e+37
  %v868 = vand.u32 %v856, 2147483648
  %v869 = vor.u32 1.1754944e-38, %v868
  %v870 = vsel %vm867, %v869, %v865
  %v871 = vmul.f32 1.0, %v870
  %v872 = vtanh.pop %v849
  %v873 = vmul.f32 %v871, %v738
  %875 = vrot.lane.b32.xlu0 %v872, 64
  %v876 = vpop.permute.xlu0 %875
  %v878 = vmul.f32 %v871, %v876
  %880 = vrot.lane.b32.xlu0 %v878, 32
  %v881 = vpop.permute.xlu0 %880
  %v883 = vadd.f32 %v873, %v881
  %v884 = vtanh.pop %v883
  %886 = vrot.lane.b32.xlu0 %v884, 64
  %v887 = vpop.permute.xlu0 %886
  %v889 = vmul.f32 %v871, %v887
  %v890 = vsel %vm852, 1, 0
  %891 = vset.pattern.permute.xlu0 0
  %892 = vperm.xlu0 %891, %v890
  %v893 = vpop.permute.xlu0 %892
  %vm894 = vcmp.eq.s32.totalorder %v893, 1
  %v895 = vsel %vm894, %v889, %v737
  %v896 = vsel %vm894, %v883, %v738
  %v897 = vsel %vm894, %v889, 0.0
  %v898 = vpack.c.bf16 %v897, %v897
  %900 = vrot.lane.b32.xlu0 %v898, 32
  %v901 = vpop.permute.xlu0 %900
  %s903 = scalar_lea.vmem %s55, 12
  %904 = vst.msk [vmem:[%s903] sm:$0xf] %vm175, %v901
  %s905 = scalar_lea.vmem %s0, 20
  %v906 = vld [vmem:[%s905] sm:$0xf]
  %v907 = vunpack.c.l.bf16 %v906
  %v908 = vpack.c.bf16 %v816, %v816
  %910 = vrot.lane.b32.xlu0 %v908, 32
  %v911 = vpop.permute.xlu0 %910
  %v913 = vsel %vm97, %v911, 0
  %915 = vmatpush.bf16.msra.mxu0 0
  %916 = vmatpush.bf16.msra.mxu0 0
  %917 = vmatpush.bf16.msra.mxu0 0
  %918 = vmatpush.bf16.msra.mxu0 0
  %919 = vmatpush.bf16.msra.mxu0 0
  %920 = vmatpush.bf16.msra.mxu0 0
  %921 = vmatpush.bf16.msra.mxu0 %v94
  %922 = vmatpush.bf16.msra.mxu0 %v93
  %923 = vmatmul.bf16.gmra.mxu0 %v913
  %v924 = vpop.f32.mrf.mxu0
  %v925 = vadd.f32 0.0, %v924
  %v926 = vpop.f32.mrf.mxu0
  %927 = vdwg.mxu0
  %v928 = vadd.f32 %v907, %v925
  %s929 = sadd.s32 %s69, 5
  %v930 = vstv %s929
  %vm931 = vcmp.gt.s32.totalorder %v68, %v930
  %v932 = vxor.u32 %v928, 2147483648
  %v933 = vmul.f32 %v932, 1.442695
  %v934 = vpow.pop %v933
  %v935 = vadd.f32 %v934, 1.0
  %v936 = vrcp.pop %v935
  %v937 = vmul.f32 %v935, %v936
  %v938 = vsub.f32 1.0, %v937
  %v939 = vmul.f32 %v936, %v938
  %v940 = vadd.f32 %v936, %v939
  %vm941 = vweird.f32 %v935
  %vm942 = vweird.f32 %v936
  %vm943 = vmor %vm941, %vm942
  %v944 = vsel %vm943, %v936, %v940
  %v945 = vand.u32 2147483647, %v935
  %vm946 = vcmp.eq.f32.partialorder %v945, 8.507059e+37
  %v947 = vand.u32 %v935, 2147483648
  %v948 = vor.u32 1.1754944e-38, %v947
  %v949 = vsel %vm946, %v948, %v944
  %v950 = vmul.f32 1.0, %v949
  %v951 = vtanh.pop %v928
  %v952 = vmul.f32 %v950, %v817
  %954 = vrot.lane.b32.xlu0 %v951, 64
  %v955 = vpop.permute.xlu0 %954
  %v957 = vmul.f32 %v950, %v955
  %959 = vrot.lane.b32.xlu0 %v957, 32
  %v960 = vpop.permute.xlu0 %959
  %v962 = vadd.f32 %v952, %v960
  %v963 = vtanh.pop %v962
  %965 = vrot.lane.b32.xlu0 %v963, 64
  %v966 = vpop.permute.xlu0 %965
  %v968 = vmul.f32 %v950, %v966
  %v969 = vsel %vm931, 1, 0
  %970 = vset.pattern.permute.xlu0 0
  %971 = vperm.xlu0 %970, %v969
  %v972 = vpop.permute.xlu0 %971
  %vm973 = vcmp.eq.s32.totalorder %v972, 1
  %v974 = vsel %vm973, %v968, %v816
  %v975 = vsel %vm973, %v962, %v817
  %v976 = vsel %vm973, %v968, 0.0
  %v977 = vpack.c.bf16 %v976, %v976
  %979 = vrot.lane.b32.xlu0 %v977, 32
  %v980 = vpop.permute.xlu0 %979
  %s982 = scalar_lea.vmem %s5, 20
  %983 = vst.msk [vmem:[%s982] sm:$0xf] %vm175, %v980
  %s984 = scalar_lea.vmem %s47, 8
  %v985 = vld [vmem:[%s984] sm:$0xf]
  %v986 = vunpack.c.l.bf16 %v985
  %v987 = vpack.c.bf16 %v895, %v895
  %989 = vrot.lane.b32.xlu0 %v987, 32
  %v990 = vpop.permute.xlu0 %989
  %v992 = vsel %vm97, %v990, 0
  %994 = vmatpush.bf16.msra.mxu0 0
  %995 = vmatpush.bf16.msra.mxu0 0
  %996 = vmatpush.bf16.msra.mxu0 0
  %997 = vmatpush.bf16.msra.mxu0 0
  %998 = vmatpush.bf16.msra.mxu0 0
  %999 = vmatpush.bf16.msra.mxu0 0
  %1000 = vmatpush.bf16.msra.mxu0 %v190
  %1001 = vmatpush.bf16.msra.mxu0 %v189
  %1002 = vmatmul.bf16.gmra.mxu0 %v992
  %v1003 = vpop.f32.mrf.mxu0
  %v1004 = vadd.f32 0.0, %v1003
  %v1005 = vpop.f32.mrf.mxu0
  %1006 = vdwg.mxu0
  %v1007 = vadd.f32 %v986, %v1004
  %s1008 = ssub.s32 2, %s69
  %v1009 = vstv %s1008
  %vm1010 = vcmp.gt.s32.totalorder %v68, %v1009
  %v1011 = vxor.u32 %v1007, 2147483648
  %v1012 = vmul.f32 %v1011, 1.442695
  %v1013 = vpow.pop %v1012
  %v1014 = vadd.f32 %v1013, 1.0
  %v1015 = vrcp.pop %v1014
  %v1016 = vmul.f32 %v1014, %v1015
  %v1017 = vsub.f32 1.0, %v1016
  %v1018 = vmul.f32 %v1015, %v1017
  %v1019 = vadd.f32 %v1015, %v1018
  %vm1020 = vweird.f32 %v1014
  %vm1021 = vweird.f32 %v1015
  %vm1022 = vmor %vm1020, %vm1021
  %v1023 = vsel %vm1022, %v1015, %v1019
  %v1024 = vand.u32 2147483647, %v1014
  %vm1025 = vcmp.eq.f32.partialorder %v1024, 8.507059e+37
  %v1026 = vand.u32 %v1014, 2147483648
  %v1027 = vor.u32 1.1754944e-38, %v1026
  %v1028 = vsel %vm1025, %v1027, %v1023
  %v1029 = vmul.f32 1.0, %v1028
  %v1030 = vtanh.pop %v1007
  %v1031 = vmul.f32 %v1029, %v896
  %1033 = vrot.lane.b32.xlu0 %v1030, 64
  %v1034 = vpop.permute.xlu0 %1033
  %v1036 = vmul.f32 %v1029, %v1034
  %1038 = vrot.lane.b32.xlu0 %v1036, 32
  %v1039 = vpop.permute.xlu0 %1038
  %v1041 = vadd.f32 %v1031, %v1039
  %v1042 = vtanh.pop %v1041
  %1044 = vrot.lane.b32.xlu0 %v1042, 64
  %v1045 = vpop.permute.xlu0 %1044
  %v1047 = vmul.f32 %v1029, %v1045
  %v1048 = vsel %vm1010, 1, 0
  %1049 = vset.pattern.permute.xlu0 0
  %1050 = vperm.xlu0 %1049, %v1048
  %v1051 = vpop.permute.xlu0 %1050
  %vm1052 = vcmp.eq.s32.totalorder %v1051, 1
  %v1053 = vsel %vm1052, %v1047, %v895
  %v1054 = vsel %vm1052, %v1041, %v896
  %v1055 = vsel %vm1052, %v1047, 0.0
  %v1056 = vpack.c.bf16 %v1055, %v1055
  %1058 = vrot.lane.b32.xlu0 %v1056, 32
  %v1059 = vpop.permute.xlu0 %1058
  %s1061 = scalar_lea.vmem %s55, 8
  %1062 = vst.msk [vmem:[%s1061] sm:$0xf] %vm175, %v1059
  %s1063 = scalar_lea.vmem %s0, 24
  %v1064 = vld [vmem:[%s1063] sm:$0xf]
  %v1065 = vunpack.c.l.bf16 %v1064
  %v1066 = vpack.c.bf16 %v974, %v974
  %1068 = vrot.lane.b32.xlu0 %v1066, 32
  %v1069 = vpop.permute.xlu0 %1068
  %v1071 = vsel %vm97, %v1069, 0
  %1073 = vmatpush.bf16.msra.mxu0 0
  %1074 = vmatpush.bf16.msra.mxu0 0
  %1075 = vmatpush.bf16.msra.mxu0 0
  %1076 = vmatpush.bf16.msra.mxu0 0
  %1077 = vmatpush.bf16.msra.mxu0 0
  %1078 = vmatpush.bf16.msra.mxu0 0
  %1079 = vmatpush.bf16.msra.mxu0 %v94
  %1080 = vmatpush.bf16.msra.mxu0 %v93
  %1081 = vmatmul.bf16.gmra.mxu0 %v1071
  %v1082 = vpop.f32.mrf.mxu0
  %v1083 = vadd.f32 0.0, %v1082
  %v1084 = vpop.f32.mrf.mxu0
  %1085 = vdwg.mxu0
  %v1086 = vadd.f32 %v1065, %v1083
  %s1087 = sadd.s32 %s69, 6
  %v1088 = vstv %s1087
  %vm1089 = vcmp.gt.s32.totalorder %v68, %v1088
  %v1090 = vxor.u32 %v1086, 2147483648
  %v1091 = vmul.f32 %v1090, 1.442695
  %v1092 = vpow.pop %v1091
  %v1093 = vadd.f32 %v1092, 1.0
  %v1094 = vrcp.pop %v1093
  %v1095 = vmul.f32 %v1093, %v1094
  %v1096 = vsub.f32 1.0, %v1095
  %v1097 = vmul.f32 %v1094, %v1096
  %v1098 = vadd.f32 %v1094, %v1097
  %vm1099 = vweird.f32 %v1093
  %vm1100 = vweird.f32 %v1094
  %vm1101 = vmor %vm1099, %vm1100
  %v1102 = vsel %vm1101, %v1094, %v1098
  %v1103 = vand.u32 2147483647, %v1093
  %vm1104 = vcmp.eq.f32.partialorder %v1103, 8.507059e+37
  %v1105 = vand.u32 %v1093, 2147483648
  %v1106 = vor.u32 1.1754944e-38, %v1105
  %v1107 = vsel %vm1104, %v1106, %v1102
  %v1108 = vmul.f32 1.0, %v1107
  %v1109 = vtanh.pop %v1086
  %v1110 = vmul.f32 %v1108, %v975
  %1112 = vrot.lane.b32.xlu0 %v1109, 64
  %v1113 = vpop.permute.xlu0 %1112
  %v1115 = vmul.f32 %v1108, %v1113
  %1117 = vrot.lane.b32.xlu0 %v1115, 32
  %v1118 = vpop.permute.xlu0 %1117
  %v1120 = vadd.f32 %v1110, %v1118
  %v1121 = vtanh.pop %v1120
  %1123 = vrot.lane.b32.xlu0 %v1121, 64
  %v1124 = vpop.permute.xlu0 %1123
  %v1126 = vmul.f32 %v1108, %v1124
  %v1127 = vsel %vm1089, 1, 0
  %1128 = vset.pattern.permute.xlu0 0
  %1129 = vperm.xlu0 %1128, %v1127
  %v1130 = vpop.permute.xlu0 %1129
  %vm1131 = vcmp.eq.s32.totalorder %v1130, 1
  %v1132 = vsel %vm1131, %v1126, %v974
  %v1133 = vsel %vm1131, %v1120, %v975
  %v1134 = vsel %vm1131, %v1126, 0.0
  %v1135 = vpack.c.bf16 %v1134, %v1134
  %1137 = vrot.lane.b32.xlu0 %v1135, 32
  %v1138 = vpop.permute.xlu0 %1137
  %s1140 = scalar_lea.vmem %s5, 24
  %1141 = vst.msk [vmem:[%s1140] sm:$0xf] %vm175, %v1138
  %s1142 = scalar_lea.vmem %s47, 4
  %v1143 = vld [vmem:[%s1142] sm:$0xf]
  %v1144 = vunpack.c.l.bf16 %v1143
  %v1145 = vpack.c.bf16 %v1053, %v1053
  %1147 = vrot.lane.b32.xlu0 %v1145, 32
  %v1148 = vpop.permute.xlu0 %1147
  %v1150 = vsel %vm97, %v1148, 0
  %1152 = vmatpush.bf16.msra.mxu0 0
  %1153 = vmatpush.bf16.msra.mxu0 0
  %1154 = vmatpush.bf16.msra.mxu0 0
  %1155 = vmatpush.bf16.msra.mxu0 0
  %1156 = vmatpush.bf16.msra.mxu0 0
  %1157 = vmatpush.bf16.msra.mxu0 0
  %1158 = vmatpush.bf16.msra.mxu0 %v190
  %1159 = vmatpush.bf16.msra.mxu0 %v189
  %1160 = vmatmul.bf16.gmra.mxu0 %v1150
  %v1161 = vpop.f32.mrf.mxu0
  %v1162 = vadd.f32 0.0, %v1161
  %v1163 = vpop.f32.mrf.mxu0
  %1164 = vdwg.mxu0
  %v1165 = vadd.f32 %v1144, %v1162
  %s1166 = ssub.s32 1, %s69
  %v1167 = vstv %s1166
  %vm1168 = vcmp.gt.s32.totalorder %v68, %v1167
  %v1169 = vxor.u32 %v1165, 2147483648
  %v1170 = vmul.f32 %v1169, 1.442695
  %v1171 = vpow.pop %v1170
  %v1172 = vadd.f32 %v1171, 1.0
  %v1173 = vrcp.pop %v1172
  %v1174 = vmul.f32 %v1172, %v1173
  %v1175 = vsub.f32 1.0, %v1174
  %v1176 = vmul.f32 %v1173, %v1175
  %v1177 = vadd.f32 %v1173, %v1176
  %vm1178 = vweird.f32 %v1172
  %vm1179 = vweird.f32 %v1173
  %vm1180 = vmor %vm1178, %vm1179
  %v1181 = vsel %vm1180, %v1173, %v1177
  %v1182 = vand.u32 2147483647, %v1172
  %vm1183 = vcmp.eq.f32.partialorder %v1182, 8.507059e+37
  %v1184 = vand.u32 %v1172, 2147483648
  %v1185 = vor.u32 1.1754944e-38, %v1184
  %v1186 = vsel %vm1183, %v1185, %v1181
  %v1187 = vmul.f32 1.0, %v1186
  %v1188 = vtanh.pop %v1165
  %v1189 = vmul.f32 %v1187, %v1054
  %1191 = vrot.lane.b32.xlu0 %v1188, 64
  %v1192 = vpop.permute.xlu0 %1191
  %v1194 = vmul.f32 %v1187, %v1192
  %1196 = vrot.lane.b32.xlu0 %v1194, 32
  %v1197 = vpop.permute.xlu0 %1196
  %v1199 = vadd.f32 %v1189, %v1197
  %v1200 = vtanh.pop %v1199
  %1202 = vrot.lane.b32.xlu0 %v1200, 64
  %v1203 = vpop.permute.xlu0 %1202
  %v1205 = vmul.f32 %v1187, %v1203
  %v1206 = vsel %vm1168, 1, 0
  %1207 = vset.pattern.permute.xlu0 0
  %1208 = vperm.xlu0 %1207, %v1206
  %v1209 = vpop.permute.xlu0 %1208
  %vm1210 = vcmp.eq.s32.totalorder %v1209, 1
  %v1211 = vsel %vm1210, %v1205, %v1053
  %v1212 = vsel %vm1210, %v1199, %v1054
  %v1213 = vsel %vm1210, %v1205, 0.0
  %v1214 = vpack.c.bf16 %v1213, %v1213
  %1216 = vrot.lane.b32.xlu0 %v1214, 32
  %v1217 = vpop.permute.xlu0 %1216
  %s1219 = scalar_lea.vmem %s55, 4
  %1220 = vst.msk [vmem:[%s1219] sm:$0xf] %vm175, %v1217
  %s1221 = scalar_lea.vmem %s0, 28
  %v1222 = vld [vmem:[%s1221] sm:$0xf]
  %v1223 = vunpack.c.l.bf16 %v1222
  %v1224 = vpack.c.bf16 %v1132, %v1132
  %1226 = vrot.lane.b32.xlu0 %v1224, 32
  %v1227 = vpop.permute.xlu0 %1226
  %v1229 = vsel %vm97, %v1227, 0
  %1231 = vmatpush.bf16.msra.mxu0 0
  %1232 = vmatpush.bf16.msra.mxu0 0
  %1233 = vmatpush.bf16.msra.mxu0 0
  %1234 = vmatpush.bf16.msra.mxu0 0
  %1235 = vmatpush.bf16.msra.mxu0 0
  %1236 = vmatpush.bf16.msra.mxu0 0
  %1237 = vmatpush.bf16.msra.mxu0 %v94
  %1238 = vmatpush.bf16.msra.mxu0 %v93
  %1239 = vmatmul.bf16.gmra.mxu0 %v1229
  %v1240 = vpop.f32.mrf.mxu0
  %v1241 = vadd.f32 0.0, %v1240
  %v1242 = vpop.f32.mrf.mxu0
  %1243 = vdwg.mxu0
  %v1244 = vadd.f32 %v1223, %v1241
  %s1245 = sadd.s32 %s69, 7
  %v1246 = vstv %s1245
  %vm1247 = vcmp.gt.s32.totalorder %v68, %v1246
  %v1248 = vxor.u32 %v1244, 2147483648
  %v1249 = vmul.f32 %v1248, 1.442695
  %v1250 = vpow.pop %v1249
  %v1251 = vadd.f32 %v1250, 1.0
  %v1252 = vrcp.pop %v1251
  %v1253 = vmul.f32 %v1251, %v1252
  %v1254 = vsub.f32 1.0, %v1253
  %v1255 = vmul.f32 %v1252, %v1254
  %v1256 = vadd.f32 %v1252, %v1255
  %vm1257 = vweird.f32 %v1251
  %vm1258 = vweird.f32 %v1252
  %vm1259 = vmor %vm1257, %vm1258
  %v1260 = vsel %vm1259, %v1252, %v1256
  %v1261 = vand.u32 2147483647, %v1251
  %vm1262 = vcmp.eq.f32.partialorder %v1261, 8.507059e+37
  %v1263 = vand.u32 %v1251, 2147483648
  %v1264 = vor.u32 1.1754944e-38, %v1263
  %v1265 = vsel %vm1262, %v1264, %v1260
  %v1266 = vmul.f32 1.0, %v1265
  %v1267 = vtanh.pop %v1244
  %v1268 = vmul.f32 %v1266, %v1133
  %1270 = vrot.lane.b32.xlu0 %v1267, 64
  %v1271 = vpop.permute.xlu0 %1270
  %v1273 = vmul.f32 %v1266, %v1271
  %1275 = vrot.lane.b32.xlu0 %v1273, 32
  %v1276 = vpop.permute.xlu0 %1275
  %v1278 = vadd.f32 %v1268, %v1276
  %v1279 = vtanh.pop %v1278
  %1281 = vrot.lane.b32.xlu0 %v1279, 64
  %v1282 = vpop.permute.xlu0 %1281
  %v1284 = vmul.f32 %v1266, %v1282
  %v1285 = vsel %vm1247, 1, 0
  %1286 = vset.pattern.permute.xlu0 0
  %1287 = vperm.xlu0 %1286, %v1285
  %v1288 = vpop.permute.xlu0 %1287
  %vm1289 = vcmp.eq.s32.totalorder %v1288, 1
  %v1290 = vsel %vm1289, %v1284, %v1132
  %v1291 = vsel %vm1289, %v1278, %v1133
  %v1292 = vsel %vm1289, %v1284, 0.0
  %v1293 = vpack.c.bf16 %v1292, %v1292
  %1295 = vrot.lane.b32.xlu0 %v1293, 32
  %v1296 = vpop.permute.xlu0 %1295
  %s1298 = scalar_lea.vmem %s5, 28
  %1299 = vst.msk [vmem:[%s1298] sm:$0xf] %vm175, %v1296
  %v1300 = vld [vmem:[%s47] sm:$0xf]
  %v1301 = vunpack.c.l.bf16 %v1300
  %v1302 = vpack.c.bf16 %v1211, %v1211
  %1304 = vrot.lane.b32.xlu0 %v1302, 32
  %v1305 = vpop.permute.xlu0 %1304
  %v1307 = vsel %vm97, %v1305, 0
  %1309 = vmatpush.bf16.msra.mxu0 0
  %1310 = vmatpush.bf16.msra.mxu0 0
  %1311 = vmatpush.bf16.msra.mxu0 0
  %1312 = vmatpush.bf16.msra.mxu0 0
  %1313 = vmatpush.bf16.msra.mxu0 0
  %1314 = vmatpush.bf16.msra.mxu0 0
  %1315 = vmatpush.bf16.msra.mxu0 %v190
  %1316 = vmatpush.bf16.msra.mxu0 %v189
  %1317 = vmatmul.bf16.gmra.mxu0 %v1307
  %v1318 = vpop.f32.mrf.mxu0
  %v1319 = vadd.f32 0.0, %v1318
  %v1320 = vpop.f32.mrf.mxu0
  %1321 = vdwg.mxu0
  %v1322 = vadd.f32 %v1301, %v1319
  %s1323 = ssub.s32 0, %s69
  %v1324 = vstv %s1323
  %vm1325 = vcmp.gt.s32.totalorder %v68, %v1324
  %v1326 = vxor.u32 %v1322, 2147483648
  %v1327 = vmul.f32 %v1326, 1.442695
  %v1328 = vpow.pop %v1327
  %v1329 = vadd.f32 %v1328, 1.0
  %v1330 = vrcp.pop %v1329
  %v1331 = vmul.f32 %v1329, %v1330
  %v1332 = vsub.f32 1.0, %v1331
  %v1333 = vmul.f32 %v1330, %v1332
  %v1334 = vadd.f32 %v1330, %v1333
  %vm1335 = vweird.f32 %v1329
  %vm1336 = vweird.f32 %v1330
  %vm1337 = vmor %vm1335, %vm1336
  %v1338 = vsel %vm1337, %v1330, %v1334
  %v1339 = vand.u32 2147483647, %v1329
  %vm1340 = vcmp.eq.f32.partialorder %v1339, 8.507059e+37
  %v1341 = vand.u32 %v1329, 2147483648
  %v1342 = vor.u32 1.1754944e-38, %v1341
  %v1343 = vsel %vm1340, %v1342, %v1338
  %v1344 = vmul.f32 1.0, %v1343
  %v1345 = vtanh.pop %v1322
  %v1346 = vmul.f32 %v1344, %v1212
  %1348 = vrot.lane.b32.xlu0 %v1345, 64
  %v1349 = vpop.permute.xlu0 %1348
  %v1351 = vmul.f32 %v1344, %v1349
  %1353 = vrot.lane.b32.xlu0 %v1351, 32
  %v1354 = vpop.permute.xlu0 %1353
  %v1356 = vadd.f32 %v1346, %v1354
  %v1357 = vtanh.pop %v1356
  %1359 = vrot.lane.b32.xlu0 %v1357, 64
  %v1360 = vpop.permute.xlu0 %1359
  %v1362 = vmul.f32 %v1344, %v1360
  %v1363 = vsel %vm1325, 1, 0
  %1364 = vset.pattern.permute.xlu0 0
  %1365 = vperm.xlu0 %1364, %v1363
  %v1366 = vpop.permute.xlu0 %1365
  %vm1367 = vcmp.eq.s32.totalorder %v1366, 1
  %v1368 = vsel %vm1367, %v1362, %v1211
  %v1369 = vsel %vm1367, %v1356, %v1212
  %v1370 = vsel %vm1367, %v1362, 0.0
  %v1371 = vpack.c.bf16 %v1370, %v1370
  %1373 = vrot.lane.b32.xlu0 %v1371, 32
  %v1374 = vpop.permute.xlu0 %1373
  %1376 = vst.msk [vmem:[%s55] sm:$0xf] %vm175, %v1374
  %1378 = vrot.lane.b32.xlu0 %v1290, 32
  %v1379 = vpop.permute.xlu0 %1378
  %1381 = vst.msk [vmem:[#allocation2] sm:$0xff] %vm97, %v1379
  %1383 = vrot.lane.b32.xlu0 %v1291, 96
  %v1384 = vpop.permute.xlu0 %1383
  %1386 = vst.msk [vmem:[#allocation3] sm:$0xff] %vm97, %v1384
  %1388 = vrot.lane.b32.xlu0 %v1368, 32
  %v1389 = vpop.permute.xlu0 %1388
  %1391 = vst.msk [vmem:[#allocation4] sm:$0xff] %vm97, %v1389
  %1393 = vrot.lane.b32.xlu0 %v1369, 96
  %v1394 = vpop.permute.xlu0 %1393
  %1396 = vst.msk [vmem:[#allocation5] sm:$0xff] %vm97, %v1394
  %s1397 = ssub.s32 0, 0
  %s1398 = smul.u32 8, %s1397
  %p1399 = scmp.lt.s32.totalorder %s1398, 7
  %s1400 = scalar_select %p1399, %s1398, 7
  %s1401 = smul.addr %s1400, 4
  %s1402 = scalar_lea.vmem %s6, %s1401
  // Predicated region
  $region26: #{encoder_forward.3} parent=0 // pred_check
    _
  $region27: #{encoder_forward.3} parent=0 // pred_check_branch
    %1404 = sbr.rel (0) target = $region29
  $region28: #{encoder_forward.3} parent=0 // pred_region
    _
  $region29: #{encoder_forward.3} parent=0 // pred_fallthru
    _
  // Predicated region
  $region30: #{encoder_forward.3} parent=0 // pred_check
    _
  $region31: #{encoder_forward.3} parent=0 // pred_check_branch
    %1406 = sbr.rel (0) target = $region33
  $region32: #{encoder_forward.3} parent=0 // pred_region
    %s1407 = ssub.s32 0, 0
    %s1408 = smul.u32 8, %s1407
  $region33: #{encoder_forward.3} parent=0 // pred_fallthru
    _
  // Predicated region
  $region34: #{encoder_forward.3} parent=0 // pred_check
    _
  $region35: #{encoder_forward.3} parent=0 // pred_check_branch
    %1410 = sbr.rel (0) target = $region37
  $region36: #{encoder_forward.3} parent=0 // pred_region
    _
  $region37: #{encoder_forward.3} parent=0 // pred_fallthru
    _
  // Predicated region
  $region38: #{encoder_forward.3} parent=0 // pred_check
    _
  $region39: #{encoder_forward.3} parent=0 // pred_check_branch
    %1412 = sbr.rel (0) target = $region41
  $region40: #{encoder_forward.3} parent=0 // pred_region
    %s1413 = ssub.s32 0, 0
    %s1414 = smul.u32 8, %s1413
    %p1415 = scmp.lt.s32.totalorder %s1414, 7
    %s1416 = scalar_select %p1415, %s1414, 7
    %s1417 = smul.addr %s1416, 4
    %s1418 = scalar_lea.vmem %s6, %s1417
  $region41: #{encoder_forward.3} parent=0 // pred_fallthru
    _

</llo_original>
